<compile_context>
chip_gen: v5e
topology: v5e:2x2
jax: 0.10.0
libtpu: 0.0.40
codegen_flags: <defaults>
</compile_context>

<pallas_src>
import functools

import numpy as np
import jax
import jax.numpy as jnp
from jax.experimental import pallas as pl
from jax.experimental.pallas import tpu as pltpu

VMEM_SPEC = pl.BlockSpec(memory_space=pltpu.MemorySpace.VMEM)


# ------------------------------- kernel --------------------------------------
def _actor_kernel(x_ref, st_ref,
                  s1_ref, s2_ref, s3_ref, s4_ref, s5_ref,
                  w1_ref, wr_ref,
                  bn_ref, bavg_ref,
                  lstm_ref, l1_ref, l2_ref, l3_ref, tb_ref,
                  act_ref, hc_ref, *, max_action, eps):
    f32, bf16 = jnp.float32, jnp.bfloat16
    N = x_ref.shape[1]                       # batch (folded onto lanes)
    NC = bavg_ref.shape[0]                   # N * 16
    NH = lstm_ref.shape[0] - NC              # N * 32
    NA = l3_ref.shape[1]                     # N * action_dim
    ND1 = l1_ref.shape[1]                    # N * 64
    NE = l1_ref.shape[0] - NH                # N * extras_dim
    bavg = bavg_ref[...]                     # (NC, NC) cross-batch channel averager

    s_refs = (s1_ref, s2_ref, s3_ref, s4_ref, s5_ref)
    x = x_ref[...]                           # (H*W, N) f32, rows ordered h*W + w
    w_off = 0                                # running offset into wr_ref (conv2..5)
    for l in range(5):
        s_ref = s_refs[l]
        n_taps, m_out, m_in = s_ref.shape
        acc = None
        if l == 0:
            # conv1 (Cin=1): bf16 MXU gather (K = H*W = 256), weight applied as
            # per-sample broadcasted outer products on the VPU (K=N matmuls avoided).
            x_bf = x.astype(bf16)
            for t in range(n_taps):
                g = jnp.dot(s_ref[t], x_bf, preferred_element_type=f32)   # (m_out, N)
                wt = w1_ref[t]                                            # (N, NC) f32
                for n in range(N):
                    p = g[:, n:n + 1] * wt[n:n + 1, :]
                    acc = p if acc is None else acc + p
        else:
            small = m_in < 16                  # degenerate spatial (2x2 / 1x1) layers
            xg = x if small else x.astype(bf16)
            for t in range(n_taps):
                if m_out == 1 and m_in == 1:
                    g = xg                     # 1x1 input: the only active tap is identity
                else:
                    s_t = s_ref[t].astype(f32) if small else s_ref[t]
                    g = jnp.dot(s_t, xg, preferred_element_type=f32)      # exact 0/1 gather
                wt = wr_ref[w_off + t]                                    # (NC, NC) bf16 block-diag
                p = jnp.dot(g.astype(bf16), wt, preferred_element_type=f32)
                acc = p if acc is None else acc + p
            w_off += n_taps

        # BatchNorm2d (training-mode batch statistics, biased variance) + ReLU.
        # Row mean = mean over (H,W); bavg averages/broadcasts across the batch
        # lane-blocks so statistics are per channel over (N, H, W).
        mean = jnp.dot(jnp.mean(acc, axis=0, keepdims=True), bavg,
                       preferred_element_type=f32)
        d = acc - mean
        var = jnp.dot(jnp.mean(d * d, axis=0, keepdims=True), bavg,
                      preferred_element_type=f32)
        x = jnp.maximum(d * jax.lax.rsqrt(var + eps) * bn_ref[0, l] + bn_ref[1, l],
                        0.0)                                              # (m_out, NC)

    # adaptive_avg_pool2d(1) + view(-1, 16): a row-mean in the (spatial, N*C) layout.
    xp = jnp.mean(x, axis=0, keepdims=True)                               # (1, NC)

    # nn.LSTMCell with stacked (i, f, g, o) gates: 2 matmuls + static lane slices.
    hx = st_ref[:, 0:NH]
    cx = st_ref[:, NH:2 * NH]
    ex = st_ref[:, 2 * NH:2 * NH + NE]
    pre = (jnp.dot(xp.astype(bf16), lstm_ref[0:NC, :], preferred_element_type=f32)
           + jnp.dot(hx.astype(bf16), lstm_ref[NC:NC + NH, :],
                     preferred_element_type=f32)
           + tb_ref[0])                                                   # (1, 4*NH)
    i_g = jax.nn.sigmoid(pre[:, 0:NH])
    f_g = jax.nn.sigmoid(pre[:, NH:2 * NH])
    g_g = jnp.tanh(pre[:, 2 * NH:3 * NH])
    o_g = jax.nn.sigmoid(pre[:, 3 * NH:4 * NH])
    c_new = f_g * cx + i_g * g_g
    h_new = o_g * jnp.tanh(c_new)                                         # (1, NH)

    # linear1(cat([h, extras])) as two matmuls (no in-kernel concat) + ReLU.
    y = jnp.maximum(
        jnp.dot(h_new.astype(bf16), l1_ref[0:NH, :], preferred_element_type=f32)
        + jnp.dot(ex.astype(bf16), l1_ref[NH:NH + NE, :], preferred_element_type=f32)
        + tb_ref[1][:, 0:ND1], 0.0)                                       # (1, N*64)
    y = jnp.maximum(jnp.dot(y.astype(bf16), l2_ref[...], preferred_element_type=f32)
                    + tb_ref[2][:, 0:l2_ref.shape[1]], 0.0)               # (1, N*128)
    y = (jnp.dot(y.astype(bf16), l3_ref[...], preferred_element_type=f32)
         + tb_ref[3][:, 0:NA])

    act_ref[...] = max_action * jnp.tanh(y)                               # (1, N*A)
    hc_ref[:, 0:NH] = h_new
    hc_ref[:, NH:2 * NH] = c_new


# --------------------------- one-time preparation -----------------------------
def _conv_selection(h, w, stride):
    """Per-sample 0/1 gather matrices for a 3x3, padding=1 conv (rows h*W + w)."""
    ho = (h + 2 - 3) // stride + 1
    wo = (w + 2 - 3) // stride + 1
    sel = np.zeros((9, ho * wo, h * w), np.float32)
    for kh in range(3):
        for kw in range(3):
            kk = kh * 3 + kw
            for oh in range(ho):
                ih = oh * stride + kh - 1
                if ih < 0 or ih >= h:
                    continue
                for ow in range(wo):
                    iw = ow * stride + kw - 1
                    if iw < 0 or iw >= w:
                        continue
                    sel[kk, oh * wo + ow, ih * w + iw] = 1.0
    return sel, ho, wo


def prepare_actor(params, batch, height, width):
    """One-time reformat of PyTorch-layout params into kernel-ready packed arrays."""
    N, C, HL = batch, 16, 32
    NC, NH = N * C, N * HL
    prep = {}
    strides = [2, 2, 2, 2, 1]
    h, w = height, width
    w1_blocks, wr_blocks = [], []
    for l in range(5):
        cin = 1 if l == 0 else C
        sel9, ho, wo = _conv_selection(h, w, strides[l])
        active = [k for k in range(9) if sel9[k].any()]      # drop all-padding taps
        prep[f"s{l + 1}"] = jnp.asarray(sel9[active], jnp.bfloat16)  # 0/1: exact in bf16
        wk = np.asarray(params[f"conv{l + 1}_w"], np.float32)        # (C, cin, 3, 3)
        for k in active:
            kh, kw = divmod(k, 3)
            blk = np.zeros((N * cin, NC), np.float32)
            wt = wk[:, :, kh, kw].T                                   # (cin, C)
            for n in range(N):
                blk[n * cin:(n + 1) * cin, n * C:(n + 1) * C] = wt
            (w1_blocks if l == 0 else wr_blocks).append(blk)
        h, w = ho, wo
    prep["w1"] = jnp.asarray(np.stack(w1_blocks), jnp.float32)        # (T1, N, NC)
    prep["w2345"] = jnp.asarray(np.stack(wr_blocks), jnp.bfloat16)    # (T2..5, NC, NC)
    # Conv biases intentionally dropped: training-mode BN cancels them exactly.

    bn = np.zeros((2, 5, 1, NC), np.float32)
    for l in range(5):
        bn[0, l, 0] = np.tile(np.asarray(params[f"bn{l + 1}_g"], np.float32), N)
        bn[1, l, 0] = np.tile(np.asarray(params[f"bn{l + 1}_b"], np.float32), N)
    prep["bn"] = jnp.asarray(bn)
    prep["bavg"] = jnp.asarray(
        np.kron(np.ones((N, N), np.float32) / N, np.eye(C, dtype=np.float32)))

    # LSTMCell: gates (i, f, g, o) stacked, batch-block-diagonal, columns (gate, n, c).
    wih = np.asarray(params["lstm_wih"], np.float32)                  # (4H, 16)
    whh = np.asarray(params["lstm_whh"], np.float32)                  # (4H, H)
    lb = (np.asarray(params["lstm_bih"], np.float32)
          + np.asarray(params["lstm_bhh"], np.float32))               # (4H,)
    lstm_w = np.zeros((NC + NH, 4 * NH), np.float32)
    lstm_b = np.zeros((4 * NH,), np.float32)
    for g in range(4):
        wgi = wih[g * HL:(g + 1) * HL].T                              # (16, H)
        wgh = whh[g * HL:(g + 1) * HL].T                              # (H, H)
        for n in range(N):
            c0 = g * NH + n * HL
            lstm_w[n * C:(n + 1) * C, c0:c0 + HL] = wgi
            lstm_w[NC + n * HL:NC + (n + 1) * HL, c0:c0 + HL] = wgh
            lstm_b[c0:c0 + HL] = lb[g * HL:(g + 1) * HL]
    prep["lstm_w"] = jnp.asarray(lstm_w, jnp.bfloat16)                # (NC+NH, 4*NH)

    # Linear layers, batch-block-diagonal; linear1 split into h / extras row blocks.
    l1 = np.asarray(params["l1_w"], np.float32)                       # (64, 36)
    l2 = np.asarray(params["l2_w"], np.float32)                       # (128, 64)
    l3 = np.asarray(params["l3_w"], np.float32)                       # (A, 128)
    E, D1, D2, A = l1.shape[1] - HL, l1.shape[0], l2.shape[0], l3.shape[0]
    l1_w = np.zeros((NH + N * E, N * D1), np.float32)
    l2_w = np.zeros((N * D1, N * D2), np.float32)
    l3_w = np.zeros((N * D2, N * A), np.float32)
    for n in range(N):
        l1_w[n * HL:(n + 1) * HL, n * D1:(n + 1) * D1] = l1[:, :HL].T
        l1_w[NH + n * E:NH + (n + 1) * E, n * D1:(n + 1) * D1] = l1[:, HL:].T
        l2_w[n * D1:(n + 1) * D1, n * D2:(n + 1) * D2] = l2.T
        l3_w[n * D2:(n + 1) * D2, n * A:(n + 1) * A] = l3.T
    prep["l1_w"] = jnp.asarray(l1_w, jnp.bfloat16)
    prep["l2_w"] = jnp.asarray(l2_w, jnp.bfloat16)
    prep["l3_w"] = jnp.asarray(l3_w, jnp.bfloat16)

    tb = np.zeros((4, 1, 4 * NH), np.float32)                         # all tail biases
    tb[0, 0, :] = lstm_b
    tb[1, 0, :N * D1] = np.tile(np.asarray(params["l1_b"], np.float32), N)
    tb[2, 0, :N * D2] = np.tile(np.asarray(params["l2_b"], np.float32), N)
    tb[3, 0, :N * A] = np.tile(np.asarray(params["l3_b"], np.float32), N)
    prep["tail_b"] = jnp.asarray(tb)
    return prep


# ------------------------------- forward --------------------------------------
def actor_forward(prep, image_nchw, inputs_extra, hx, cx, max_action):
    batch = image_nchw.shape[0]
    NH = hx.shape[0] * hx.shape[1]
    NA = prep["l3_w"].shape[1]
    action_dim = NA // batch
    # Layout plumbing only (no compute hoisted into the wrapper):
    x_img = image_nchw.reshape(batch, -1).T                    # (H*W, N)
    state = jnp.concatenate([hx.reshape(1, -1), cx.reshape(1, -1),
                             inputs_extra.reshape(1, -1)], axis=1)
    args = (x_img, state,
            prep["s1"], prep["s2"], prep["s3"], prep["s4"], prep["s5"],
            prep["w1"], prep["w2345"],
            prep["bn"], prep["bavg"],
            prep["lstm_w"], prep["l1_w"], prep["l2_w"], prep["l3_w"],
            prep["tail_b"])
    kernel = functools.partial(_actor_kernel, max_action=max_action, eps=1e-5)
    act, hc = pl.pallas_call(
        kernel,
        out_shape=(jax.ShapeDtypeStruct((1, NA), jnp.float32),
                   jax.ShapeDtypeStruct((1, 2 * NH), jnp.float32)),
        in_specs=[VMEM_SPEC] * len(args),
        out_specs=(VMEM_SPEC, VMEM_SPEC),
        cost_estimate=pl.CostEstimate(flops=2_000_000, transcendentals=512,
                                      bytes_accessed=520_000),
    )(*args)
    action = act.reshape(batch, action_dim)
    h_new = hc[:, :NH].reshape(batch, -1)
    c_new = hc[:, NH:].reshape(batch, -1)
    return action, (h_new, c_new)


# ------------------------------ parameters ------------------------------------
def init_params(key, action_dim):
    ks = jax.random.split(key, 16)

    def nrm(k, shape, s=0.1):
        return s * jax.random.normal(k, shape, jnp.float32)

    p = {}
    cins = [1, 16, 16, 16, 16]
    for idx, cin in enumerate(cins, start=1):
        p[f"conv{idx}_w"] = nrm(ks[idx - 1], (16, cin, 3, 3))
        p[f"conv{idx}_b"] = jnp.zeros((16,), jnp.float32)   # unused: cancelled by BN
        p[f"bn{idx}_g"] = jnp.ones((16,), jnp.float32)
        p[f"bn{idx}_b"] = jnp.zeros((16,), jnp.float32)
    p["lstm_wih"] = nrm(ks[5], (128, 16))
    p["lstm_whh"] = nrm(ks[6], (128, 32))
    p["lstm_bih"] = nrm(ks[7], (128,))
    p["lstm_bhh"] = nrm(ks[8], (128,))
    p["l1_w"] = nrm(ks[9], (64, 36))
    p["l1_b"] = nrm(ks[10], (64,))
    p["l2_w"] = nrm(ks[11], (128, 64))
    p["l2_b"] = nrm(ks[12], (128,))
    p["l3_w"] = nrm(ks[13], (action_dim, 128))
    p["l3_b"] = nrm(ks[14], (action_dim,))
    return p


if __name__ == "__main__":
    B = 2
    H = W = 16
    ACTION_DIM = 6
    MAX_ACTION = 1.0

    key = jax.random.PRNGKey(0)
    k_img, k_extra, k_h, k_c, k_params = jax.random.split(key, 5)

    image = jax.random.normal(k_img, (B, 1, H, W), jnp.float32)        # NCHW
    inputs_extra = jax.random.normal(k_extra, (B, 4), jnp.float32)     # 32 + 4 = 36
    hx = jax.random.normal(k_h, (B, 32), jnp.float32)
    cx = jax.random.normal(k_c, (B, 32), jnp.float32)

    params = init_params(k_params, ACTION_DIM)
    prep = prepare_actor(params, B, H, W)   # one-time: gather mats + packed weights

    fwd = jax.jit(functools.partial(actor_forward, max_action=MAX_ACTION))
    out, (h_new, c_new) = fwd(prep, image, inputs_extra, hx, cx)
    out = jax.block_until_ready(out)
    assert out.shape == (B, ACTION_DIM)
    assert h_new.shape == (B, 32) and c_new.shape == (B, 32)
    assert bool(jnp.all(jnp.isfinite(out)))
    print("KERNEL_OK")
</pallas_src>

<mosaic_0001>
module attributes {stable_mosaic.version = 11 : i64} {
  func.func @_actor_kernel(%arg0: memref<256x2xf32, #tpu.memory_space<vmem>>, %arg1: memref<1x136xf32, #tpu.memory_space<vmem>>, %arg2: memref<9x64x256xbf16, #tpu.memory_space<vmem>>, %arg3: memref<9x16x64xbf16, #tpu.memory_space<vmem>>, %arg4: memref<9x4x16xbf16, #tpu.memory_space<vmem>>, %arg5: memref<4x1x4xbf16, #tpu.memory_space<vmem>>, %arg6: memref<1x1x1xbf16, #tpu.memory_space<vmem>>, %arg7: memref<9x2x32xf32, #tpu.memory_space<vmem>>, %arg8: memref<23x32x32xbf16, #tpu.memory_space<vmem>>, %arg9: memref<2x5x1x32xf32, #tpu.memory_space<vmem>>, %arg10: memref<32x32xf32, #tpu.memory_space<vmem>>, %arg11: memref<96x256xbf16, #tpu.memory_space<vmem>>, %arg12: memref<72x128xbf16, #tpu.memory_space<vmem>>, %arg13: memref<128x256xbf16, #tpu.memory_space<vmem>>, %arg14: memref<256x12xbf16, #tpu.memory_space<vmem>>, %arg15: memref<4x1x256xf32, #tpu.memory_space<vmem>>, %arg16: memref<1x12xf32, #tpu.memory_space<vmem>>, %arg17: memref<1x128xf32, #tpu.memory_space<vmem>>) attributes {dimension_semantics = [], scalar_prefetch = 0 : i64, scratch_operands = 0 : i64, tpu.core_type = #tpu.core_type<tc>} {
    %c0 = arith.constant 0 : index
    %c0_0 = arith.constant 0 : index
    %0 = vector.load %arg10[%c0, %c0_0] : memref<32x32xf32, #tpu.memory_space<vmem>>, vector<32x32xf32>
    %c0_1 = arith.constant 0 : index
    %c0_2 = arith.constant 0 : index
    %1 = vector.load %arg0[%c0_1, %c0_2] : memref<256x2xf32, #tpu.memory_space<vmem>>, vector<256x2xf32>
    %2 = arith.truncf %1 : vector<256x2xf32> to vector<256x2xbf16>
    %c0_3 = arith.constant 0 : index
    %c0_4 = arith.constant 0 : index
    %c0_5 = arith.constant 0 : index
    %3 = vector.load %arg2[%c0_3, %c0_4, %c0_5] : memref<9x64x256xbf16, #tpu.memory_space<vmem>>, vector<1x64x256xbf16>
    %4 = vector.shape_cast %3 : vector<1x64x256xbf16> to vector<64x256xbf16>
    %cst = arith.constant dense<0.000000e+00> : vector<64x2xf32>
    %5 = tpu.matmul %4, %2, %cst {dimension_numbers = #tpu.dot_dimension_numbers<[1], [0], [0], [1], [0, 0, 1, 1], [], []>} : vector<64x256xbf16>, vector<256x2xbf16>, vector<64x2xf32> -> vector<64x2xf32>
    %c0_6 = arith.constant 0 : index
    %c0_7 = arith.constant 0 : index
    %c0_8 = arith.constant 0 : index
    %6 = vector.load %arg7[%c0_6, %c0_7, %c0_8] : memref<9x2x32xf32, #tpu.memory_space<vmem>>, vector<1x2x32xf32>
    %7 = vector.shape_cast %6 : vector<1x2x32xf32> to vector<2x32xf32>
    %8 = vector.extract_strided_slice %5 {offsets = [0, 0], sizes = [64, 1], strides = [1, 1]} : vector<64x2xf32> to vector<64x1xf32>
    %9 = vector.extract_strided_slice %7 {offsets = [0, 0], sizes = [1, 32], strides = [1, 1]} : vector<2x32xf32> to vector<1x32xf32>
    %10 = vector.broadcast %8 : vector<64x1xf32> to vector<64x32xf32>
    %11 = vector.broadcast %9 : vector<1x32xf32> to vector<64x32xf32>
    %12 = arith.mulf %10, %11 : vector<64x32xf32>
    %13 = vector.extract_strided_slice %5 {offsets = [0, 1], sizes = [64, 1], strides = [1, 1]} : vector<64x2xf32> to vector<64x1xf32>
    %14 = vector.extract_strided_slice %7 {offsets = [1, 0], sizes = [1, 32], strides = [1, 1]} : vector<2x32xf32> to vector<1x32xf32>
    %15 = vector.broadcast %13 : vector<64x1xf32> to vector<64x32xf32>
    %16 = vector.broadcast %14 : vector<1x32xf32> to vector<64x32xf32>
    %17 = arith.mulf %15, %16 : vector<64x32xf32>
    %18 = arith.addf %12, %17 : vector<64x32xf32>
    %c1 = arith.constant 1 : index
    %c0_9 = arith.constant 0 : index
    %c0_10 = arith.constant 0 : index
    %19 = vector.load %arg2[%c1, %c0_9, %c0_10] : memref<9x64x256xbf16, #tpu.memory_space<vmem>>, vector<1x64x256xbf16>
    %20 = vector.shape_cast %19 : vector<1x64x256xbf16> to vector<64x256xbf16>
    %cst_11 = arith.constant dense<0.000000e+00> : vector<64x2xf32>
    %21 = tpu.matmul %20, %2, %cst_11 {dimension_numbers = #tpu.dot_dimension_numbers<[1], [0], [0], [1], [0, 0, 1, 1], [], []>} : vector<64x256xbf16>, vector<256x2xbf16>, vector<64x2xf32> -> vector<64x2xf32>
    %c1_12 = arith.constant 1 : index
    %c0_13 = arith.constant 0 : index
    %c0_14 = arith.constant 0 : index
    %22 = vector.load %arg7[%c1_12, %c0_13, %c0_14] : memref<9x2x32xf32, #tpu.memory_space<vmem>>, vector<1x2x32xf32>
    %23 = vector.shape_cast %22 : vector<1x2x32xf32> to vector<2x32xf32>
    %24 = vector.extract_strided_slice %21 {offsets = [0, 0], sizes = [64, 1], strides = [1, 1]} : vector<64x2xf32> to vector<64x1xf32>
    %25 = vector.extract_strided_slice %23 {offsets = [0, 0], sizes = [1, 32], strides = [1, 1]} : vector<2x32xf32> to vector<1x32xf32>
    %26 = vector.broadcast %24 : vector<64x1xf32> to vector<64x32xf32>
    %27 = vector.broadcast %25 : vector<1x32xf32> to vector<64x32xf32>
    %28 = arith.mulf %26, %27 : vector<64x32xf32>
    %29 = arith.addf %18, %28 : vector<64x32xf32>
    %30 = vector.extract_strided_slice %21 {offsets = [0, 1], sizes = [64, 1], strides = [1, 1]} : vector<64x2xf32> to vector<64x1xf32>
    %31 = vector.extract_strided_slice %23 {offsets = [1, 0], sizes = [1, 32], strides = [1, 1]} : vector<2x32xf32> to vector<1x32xf32>
    %32 = vector.broadcast %30 : vector<64x1xf32> to vector<64x32xf32>
    %33 = vector.broadcast %31 : vector<1x32xf32> to vector<64x32xf32>
    %34 = arith.mulf %32, %33 : vector<64x32xf32>
    %35 = arith.addf %29, %34 : vector<64x32xf32>
    %c2 = arith.constant 2 : index
    %c0_15 = arith.constant 0 : index
    %c0_16 = arith.constant 0 : index
    %36 = vector.load %arg2[%c2, %c0_15, %c0_16] : memref<9x64x256xbf16, #tpu.memory_space<vmem>>, vector<1x64x256xbf16>
    %37 = vector.shape_cast %36 : vector<1x64x256xbf16> to vector<64x256xbf16>
    %cst_17 = arith.constant dense<0.000000e+00> : vector<64x2xf32>
    %38 = tpu.matmul %37, %2, %cst_17 {dimension_numbers = #tpu.dot_dimension_numbers<[1], [0], [0], [1], [0, 0, 1, 1], [], []>} : vector<64x256xbf16>, vector<256x2xbf16>, vector<64x2xf32> -> vector<64x2xf32>
    %c2_18 = arith.constant 2 : index
    %c0_19 = arith.constant 0 : index
    %c0_20 = arith.constant 0 : index
    %39 = vector.load %arg7[%c2_18, %c0_19, %c0_20] : memref<9x2x32xf32, #tpu.memory_space<vmem>>, vector<1x2x32xf32>
    %40 = vector.shape_cast %39 : vector<1x2x32xf32> to vector<2x32xf32>
    %41 = vector.extract_strided_slice %38 {offsets = [0, 0], sizes = [64, 1], strides = [1, 1]} : vector<64x2xf32> to vector<64x1xf32>
    %42 = vector.extract_strided_slice %40 {offsets = [0, 0], sizes = [1, 32], strides = [1, 1]} : vector<2x32xf32> to vector<1x32xf32>
    %43 = vector.broadcast %41 : vector<64x1xf32> to vector<64x32xf32>
    %44 = vector.broadcast %42 : vector<1x32xf32> to vector<64x32xf32>
    %45 = arith.mulf %43, %44 : vector<64x32xf32>
    %46 = arith.addf %35, %45 : vector<64x32xf32>
    %47 = vector.extract_strided_slice %38 {offsets = [0, 1], sizes = [64, 1], strides = [1, 1]} : vector<64x2xf32> to vector<64x1xf32>
    %48 = vector.extract_strided_slice %40 {offsets = [1, 0], sizes = [1, 32], strides = [1, 1]} : vector<2x32xf32> to vector<1x32xf32>
    %49 = vector.broadcast %47 : vector<64x1xf32> to vector<64x32xf32>
    %50 = vector.broadcast %48 : vector<1x32xf32> to vector<64x32xf32>
    %51 = arith.mulf %49, %50 : vector<64x32xf32>
    %52 = arith.addf %46, %51 : vector<64x32xf32>
    %c3 = arith.constant 3 : index
    %c0_21 = arith.constant 0 : index
    %c0_22 = arith.constant 0 : index
    %53 = vector.load %arg2[%c3, %c0_21, %c0_22] : memref<9x64x256xbf16, #tpu.memory_space<vmem>>, vector<1x64x256xbf16>
    %54 = vector.shape_cast %53 : vector<1x64x256xbf16> to vector<64x256xbf16>
    %cst_23 = arith.constant dense<0.000000e+00> : vector<64x2xf32>
    %55 = tpu.matmul %54, %2, %cst_23 {dimension_numbers = #tpu.dot_dimension_numbers<[1], [0], [0], [1], [0, 0, 1, 1], [], []>} : vector<64x256xbf16>, vector<256x2xbf16>, vector<64x2xf32> -> vector<64x2xf32>
    %c3_24 = arith.constant 3 : index
    %c0_25 = arith.constant 0 : index
    %c0_26 = arith.constant 0 : index
    %56 = vector.load %arg7[%c3_24, %c0_25, %c0_26] : memref<9x2x32xf32, #tpu.memory_space<vmem>>, vector<1x2x32xf32>
    %57 = vector.shape_cast %56 : vector<1x2x32xf32> to vector<2x32xf32>
    %58 = vector.extract_strided_slice %55 {offsets = [0, 0], sizes = [64, 1], strides = [1, 1]} : vector<64x2xf32> to vector<64x1xf32>
    %59 = vector.extract_strided_slice %57 {offsets = [0, 0], sizes = [1, 32], strides = [1, 1]} : vector<2x32xf32> to vector<1x32xf32>
    %60 = vector.broadcast %58 : vector<64x1xf32> to vector<64x32xf32>
    %61 = vector.broadcast %59 : vector<1x32xf32> to vector<64x32xf32>
    %62 = arith.mulf %60, %61 : vector<64x32xf32>
    %63 = arith.addf %52, %62 : vector<64x32xf32>
    %64 = vector.extract_strided_slice %55 {offsets = [0, 1], sizes = [64, 1], strides = [1, 1]} : vector<64x2xf32> to vector<64x1xf32>
    %65 = vector.extract_strided_slice %57 {offsets = [1, 0], sizes = [1, 32], strides = [1, 1]} : vector<2x32xf32> to vector<1x32xf32>
    %66 = vector.broadcast %64 : vector<64x1xf32> to vector<64x32xf32>
    %67 = vector.broadcast %65 : vector<1x32xf32> to vector<64x32xf32>
    %68 = arith.mulf %66, %67 : vector<64x32xf32>
    %69 = arith.addf %63, %68 : vector<64x32xf32>
    %c4 = arith.constant 4 : index
    %c0_27 = arith.constant 0 : index
    %c0_28 = arith.constant 0 : index
    %70 = vector.load %arg2[%c4, %c0_27, %c0_28] : memref<9x64x256xbf16, #tpu.memory_space<vmem>>, vector<1x64x256xbf16>
    %71 = vector.shape_cast %70 : vector<1x64x256xbf16> to vector<64x256xbf16>
    %cst_29 = arith.constant dense<0.000000e+00> : vector<64x2xf32>
    %72 = tpu.matmul %71, %2, %cst_29 {dimension_numbers = #tpu.dot_dimension_numbers<[1], [0], [0], [1], [0, 0, 1, 1], [], []>} : vector<64x256xbf16>, vector<256x2xbf16>, vector<64x2xf32> -> vector<64x2xf32>
    %c4_30 = arith.constant 4 : index
    %c0_31 = arith.constant 0 : index
    %c0_32 = arith.constant 0 : index
    %73 = vector.load %arg7[%c4_30, %c0_31, %c0_32] : memref<9x2x32xf32, #tpu.memory_space<vmem>>, vector<1x2x32xf32>
    %74 = vector.shape_cast %73 : vector<1x2x32xf32> to vector<2x32xf32>
    %75 = vector.extract_strided_slice %72 {offsets = [0, 0], sizes = [64, 1], strides = [1, 1]} : vector<64x2xf32> to vector<64x1xf32>
    %76 = vector.extract_strided_slice %74 {offsets = [0, 0], sizes = [1, 32], strides = [1, 1]} : vector<2x32xf32> to vector<1x32xf32>
    %77 = vector.broadcast %75 : vector<64x1xf32> to vector<64x32xf32>
    %78 = vector.broadcast %76 : vector<1x32xf32> to vector<64x32xf32>
    %79 = arith.mulf %77, %78 : vector<64x32xf32>
    %80 = arith.addf %69, %79 : vector<64x32xf32>
    %81 = vector.extract_strided_slice %72 {offsets = [0, 1], sizes = [64, 1], strides = [1, 1]} : vector<64x2xf32> to vector<64x1xf32>
    %82 = vector.extract_strided_slice %74 {offsets = [1, 0], sizes = [1, 32], strides = [1, 1]} : vector<2x32xf32> to vector<1x32xf32>
    %83 = vector.broadcast %81 : vector<64x1xf32> to vector<64x32xf32>
    %84 = vector.broadcast %82 : vector<1x32xf32> to vector<64x32xf32>
    %85 = arith.mulf %83, %84 : vector<64x32xf32>
    %86 = arith.addf %80, %85 : vector<64x32xf32>
    %c5 = arith.constant 5 : index
    %c0_33 = arith.constant 0 : index
    %c0_34 = arith.constant 0 : index
    %87 = vector.load %arg2[%c5, %c0_33, %c0_34] : memref<9x64x256xbf16, #tpu.memory_space<vmem>>, vector<1x64x256xbf16>
    %88 = vector.shape_cast %87 : vector<1x64x256xbf16> to vector<64x256xbf16>
    %cst_35 = arith.constant dense<0.000000e+00> : vector<64x2xf32>
    %89 = tpu.matmul %88, %2, %cst_35 {dimension_numbers = #tpu.dot_dimension_numbers<[1], [0], [0], [1], [0, 0, 1, 1], [], []>} : vector<64x256xbf16>, vector<256x2xbf16>, vector<64x2xf32> -> vector<64x2xf32>
    %c5_36 = arith.constant 5 : index
    %c0_37 = arith.constant 0 : index
    %c0_38 = arith.constant 0 : index
    %90 = vector.load %arg7[%c5_36, %c0_37, %c0_38] : memref<9x2x32xf32, #tpu.memory_space<vmem>>, vector<1x2x32xf32>
    %91 = vector.shape_cast %90 : vector<1x2x32xf32> to vector<2x32xf32>
    %92 = vector.extract_strided_slice %89 {offsets = [0, 0], sizes = [64, 1], strides = [1, 1]} : vector<64x2xf32> to vector<64x1xf32>
    %93 = vector.extract_strided_slice %91 {offsets = [0, 0], sizes = [1, 32], strides = [1, 1]} : vector<2x32xf32> to vector<1x32xf32>
    %94 = vector.broadcast %92 : vector<64x1xf32> to vector<64x32xf32>
    %95 = vector.broadcast %93 : vector<1x32xf32> to vector<64x32xf32>
    %96 = arith.mulf %94, %95 : vector<64x32xf32>
    %97 = arith.addf %86, %96 : vector<64x32xf32>
    %98 = vector.extract_strided_slice %89 {offsets = [0, 1], sizes = [64, 1], strides = [1, 1]} : vector<64x2xf32> to vector<64x1xf32>
    %99 = vector.extract_strided_slice %91 {offsets = [1, 0], sizes = [1, 32], strides = [1, 1]} : vector<2x32xf32> to vector<1x32xf32>
    %100 = vector.broadcast %98 : vector<64x1xf32> to vector<64x32xf32>
    %101 = vector.broadcast %99 : vector<1x32xf32> to vector<64x32xf32>
    %102 = arith.mulf %100, %101 : vector<64x32xf32>
    %103 = arith.addf %97, %102 : vector<64x32xf32>
    %c6 = arith.constant 6 : index
    %c0_39 = arith.constant 0 : index
    %c0_40 = arith.constant 0 : index
    %104 = vector.load %arg2[%c6, %c0_39, %c0_40] : memref<9x64x256xbf16, #tpu.memory_space<vmem>>, vector<1x64x256xbf16>
    %105 = vector.shape_cast %104 : vector<1x64x256xbf16> to vector<64x256xbf16>
    %cst_41 = arith.constant dense<0.000000e+00> : vector<64x2xf32>
    %106 = tpu.matmul %105, %2, %cst_41 {dimension_numbers = #tpu.dot_dimension_numbers<[1], [0], [0], [1], [0, 0, 1, 1], [], []>} : vector<64x256xbf16>, vector<256x2xbf16>, vector<64x2xf32> -> vector<64x2xf32>
    %c6_42 = arith.constant 6 : index
    %c0_43 = arith.constant 0 : index
    %c0_44 = arith.constant 0 : index
    %107 = vector.load %arg7[%c6_42, %c0_43, %c0_44] : memref<9x2x32xf32, #tpu.memory_space<vmem>>, vector<1x2x32xf32>
    %108 = vector.shape_cast %107 : vector<1x2x32xf32> to vector<2x32xf32>
    %109 = vector.extract_strided_slice %106 {offsets = [0, 0], sizes = [64, 1], strides = [1, 1]} : vector<64x2xf32> to vector<64x1xf32>
    %110 = vector.extract_strided_slice %108 {offsets = [0, 0], sizes = [1, 32], strides = [1, 1]} : vector<2x32xf32> to vector<1x32xf32>
    %111 = vector.broadcast %109 : vector<64x1xf32> to vector<64x32xf32>
    %112 = vector.broadcast %110 : vector<1x32xf32> to vector<64x32xf32>
    %113 = arith.mulf %111, %112 : vector<64x32xf32>
    %114 = arith.addf %103, %113 : vector<64x32xf32>
    %115 = vector.extract_strided_slice %106 {offsets = [0, 1], sizes = [64, 1], strides = [1, 1]} : vector<64x2xf32> to vector<64x1xf32>
    %116 = vector.extract_strided_slice %108 {offsets = [1, 0], sizes = [1, 32], strides = [1, 1]} : vector<2x32xf32> to vector<1x32xf32>
    %117 = vector.broadcast %115 : vector<64x1xf32> to vector<64x32xf32>
    %118 = vector.broadcast %116 : vector<1x32xf32> to vector<64x32xf32>
    %119 = arith.mulf %117, %118 : vector<64x32xf32>
    %120 = arith.addf %114, %119 : vector<64x32xf32>
    %c7 = arith.constant 7 : index
    %c0_45 = arith.constant 0 : index
    %c0_46 = arith.constant 0 : index
    %121 = vector.load %arg2[%c7, %c0_45, %c0_46] : memref<9x64x256xbf16, #tpu.memory_space<vmem>>, vector<1x64x256xbf16>
    %122 = vector.shape_cast %121 : vector<1x64x256xbf16> to vector<64x256xbf16>
    %cst_47 = arith.constant dense<0.000000e+00> : vector<64x2xf32>
    %123 = tpu.matmul %122, %2, %cst_47 {dimension_numbers = #tpu.dot_dimension_numbers<[1], [0], [0], [1], [0, 0, 1, 1], [], []>} : vector<64x256xbf16>, vector<256x2xbf16>, vector<64x2xf32> -> vector<64x2xf32>
    %c7_48 = arith.constant 7 : index
    %c0_49 = arith.constant 0 : index
    %c0_50 = arith.constant 0 : index
    %124 = vector.load %arg7[%c7_48, %c0_49, %c0_50] : memref<9x2x32xf32, #tpu.memory_space<vmem>>, vector<1x2x32xf32>
    %125 = vector.shape_cast %124 : vector<1x2x32xf32> to vector<2x32xf32>
    %126 = vector.extract_strided_slice %123 {offsets = [0, 0], sizes = [64, 1], strides = [1, 1]} : vector<64x2xf32> to vector<64x1xf32>
    %127 = vector.extract_strided_slice %125 {offsets = [0, 0], sizes = [1, 32], strides = [1, 1]} : vector<2x32xf32> to vector<1x32xf32>
    %128 = vector.broadcast %126 : vector<64x1xf32> to vector<64x32xf32>
    %129 = vector.broadcast %127 : vector<1x32xf32> to vector<64x32xf32>
    %130 = arith.mulf %128, %129 : vector<64x32xf32>
    %131 = arith.addf %120, %130 : vector<64x32xf32>
    %132 = vector.extract_strided_slice %123 {offsets = [0, 1], sizes = [64, 1], strides = [1, 1]} : vector<64x2xf32> to vector<64x1xf32>
    %133 = vector.extract_strided_slice %125 {offsets = [1, 0], sizes = [1, 32], strides = [1, 1]} : vector<2x32xf32> to vector<1x32xf32>
    %134 = vector.broadcast %132 : vector<64x1xf32> to vector<64x32xf32>
    %135 = vector.broadcast %133 : vector<1x32xf32> to vector<64x32xf32>
    %136 = arith.mulf %134, %135 : vector<64x32xf32>
    %137 = arith.addf %131, %136 : vector<64x32xf32>
    %c8 = arith.constant 8 : index
    %c0_51 = arith.constant 0 : index
    %c0_52 = arith.constant 0 : index
    %138 = vector.load %arg2[%c8, %c0_51, %c0_52] : memref<9x64x256xbf16, #tpu.memory_space<vmem>>, vector<1x64x256xbf16>
    %139 = vector.shape_cast %138 : vector<1x64x256xbf16> to vector<64x256xbf16>
    %cst_53 = arith.constant dense<0.000000e+00> : vector<64x2xf32>
    %140 = tpu.matmul %139, %2, %cst_53 {dimension_numbers = #tpu.dot_dimension_numbers<[1], [0], [0], [1], [0, 0, 1, 1], [], []>} : vector<64x256xbf16>, vector<256x2xbf16>, vector<64x2xf32> -> vector<64x2xf32>
    %c8_54 = arith.constant 8 : index
    %c0_55 = arith.constant 0 : index
    %c0_56 = arith.constant 0 : index
    %141 = vector.load %arg7[%c8_54, %c0_55, %c0_56] : memref<9x2x32xf32, #tpu.memory_space<vmem>>, vector<1x2x32xf32>
    %142 = vector.shape_cast %141 : vector<1x2x32xf32> to vector<2x32xf32>
    %143 = vector.extract_strided_slice %140 {offsets = [0, 0], sizes = [64, 1], strides = [1, 1]} : vector<64x2xf32> to vector<64x1xf32>
    %144 = vector.extract_strided_slice %142 {offsets = [0, 0], sizes = [1, 32], strides = [1, 1]} : vector<2x32xf32> to vector<1x32xf32>
    %145 = vector.broadcast %143 : vector<64x1xf32> to vector<64x32xf32>
    %146 = vector.broadcast %144 : vector<1x32xf32> to vector<64x32xf32>
    %147 = arith.mulf %145, %146 : vector<64x32xf32>
    %148 = arith.addf %137, %147 : vector<64x32xf32>
    %149 = vector.extract_strided_slice %140 {offsets = [0, 1], sizes = [64, 1], strides = [1, 1]} : vector<64x2xf32> to vector<64x1xf32>
    %150 = vector.extract_strided_slice %142 {offsets = [1, 0], sizes = [1, 32], strides = [1, 1]} : vector<2x32xf32> to vector<1x32xf32>
    %151 = vector.broadcast %149 : vector<64x1xf32> to vector<64x32xf32>
    %152 = vector.broadcast %150 : vector<1x32xf32> to vector<64x32xf32>
    %153 = arith.mulf %151, %152 : vector<64x32xf32>
    %154 = arith.addf %148, %153 : vector<64x32xf32>
    %cst_57 = arith.constant dense<0.000000e+00> : vector<32xf32>
    %155 = vector.multi_reduction <add>, %154, %cst_57 [0] : vector<64x32xf32> to vector<32xf32>
    %156 = vector.shape_cast %155 : vector<32xf32> to vector<1x32xf32>
    %cst_58 = arith.constant 6.400000e+01 : f32
    %157 = vector.broadcast %cst_58 : f32 to vector<1x32xf32>
    %158 = arith.divf %156, %157 : vector<1x32xf32>
    %cst_59 = arith.constant dense<0.000000e+00> : vector<1x32xf32>
    %159 = tpu.matmul %158, %0, %cst_59 {dimension_numbers = #tpu.dot_dimension_numbers<[1], [0], [0], [1], [0, 0, 1, 1], [], []>} : vector<1x32xf32>, vector<32x32xf32>, vector<1x32xf32> -> vector<1x32xf32>
    %160 = vector.broadcast %159 : vector<1x32xf32> to vector<64x32xf32>
    %161 = arith.subf %154, %160 : vector<64x32xf32>
    %162 = arith.mulf %161, %161 : vector<64x32xf32>
    %cst_60 = arith.constant dense<0.000000e+00> : vector<32xf32>
    %163 = vector.multi_reduction <add>, %162, %cst_60 [0] : vector<64x32xf32> to vector<32xf32>
    %164 = vector.shape_cast %163 : vector<32xf32> to vector<1x32xf32>
    %cst_61 = arith.constant 6.400000e+01 : f32
    %165 = vector.broadcast %cst_61 : f32 to vector<1x32xf32>
    %166 = arith.divf %164, %165 : vector<1x32xf32>
    %cst_62 = arith.constant dense<0.000000e+00> : vector<1x32xf32>
    %167 = tpu.matmul %166, %0, %cst_62 {dimension_numbers = #tpu.dot_dimension_numbers<[1], [0], [0], [1], [0, 0, 1, 1], [], []>} : vector<1x32xf32>, vector<32x32xf32>, vector<1x32xf32> -> vector<1x32xf32>
    %cst_63 = arith.constant 9.99999974E-6 : f32
    %168 = vector.broadcast %cst_63 : f32 to vector<1x32xf32>
    %169 = arith.addf %167, %168 : vector<1x32xf32>
    %170 = math.rsqrt %169 : vector<1x32xf32>
    %171 = vector.broadcast %170 : vector<1x32xf32> to vector<64x32xf32>
    %172 = arith.mulf %161, %171 : vector<64x32xf32>
    %c0_64 = arith.constant 0 : index
    %c0_65 = arith.constant 0 : index
    %c0_66 = arith.constant 0 : index
    %c0_67 = arith.constant 0 : index
    %173 = vector.load %arg9[%c0_64, %c0_65, %c0_66, %c0_67] : memref<2x5x1x32xf32, #tpu.memory_space<vmem>>, vector<1x1x1x32xf32>
    %174 = vector.shape_cast %173 : vector<1x1x1x32xf32> to vector<1x32xf32>
    %175 = vector.broadcast %174 : vector<1x32xf32> to vector<64x32xf32>
    %176 = arith.mulf %172, %175 : vector<64x32xf32>
    %c1_68 = arith.constant 1 : index
    %c0_69 = arith.constant 0 : index
    %c0_70 = arith.constant 0 : index
    %c0_71 = arith.constant 0 : index
    %177 = vector.load %arg9[%c1_68, %c0_69, %c0_70, %c0_71] : memref<2x5x1x32xf32, #tpu.memory_space<vmem>>, vector<1x1x1x32xf32>
    %178 = vector.shape_cast %177 : vector<1x1x1x32xf32> to vector<1x32xf32>
    %179 = vector.broadcast %178 : vector<1x32xf32> to vector<64x32xf32>
    %180 = arith.addf %176, %179 : vector<64x32xf32>
    %cst_72 = arith.constant 0.000000e+00 : f32
    %181 = vector.broadcast %cst_72 : f32 to vector<64x32xf32>
    %182 = arith.maximumf %180, %181 : vector<64x32xf32>
    %183 = arith.truncf %182 : vector<64x32xf32> to vector<64x32xbf16>
    %c0_73 = arith.constant 0 : index
    %c0_74 = arith.constant 0 : index
    %c0_75 = arith.constant 0 : index
    %184 = vector.load %arg3[%c0_73, %c0_74, %c0_75] : memref<9x16x64xbf16, #tpu.memory_space<vmem>>, vector<1x16x64xbf16>
    %185 = vector.shape_cast %184 : vector<1x16x64xbf16> to vector<16x64xbf16>
    %cst_76 = arith.constant dense<0.000000e+00> : vector<16x32xf32>
    %186 = tpu.matmul %185, %183, %cst_76 {dimension_numbers = #tpu.dot_dimension_numbers<[1], [0], [0], [1], [0, 0, 1, 1], [], []>} : vector<16x64xbf16>, vector<64x32xbf16>, vector<16x32xf32> -> vector<16x32xf32>
    %c0_77 = arith.constant 0 : index
    %c0_78 = arith.constant 0 : index
    %c0_79 = arith.constant 0 : index
    %187 = vector.load %arg8[%c0_77, %c0_78, %c0_79] : memref<23x32x32xbf16, #tpu.memory_space<vmem>>, vector<1x32x32xbf16>
    %188 = vector.shape_cast %187 : vector<1x32x32xbf16> to vector<32x32xbf16>
    %189 = arith.truncf %186 : vector<16x32xf32> to vector<16x32xbf16>
    %cst_80 = arith.constant dense<0.000000e+00> : vector<16x32xf32>
    %190 = tpu.matmul %189, %188, %cst_80 {dimension_numbers = #tpu.dot_dimension_numbers<[1], [0], [0], [1], [0, 0, 1, 1], [], []>} : vector<16x32xbf16>, vector<32x32xbf16>, vector<16x32xf32> -> vector<16x32xf32>
    %c1_81 = arith.constant 1 : index
    %c0_82 = arith.constant 0 : index
    %c0_83 = arith.constant 0 : index
    %191 = vector.load %arg3[%c1_81, %c0_82, %c0_83] : memref<9x16x64xbf16, #tpu.memory_space<vmem>>, vector<1x16x64xbf16>
    %192 = vector.shape_cast %191 : vector<1x16x64xbf16> to vector<16x64xbf16>
    %cst_84 = arith.constant dense<0.000000e+00> : vector<16x32xf32>
    %193 = tpu.matmul %192, %183, %cst_84 {dimension_numbers = #tpu.dot_dimension_numbers<[1], [0], [0], [1], [0, 0, 1, 1], [], []>} : vector<16x64xbf16>, vector<64x32xbf16>, vector<16x32xf32> -> vector<16x32xf32>
    %c1_85 = arith.constant 1 : index
    %c0_86 = arith.constant 0 : index
    %c0_87 = arith.constant 0 : index
    %194 = vector.load %arg8[%c1_85, %c0_86, %c0_87] : memref<23x32x32xbf16, #tpu.memory_space<vmem>>, vector<1x32x32xbf16>
    %195 = vector.shape_cast %194 : vector<1x32x32xbf16> to vector<32x32xbf16>
    %196 = arith.truncf %193 : vector<16x32xf32> to vector<16x32xbf16>
    %cst_88 = arith.constant dense<0.000000e+00> : vector<16x32xf32>
    %197 = tpu.matmul %196, %195, %cst_88 {dimension_numbers = #tpu.dot_dimension_numbers<[1], [0], [0], [1], [0, 0, 1, 1], [], []>} : vector<16x32xbf16>, vector<32x32xbf16>, vector<16x32xf32> -> vector<16x32xf32>
    %198 = arith.addf %190, %197 : vector<16x32xf32>
    %c2_89 = arith.constant 2 : index
    %c0_90 = arith.constant 0 : index
    %c0_91 = arith.constant 0 : index
    %199 = vector.load %arg3[%c2_89, %c0_90, %c0_91] : memref<9x16x64xbf16, #tpu.memory_space<vmem>>, vector<1x16x64xbf16>
    %200 = vector.shape_cast %199 : vector<1x16x64xbf16> to vector<16x64xbf16>
    %cst_92 = arith.constant dense<0.000000e+00> : vector<16x32xf32>
    %201 = tpu.matmul %200, %183, %cst_92 {dimension_numbers = #tpu.dot_dimension_numbers<[1], [0], [0], [1], [0, 0, 1, 1], [], []>} : vector<16x64xbf16>, vector<64x32xbf16>, vector<16x32xf32> -> vector<16x32xf32>
    %c2_93 = arith.constant 2 : index
    %c0_94 = arith.constant 0 : index
    %c0_95 = arith.constant 0 : index
    %202 = vector.load %arg8[%c2_93, %c0_94, %c0_95] : memref<23x32x32xbf16, #tpu.memory_space<vmem>>, vector<1x32x32xbf16>
    %203 = vector.shape_cast %202 : vector<1x32x32xbf16> to vector<32x32xbf16>
    %204 = arith.truncf %201 : vector<16x32xf32> to vector<16x32xbf16>
    %cst_96 = arith.constant dense<0.000000e+00> : vector<16x32xf32>
    %205 = tpu.matmul %204, %203, %cst_96 {dimension_numbers = #tpu.dot_dimension_numbers<[1], [0], [0], [1], [0, 0, 1, 1], [], []>} : vector<16x32xbf16>, vector<32x32xbf16>, vector<16x32xf32> -> vector<16x32xf32>
    %206 = arith.addf %198, %205 : vector<16x32xf32>
    %c3_97 = arith.constant 3 : index
    %c0_98 = arith.constant 0 : index
    %c0_99 = arith.constant 0 : index
    %207 = vector.load %arg3[%c3_97, %c0_98, %c0_99] : memref<9x16x64xbf16, #tpu.memory_space<vmem>>, vector<1x16x64xbf16>
    %208 = vector.shape_cast %207 : vector<1x16x64xbf16> to vector<16x64xbf16>
    %cst_100 = arith.constant dense<0.000000e+00> : vector<16x32xf32>
    %209 = tpu.matmul %208, %183, %cst_100 {dimension_numbers = #tpu.dot_dimension_numbers<[1], [0], [0], [1], [0, 0, 1, 1], [], []>} : vector<16x64xbf16>, vector<64x32xbf16>, vector<16x32xf32> -> vector<16x32xf32>
    %c3_101 = arith.constant 3 : index
    %c0_102 = arith.constant 0 : index
    %c0_103 = arith.constant 0 : index
    %210 = vector.load %arg8[%c3_101, %c0_102, %c0_103] : memref<23x32x32xbf16, #tpu.memory_space<vmem>>, vector<1x32x32xbf16>
    %211 = vector.shape_cast %210 : vector<1x32x32xbf16> to vector<32x32xbf16>
    %212 = arith.truncf %209 : vector<16x32xf32> to vector<16x32xbf16>
    %cst_104 = arith.constant dense<0.000000e+00> : vector<16x32xf32>
    %213 = tpu.matmul %212, %211, %cst_104 {dimension_numbers = #tpu.dot_dimension_numbers<[1], [0], [0], [1], [0, 0, 1, 1], [], []>} : vector<16x32xbf16>, vector<32x32xbf16>, vector<16x32xf32> -> vector<16x32xf32>
    %214 = arith.addf %206, %213 : vector<16x32xf32>
    %c4_105 = arith.constant 4 : index
    %c0_106 = arith.constant 0 : index
    %c0_107 = arith.constant 0 : index
    %215 = vector.load %arg3[%c4_105, %c0_106, %c0_107] : memref<9x16x64xbf16, #tpu.memory_space<vmem>>, vector<1x16x64xbf16>
    %216 = vector.shape_cast %215 : vector<1x16x64xbf16> to vector<16x64xbf16>
    %cst_108 = arith.constant dense<0.000000e+00> : vector<16x32xf32>
    %217 = tpu.matmul %216, %183, %cst_108 {dimension_numbers = #tpu.dot_dimension_numbers<[1], [0], [0], [1], [0, 0, 1, 1], [], []>} : vector<16x64xbf16>, vector<64x32xbf16>, vector<16x32xf32> -> vector<16x32xf32>
    %c4_109 = arith.constant 4 : index
    %c0_110 = arith.constant 0 : index
    %c0_111 = arith.constant 0 : index
    %218 = vector.load %arg8[%c4_109, %c0_110, %c0_111] : memref<23x32x32xbf16, #tpu.memory_space<vmem>>, vector<1x32x32xbf16>
    %219 = vector.shape_cast %218 : vector<1x32x32xbf16> to vector<32x32xbf16>
    %220 = arith.truncf %217 : vector<16x32xf32> to vector<16x32xbf16>
    %cst_112 = arith.constant dense<0.000000e+00> : vector<16x32xf32>
    %221 = tpu.matmul %220, %219, %cst_112 {dimension_numbers = #tpu.dot_dimension_numbers<[1], [0], [0], [1], [0, 0, 1, 1], [], []>} : vector<16x32xbf16>, vector<32x32xbf16>, vector<16x32xf32> -> vector<16x32xf32>
    %222 = arith.addf %214, %221 : vector<16x32xf32>
    %c5_113 = arith.constant 5 : index
    %c0_114 = arith.constant 0 : index
    %c0_115 = arith.constant 0 : index
    %223 = vector.load %arg3[%c5_113, %c0_114, %c0_115] : memref<9x16x64xbf16, #tpu.memory_space<vmem>>, vector<1x16x64xbf16>
    %224 = vector.shape_cast %223 : vector<1x16x64xbf16> to vector<16x64xbf16>
    %cst_116 = arith.constant dense<0.000000e+00> : vector<16x32xf32>
    %225 = tpu.matmul %224, %183, %cst_116 {dimension_numbers = #tpu.dot_dimension_numbers<[1], [0], [0], [1], [0, 0, 1, 1], [], []>} : vector<16x64xbf16>, vector<64x32xbf16>, vector<16x32xf32> -> vector<16x32xf32>
    %c5_117 = arith.constant 5 : index
    %c0_118 = arith.constant 0 : index
    %c0_119 = arith.constant 0 : index
    %226 = vector.load %arg8[%c5_117, %c0_118, %c0_119] : memref<23x32x32xbf16, #tpu.memory_space<vmem>>, vector<1x32x32xbf16>
    %227 = vector.shape_cast %226 : vector<1x32x32xbf16> to vector<32x32xbf16>
    %228 = arith.truncf %225 : vector<16x32xf32> to vector<16x32xbf16>
    %cst_120 = arith.constant dense<0.000000e+00> : vector<16x32xf32>
    %229 = tpu.matmul %228, %227, %cst_120 {dimension_numbers = #tpu.dot_dimension_numbers<[1], [0], [0], [1], [0, 0, 1, 1], [], []>} : vector<16x32xbf16>, vector<32x32xbf16>, vector<16x32xf32> -> vector<16x32xf32>
    %230 = arith.addf %222, %229 : vector<16x32xf32>
    %c6_121 = arith.constant 6 : index
    %c0_122 = arith.constant 0 : index
    %c0_123 = arith.constant 0 : index
    %231 = vector.load %arg3[%c6_121, %c0_122, %c0_123] : memref<9x16x64xbf16, #tpu.memory_space<vmem>>, vector<1x16x64xbf16>
    %232 = vector.shape_cast %231 : vector<1x16x64xbf16> to vector<16x64xbf16>
    %cst_124 = arith.constant dense<0.000000e+00> : vector<16x32xf32>
    %233 = tpu.matmul %232, %183, %cst_124 {dimension_numbers = #tpu.dot_dimension_numbers<[1], [0], [0], [1], [0, 0, 1, 1], [], []>} : vector<16x64xbf16>, vector<64x32xbf16>, vector<16x32xf32> -> vector<16x32xf32>
    %c6_125 = arith.constant 6 : index
    %c0_126 = arith.constant 0 : index
    %c0_127 = arith.constant 0 : index
    %234 = vector.load %arg8[%c6_125, %c0_126, %c0_127] : memref<23x32x32xbf16, #tpu.memory_space<vmem>>, vector<1x32x32xbf16>
    %235 = vector.shape_cast %234 : vector<1x32x32xbf16> to vector<32x32xbf16>
    %236 = arith.truncf %233 : vector<16x32xf32> to vector<16x32xbf16>
    %cst_128 = arith.constant dense<0.000000e+00> : vector<16x32xf32>
    %237 = tpu.matmul %236, %235, %cst_128 {dimension_numbers = #tpu.dot_dimension_numbers<[1], [0], [0], [1], [0, 0, 1, 1], [], []>} : vector<16x32xbf16>, vector<32x32xbf16>, vector<16x32xf32> -> vector<16x32xf32>
    %238 = arith.addf %230, %237 : vector<16x32xf32>
    %c7_129 = arith.constant 7 : index
    %c0_130 = arith.constant 0 : index
    %c0_131 = arith.constant 0 : index
    %239 = vector.load %arg3[%c7_129, %c0_130, %c0_131] : memref<9x16x64xbf16, #tpu.memory_space<vmem>>, vector<1x16x64xbf16>
    %240 = vector.shape_cast %239 : vector<1x16x64xbf16> to vector<16x64xbf16>
    %cst_132 = arith.constant dense<0.000000e+00> : vector<16x32xf32>
    %241 = tpu.matmul %240, %183, %cst_132 {dimension_numbers = #tpu.dot_dimension_numbers<[1], [0], [0], [1], [0, 0, 1, 1], [], []>} : vector<16x64xbf16>, vector<64x32xbf16>, vector<16x32xf32> -> vector<16x32xf32>
    %c7_133 = arith.constant 7 : index
    %c0_134 = arith.constant 0 : index
    %c0_135 = arith.constant 0 : index
    %242 = vector.load %arg8[%c7_133, %c0_134, %c0_135] : memref<23x32x32xbf16, #tpu.memory_space<vmem>>, vector<1x32x32xbf16>
    %243 = vector.shape_cast %242 : vector<1x32x32xbf16> to vector<32x32xbf16>
    %244 = arith.truncf %241 : vector<16x32xf32> to vector<16x32xbf16>
    %cst_136 = arith.constant dense<0.000000e+00> : vector<16x32xf32>
    %245 = tpu.matmul %244, %243, %cst_136 {dimension_numbers = #tpu.dot_dimension_numbers<[1], [0], [0], [1], [0, 0, 1, 1], [], []>} : vector<16x32xbf16>, vector<32x32xbf16>, vector<16x32xf32> -> vector<16x32xf32>
    %246 = arith.addf %238, %245 : vector<16x32xf32>
    %c8_137 = arith.constant 8 : index
    %c0_138 = arith.constant 0 : index
    %c0_139 = arith.constant 0 : index
    %247 = vector.load %arg3[%c8_137, %c0_138, %c0_139] : memref<9x16x64xbf16, #tpu.memory_space<vmem>>, vector<1x16x64xbf16>
    %248 = vector.shape_cast %247 : vector<1x16x64xbf16> to vector<16x64xbf16>
    %cst_140 = arith.constant dense<0.000000e+00> : vector<16x32xf32>
    %249 = tpu.matmul %248, %183, %cst_140 {dimension_numbers = #tpu.dot_dimension_numbers<[1], [0], [0], [1], [0, 0, 1, 1], [], []>} : vector<16x64xbf16>, vector<64x32xbf16>, vector<16x32xf32> -> vector<16x32xf32>
    %c8_141 = arith.constant 8 : index
    %c0_142 = arith.constant 0 : index
    %c0_143 = arith.constant 0 : index
    %250 = vector.load %arg8[%c8_141, %c0_142, %c0_143] : memref<23x32x32xbf16, #tpu.memory_space<vmem>>, vector<1x32x32xbf16>
    %251 = vector.shape_cast %250 : vector<1x32x32xbf16> to vector<32x32xbf16>
    %252 = arith.truncf %249 : vector<16x32xf32> to vector<16x32xbf16>
    %cst_144 = arith.constant dense<0.000000e+00> : vector<16x32xf32>
    %253 = tpu.matmul %252, %251, %cst_144 {dimension_numbers = #tpu.dot_dimension_numbers<[1], [0], [0], [1], [0, 0, 1, 1], [], []>} : vector<16x32xbf16>, vector<32x32xbf16>, vector<16x32xf32> -> vector<16x32xf32>
    %254 = arith.addf %246, %253 : vector<16x32xf32>
    %cst_145 = arith.constant dense<0.000000e+00> : vector<32xf32>
    %255 = vector.multi_reduction <add>, %254, %cst_145 [0] : vector<16x32xf32> to vector<32xf32>
    %256 = vector.shape_cast %255 : vector<32xf32> to vector<1x32xf32>
    %cst_146 = arith.constant 1.600000e+01 : f32
    %257 = vector.broadcast %cst_146 : f32 to vector<1x32xf32>
    %258 = arith.divf %256, %257 : vector<1x32xf32>
    %cst_147 = arith.constant dense<0.000000e+00> : vector<1x32xf32>
    %259 = tpu.matmul %258, %0, %cst_147 {dimension_numbers = #tpu.dot_dimension_numbers<[1], [0], [0], [1], [0, 0, 1, 1], [], []>} : vector<1x32xf32>, vector<32x32xf32>, vector<1x32xf32> -> vector<1x32xf32>
    %260 = vector.broadcast %259 : vector<1x32xf32> to vector<16x32xf32>
    %261 = arith.subf %254, %260 : vector<16x32xf32>
    %262 = arith.mulf %261, %261 : vector<16x32xf32>
    %cst_148 = arith.constant dense<0.000000e+00> : vector<32xf32>
    %263 = vector.multi_reduction <add>, %262, %cst_148 [0] : vector<16x32xf32> to vector<32xf32>
    %264 = vector.shape_cast %263 : vector<32xf32> to vector<1x32xf32>
    %cst_149 = arith.constant 1.600000e+01 : f32
    %265 = vector.broadcast %cst_149 : f32 to vector<1x32xf32>
    %266 = arith.divf %264, %265 : vector<1x32xf32>
    %cst_150 = arith.constant dense<0.000000e+00> : vector<1x32xf32>
    %267 = tpu.matmul %266, %0, %cst_150 {dimension_numbers = #tpu.dot_dimension_numbers<[1], [0], [0], [1], [0, 0, 1, 1], [], []>} : vector<1x32xf32>, vector<32x32xf32>, vector<1x32xf32> -> vector<1x32xf32>
    %cst_151 = arith.constant 9.99999974E-6 : f32
    %268 = vector.broadcast %cst_151 : f32 to vector<1x32xf32>
    %269 = arith.addf %267, %268 : vector<1x32xf32>
    %270 = math.rsqrt %269 : vector<1x32xf32>
    %271 = vector.broadcast %270 : vector<1x32xf32> to vector<16x32xf32>
    %272 = arith.mulf %261, %271 : vector<16x32xf32>
    %c0_152 = arith.constant 0 : index
    %c1_153 = arith.constant 1 : index
    %c0_154 = arith.constant 0 : index
    %c0_155 = arith.constant 0 : index
    %273 = vector.load %arg9[%c0_152, %c1_153, %c0_154, %c0_155] : memref<2x5x1x32xf32, #tpu.memory_space<vmem>>, vector<1x1x1x32xf32>
    %274 = vector.shape_cast %273 : vector<1x1x1x32xf32> to vector<1x32xf32>
    %275 = vector.broadcast %274 : vector<1x32xf32> to vector<16x32xf32>
    %276 = arith.mulf %272, %275 : vector<16x32xf32>
    %c1_156 = arith.constant 1 : index
    %c1_157 = arith.constant 1 : index
    %c0_158 = arith.constant 0 : index
    %c0_159 = arith.constant 0 : index
    %277 = vector.load %arg9[%c1_156, %c1_157, %c0_158, %c0_159] : memref<2x5x1x32xf32, #tpu.memory_space<vmem>>, vector<1x1x1x32xf32>
    %278 = vector.shape_cast %277 : vector<1x1x1x32xf32> to vector<1x32xf32>
    %279 = vector.broadcast %278 : vector<1x32xf32> to vector<16x32xf32>
    %280 = arith.addf %276, %279 : vector<16x32xf32>
    %cst_160 = arith.constant 0.000000e+00 : f32
    %281 = vector.broadcast %cst_160 : f32 to vector<16x32xf32>
    %282 = arith.maximumf %280, %281 : vector<16x32xf32>
    %283 = arith.truncf %282 : vector<16x32xf32> to vector<16x32xbf16>
    %c0_161 = arith.constant 0 : index
    %c0_162 = arith.constant 0 : index
    %c0_163 = arith.constant 0 : index
    %284 = vector.load %arg4[%c0_161, %c0_162, %c0_163] : memref<9x4x16xbf16, #tpu.memory_space<vmem>>, vector<1x4x16xbf16>
    %285 = vector.shape_cast %284 : vector<1x4x16xbf16> to vector<4x16xbf16>
    %cst_164 = arith.constant dense<0.000000e+00> : vector<4x32xf32>
    %286 = tpu.matmul %285, %283, %cst_164 {dimension_numbers = #tpu.dot_dimension_numbers<[1], [0], [0], [1], [0, 0, 1, 1], [], []>} : vector<4x16xbf16>, vector<16x32xbf16>, vector<4x32xf32> -> vector<4x32xf32>
    %c9 = arith.constant 9 : index
    %c0_165 = arith.constant 0 : index
    %c0_166 = arith.constant 0 : index
    %287 = vector.load %arg8[%c9, %c0_165, %c0_166] : memref<23x32x32xbf16, #tpu.memory_space<vmem>>, vector<1x32x32xbf16>
    %288 = vector.shape_cast %287 : vector<1x32x32xbf16> to vector<32x32xbf16>
    %289 = arith.truncf %286 : vector<4x32xf32> to vector<4x32xbf16>
    %cst_167 = arith.constant dense<0.000000e+00> : vector<4x32xf32>
    %290 = tpu.matmul %289, %288, %cst_167 {dimension_numbers = #tpu.dot_dimension_numbers<[1], [0], [0], [1], [0, 0, 1, 1], [], []>} : vector<4x32xbf16>, vector<32x32xbf16>, vector<4x32xf32> -> vector<4x32xf32>
    %c1_168 = arith.constant 1 : index
    %c0_169 = arith.constant 0 : index
    %c0_170 = arith.constant 0 : index
    %291 = vector.load %arg4[%c1_168, %c0_169, %c0_170] : memref<9x4x16xbf16, #tpu.memory_space<vmem>>, vector<1x4x16xbf16>
    %292 = vector.shape_cast %291 : vector<1x4x16xbf16> to vector<4x16xbf16>
    %cst_171 = arith.constant dense<0.000000e+00> : vector<4x32xf32>
    %293 = tpu.matmul %292, %283, %cst_171 {dimension_numbers = #tpu.dot_dimension_numbers<[1], [0], [0], [1], [0, 0, 1, 1], [], []>} : vector<4x16xbf16>, vector<16x32xbf16>, vector<4x32xf32> -> vector<4x32xf32>
    %c10 = arith.constant 10 : index
    %c0_172 = arith.constant 0 : index
    %c0_173 = arith.constant 0 : index
    %294 = vector.load %arg8[%c10, %c0_172, %c0_173] : memref<23x32x32xbf16, #tpu.memory_space<vmem>>, vector<1x32x32xbf16>
    %295 = vector.shape_cast %294 : vector<1x32x32xbf16> to vector<32x32xbf16>
    %296 = arith.truncf %293 : vector<4x32xf32> to vector<4x32xbf16>
    %cst_174 = arith.constant dense<0.000000e+00> : vector<4x32xf32>
    %297 = tpu.matmul %296, %295, %cst_174 {dimension_numbers = #tpu.dot_dimension_numbers<[1], [0], [0], [1], [0, 0, 1, 1], [], []>} : vector<4x32xbf16>, vector<32x32xbf16>, vector<4x32xf32> -> vector<4x32xf32>
    %298 = arith.addf %290, %297 : vector<4x32xf32>
    %c2_175 = arith.constant 2 : index
    %c0_176 = arith.constant 0 : index
    %c0_177 = arith.constant 0 : index
    %299 = vector.load %arg4[%c2_175, %c0_176, %c0_177] : memref<9x4x16xbf16, #tpu.memory_space<vmem>>, vector<1x4x16xbf16>
    %300 = vector.shape_cast %299 : vector<1x4x16xbf16> to vector<4x16xbf16>
    %cst_178 = arith.constant dense<0.000000e+00> : vector<4x32xf32>
    %301 = tpu.matmul %300, %283, %cst_178 {dimension_numbers = #tpu.dot_dimension_numbers<[1], [0], [0], [1], [0, 0, 1, 1], [], []>} : vector<4x16xbf16>, vector<16x32xbf16>, vector<4x32xf32> -> vector<4x32xf32>
    %c11 = arith.constant 11 : index
    %c0_179 = arith.constant 0 : index
    %c0_180 = arith.constant 0 : index
    %302 = vector.load %arg8[%c11, %c0_179, %c0_180] : memref<23x32x32xbf16, #tpu.memory_space<vmem>>, vector<1x32x32xbf16>
    %303 = vector.shape_cast %302 : vector<1x32x32xbf16> to vector<32x32xbf16>
    %304 = arith.truncf %301 : vector<4x32xf32> to vector<4x32xbf16>
    %cst_181 = arith.constant dense<0.000000e+00> : vector<4x32xf32>
    %305 = tpu.matmul %304, %303, %cst_181 {dimension_numbers = #tpu.dot_dimension_numbers<[1], [0], [0], [1], [0, 0, 1, 1], [], []>} : vector<4x32xbf16>, vector<32x32xbf16>, vector<4x32xf32> -> vector<4x32xf32>
    %306 = arith.addf %298, %305 : vector<4x32xf32>
    %c3_182 = arith.constant 3 : index
    %c0_183 = arith.constant 0 : index
    %c0_184 = arith.constant 0 : index
    %307 = vector.load %arg4[%c3_182, %c0_183, %c0_184] : memref<9x4x16xbf16, #tpu.memory_space<vmem>>, vector<1x4x16xbf16>
    %308 = vector.shape_cast %307 : vector<1x4x16xbf16> to vector<4x16xbf16>
    %cst_185 = arith.constant dense<0.000000e+00> : vector<4x32xf32>
    %309 = tpu.matmul %308, %283, %cst_185 {dimension_numbers = #tpu.dot_dimension_numbers<[1], [0], [0], [1], [0, 0, 1, 1], [], []>} : vector<4x16xbf16>, vector<16x32xbf16>, vector<4x32xf32> -> vector<4x32xf32>
    %c12 = arith.constant 12 : index
    %c0_186 = arith.constant 0 : index
    %c0_187 = arith.constant 0 : index
    %310 = vector.load %arg8[%c12, %c0_186, %c0_187] : memref<23x32x32xbf16, #tpu.memory_space<vmem>>, vector<1x32x32xbf16>
    %311 = vector.shape_cast %310 : vector<1x32x32xbf16> to vector<32x32xbf16>
    %312 = arith.truncf %309 : vector<4x32xf32> to vector<4x32xbf16>
    %cst_188 = arith.constant dense<0.000000e+00> : vector<4x32xf32>
    %313 = tpu.matmul %312, %311, %cst_188 {dimension_numbers = #tpu.dot_dimension_numbers<[1], [0], [0], [1], [0, 0, 1, 1], [], []>} : vector<4x32xbf16>, vector<32x32xbf16>, vector<4x32xf32> -> vector<4x32xf32>
    %314 = arith.addf %306, %313 : vector<4x32xf32>
    %c4_189 = arith.constant 4 : index
    %c0_190 = arith.constant 0 : index
    %c0_191 = arith.constant 0 : index
    %315 = vector.load %arg4[%c4_189, %c0_190, %c0_191] : memref<9x4x16xbf16, #tpu.memory_space<vmem>>, vector<1x4x16xbf16>
    %316 = vector.shape_cast %315 : vector<1x4x16xbf16> to vector<4x16xbf16>
    %cst_192 = arith.constant dense<0.000000e+00> : vector<4x32xf32>
    %317 = tpu.matmul %316, %283, %cst_192 {dimension_numbers = #tpu.dot_dimension_numbers<[1], [0], [0], [1], [0, 0, 1, 1], [], []>} : vector<4x16xbf16>, vector<16x32xbf16>, vector<4x32xf32> -> vector<4x32xf32>
    %c13 = arith.constant 13 : index
    %c0_193 = arith.constant 0 : index
    %c0_194 = arith.constant 0 : index
    %318 = vector.load %arg8[%c13, %c0_193, %c0_194] : memref<23x32x32xbf16, #tpu.memory_space<vmem>>, vector<1x32x32xbf16>
    %319 = vector.shape_cast %318 : vector<1x32x32xbf16> to vector<32x32xbf16>
    %320 = arith.truncf %317 : vector<4x32xf32> to vector<4x32xbf16>
    %cst_195 = arith.constant dense<0.000000e+00> : vector<4x32xf32>
    %321 = tpu.matmul %320, %319, %cst_195 {dimension_numbers = #tpu.dot_dimension_numbers<[1], [0], [0], [1], [0, 0, 1, 1], [], []>} : vector<4x32xbf16>, vector<32x32xbf16>, vector<4x32xf32> -> vector<4x32xf32>
    %322 = arith.addf %314, %321 : vector<4x32xf32>
    %c5_196 = arith.constant 5 : index
    %c0_197 = arith.constant 0 : index
    %c0_198 = arith.constant 0 : index
    %323 = vector.load %arg4[%c5_196, %c0_197, %c0_198] : memref<9x4x16xbf16, #tpu.memory_space<vmem>>, vector<1x4x16xbf16>
    %324 = vector.shape_cast %323 : vector<1x4x16xbf16> to vector<4x16xbf16>
    %cst_199 = arith.constant dense<0.000000e+00> : vector<4x32xf32>
    %325 = tpu.matmul %324, %283, %cst_199 {dimension_numbers = #tpu.dot_dimension_numbers<[1], [0], [0], [1], [0, 0, 1, 1], [], []>} : vector<4x16xbf16>, vector<16x32xbf16>, vector<4x32xf32> -> vector<4x32xf32>
    %c14 = arith.constant 14 : index
    %c0_200 = arith.constant 0 : index
    %c0_201 = arith.constant 0 : index
    %326 = vector.load %arg8[%c14, %c0_200, %c0_201] : memref<23x32x32xbf16, #tpu.memory_space<vmem>>, vector<1x32x32xbf16>
    %327 = vector.shape_cast %326 : vector<1x32x32xbf16> to vector<32x32xbf16>
    %328 = arith.truncf %325 : vector<4x32xf32> to vector<4x32xbf16>
    %cst_202 = arith.constant dense<0.000000e+00> : vector<4x32xf32>
    %329 = tpu.matmul %328, %327, %cst_202 {dimension_numbers = #tpu.dot_dimension_numbers<[1], [0], [0], [1], [0, 0, 1, 1], [], []>} : vector<4x32xbf16>, vector<32x32xbf16>, vector<4x32xf32> -> vector<4x32xf32>
    %330 = arith.addf %322, %329 : vector<4x32xf32>
    %c6_203 = arith.constant 6 : index
    %c0_204 = arith.constant 0 : index
    %c0_205 = arith.constant 0 : index
    %331 = vector.load %arg4[%c6_203, %c0_204, %c0_205] : memref<9x4x16xbf16, #tpu.memory_space<vmem>>, vector<1x4x16xbf16>
    %332 = vector.shape_cast %331 : vector<1x4x16xbf16> to vector<4x16xbf16>
    %cst_206 = arith.constant dense<0.000000e+00> : vector<4x32xf32>
    %333 = tpu.matmul %332, %283, %cst_206 {dimension_numbers = #tpu.dot_dimension_numbers<[1], [0], [0], [1], [0, 0, 1, 1], [], []>} : vector<4x16xbf16>, vector<16x32xbf16>, vector<4x32xf32> -> vector<4x32xf32>
    %c15 = arith.constant 15 : index
    %c0_207 = arith.constant 0 : index
    %c0_208 = arith.constant 0 : index
    %334 = vector.load %arg8[%c15, %c0_207, %c0_208] : memref<23x32x32xbf16, #tpu.memory_space<vmem>>, vector<1x32x32xbf16>
    %335 = vector.shape_cast %334 : vector<1x32x32xbf16> to vector<32x32xbf16>
    %336 = arith.truncf %333 : vector<4x32xf32> to vector<4x32xbf16>
    %cst_209 = arith.constant dense<0.000000e+00> : vector<4x32xf32>
    %337 = tpu.matmul %336, %335, %cst_209 {dimension_numbers = #tpu.dot_dimension_numbers<[1], [0], [0], [1], [0, 0, 1, 1], [], []>} : vector<4x32xbf16>, vector<32x32xbf16>, vector<4x32xf32> -> vector<4x32xf32>
    %338 = arith.addf %330, %337 : vector<4x32xf32>
    %c7_210 = arith.constant 7 : index
    %c0_211 = arith.constant 0 : index
    %c0_212 = arith.constant 0 : index
    %339 = vector.load %arg4[%c7_210, %c0_211, %c0_212] : memref<9x4x16xbf16, #tpu.memory_space<vmem>>, vector<1x4x16xbf16>
    %340 = vector.shape_cast %339 : vector<1x4x16xbf16> to vector<4x16xbf16>
    %cst_213 = arith.constant dense<0.000000e+00> : vector<4x32xf32>
    %341 = tpu.matmul %340, %283, %cst_213 {dimension_numbers = #tpu.dot_dimension_numbers<[1], [0], [0], [1], [0, 0, 1, 1], [], []>} : vector<4x16xbf16>, vector<16x32xbf16>, vector<4x32xf32> -> vector<4x32xf32>
    %c16 = arith.constant 16 : index
    %c0_214 = arith.constant 0 : index
    %c0_215 = arith.constant 0 : index
    %342 = vector.load %arg8[%c16, %c0_214, %c0_215] : memref<23x32x32xbf16, #tpu.memory_space<vmem>>, vector<1x32x32xbf16>
    %343 = vector.shape_cast %342 : vector<1x32x32xbf16> to vector<32x32xbf16>
    %344 = arith.truncf %341 : vector<4x32xf32> to vector<4x32xbf16>
    %cst_216 = arith.constant dense<0.000000e+00> : vector<4x32xf32>
    %345 = tpu.matmul %344, %343, %cst_216 {dimension_numbers = #tpu.dot_dimension_numbers<[1], [0], [0], [1], [0, 0, 1, 1], [], []>} : vector<4x32xbf16>, vector<32x32xbf16>, vector<4x32xf32> -> vector<4x32xf32>
    %346 = arith.addf %338, %345 : vector<4x32xf32>
    %c8_217 = arith.constant 8 : index
    %c0_218 = arith.constant 0 : index
    %c0_219 = arith.constant 0 : index
    %347 = vector.load %arg4[%c8_217, %c0_218, %c0_219] : memref<9x4x16xbf16, #tpu.memory_space<vmem>>, vector<1x4x16xbf16>
    %348 = vector.shape_cast %347 : vector<1x4x16xbf16> to vector<4x16xbf16>
    %cst_220 = arith.constant dense<0.000000e+00> : vector<4x32xf32>
    %349 = tpu.matmul %348, %283, %cst_220 {dimension_numbers = #tpu.dot_dimension_numbers<[1], [0], [0], [1], [0, 0, 1, 1], [], []>} : vector<4x16xbf16>, vector<16x32xbf16>, vector<4x32xf32> -> vector<4x32xf32>
    %c17 = arith.constant 17 : index
    %c0_221 = arith.constant 0 : index
    %c0_222 = arith.constant 0 : index
    %350 = vector.load %arg8[%c17, %c0_221, %c0_222] : memref<23x32x32xbf16, #tpu.memory_space<vmem>>, vector<1x32x32xbf16>
    %351 = vector.shape_cast %350 : vector<1x32x32xbf16> to vector<32x32xbf16>
    %352 = arith.truncf %349 : vector<4x32xf32> to vector<4x32xbf16>
    %cst_223 = arith.constant dense<0.000000e+00> : vector<4x32xf32>
    %353 = tpu.matmul %352, %351, %cst_223 {dimension_numbers = #tpu.dot_dimension_numbers<[1], [0], [0], [1], [0, 0, 1, 1], [], []>} : vector<4x32xbf16>, vector<32x32xbf16>, vector<4x32xf32> -> vector<4x32xf32>
    %354 = arith.addf %346, %353 : vector<4x32xf32>
    %cst_224 = arith.constant dense<0.000000e+00> : vector<32xf32>
    %355 = vector.multi_reduction <add>, %354, %cst_224 [0] : vector<4x32xf32> to vector<32xf32>
    %356 = vector.shape_cast %355 : vector<32xf32> to vector<1x32xf32>
    %cst_225 = arith.constant 4.000000e+00 : f32
    %357 = vector.broadcast %cst_225 : f32 to vector<1x32xf32>
    %358 = arith.divf %356, %357 : vector<1x32xf32>
    %cst_226 = arith.constant dense<0.000000e+00> : vector<1x32xf32>
    %359 = tpu.matmul %358, %0, %cst_226 {dimension_numbers = #tpu.dot_dimension_numbers<[1], [0], [0], [1], [0, 0, 1, 1], [], []>} : vector<1x32xf32>, vector<32x32xf32>, vector<1x32xf32> -> vector<1x32xf32>
    %360 = vector.broadcast %359 : vector<1x32xf32> to vector<4x32xf32>
    %361 = arith.subf %354, %360 : vector<4x32xf32>
    %362 = arith.mulf %361, %361 : vector<4x32xf32>
    %cst_227 = arith.constant dense<0.000000e+00> : vector<32xf32>
    %363 = vector.multi_reduction <add>, %362, %cst_227 [0] : vector<4x32xf32> to vector<32xf32>
    %364 = vector.shape_cast %363 : vector<32xf32> to vector<1x32xf32>
    %cst_228 = arith.constant 4.000000e+00 : f32
    %365 = vector.broadcast %cst_228 : f32 to vector<1x32xf32>
    %366 = arith.divf %364, %365 : vector<1x32xf32>
    %cst_229 = arith.constant dense<0.000000e+00> : vector<1x32xf32>
    %367 = tpu.matmul %366, %0, %cst_229 {dimension_numbers = #tpu.dot_dimension_numbers<[1], [0], [0], [1], [0, 0, 1, 1], [], []>} : vector<1x32xf32>, vector<32x32xf32>, vector<1x32xf32> -> vector<1x32xf32>
    %cst_230 = arith.constant 9.99999974E-6 : f32
    %368 = vector.broadcast %cst_230 : f32 to vector<1x32xf32>
    %369 = arith.addf %367, %368 : vector<1x32xf32>
    %370 = math.rsqrt %369 : vector<1x32xf32>
    %371 = vector.broadcast %370 : vector<1x32xf32> to vector<4x32xf32>
    %372 = arith.mulf %361, %371 : vector<4x32xf32>
    %c0_231 = arith.constant 0 : index
    %c2_232 = arith.constant 2 : index
    %c0_233 = arith.constant 0 : index
    %c0_234 = arith.constant 0 : index
    %373 = vector.load %arg9[%c0_231, %c2_232, %c0_233, %c0_234] : memref<2x5x1x32xf32, #tpu.memory_space<vmem>>, vector<1x1x1x32xf32>
    %374 = vector.shape_cast %373 : vector<1x1x1x32xf32> to vector<1x32xf32>
    %375 = vector.broadcast %374 : vector<1x32xf32> to vector<4x32xf32>
    %376 = arith.mulf %372, %375 : vector<4x32xf32>
    %c1_235 = arith.constant 1 : index
    %c2_236 = arith.constant 2 : index
    %c0_237 = arith.constant 0 : index
    %c0_238 = arith.constant 0 : index
    %377 = vector.load %arg9[%c1_235, %c2_236, %c0_237, %c0_238] : memref<2x5x1x32xf32, #tpu.memory_space<vmem>>, vector<1x1x1x32xf32>
    %378 = vector.shape_cast %377 : vector<1x1x1x32xf32> to vector<1x32xf32>
    %379 = vector.broadcast %378 : vector<1x32xf32> to vector<4x32xf32>
    %380 = arith.addf %376, %379 : vector<4x32xf32>
    %cst_239 = arith.constant 0.000000e+00 : f32
    %381 = vector.broadcast %cst_239 : f32 to vector<4x32xf32>
    %382 = arith.maximumf %380, %381 : vector<4x32xf32>
    %c0_240 = arith.constant 0 : index
    %c0_241 = arith.constant 0 : index
    %c0_242 = arith.constant 0 : index
    %383 = vector.load %arg5[%c0_240, %c0_241, %c0_242] : memref<4x1x4xbf16, #tpu.memory_space<vmem>>, vector<1x1x4xbf16>
    %384 = vector.shape_cast %383 : vector<1x1x4xbf16> to vector<1x4xbf16>
    %385 = arith.extf %384 : vector<1x4xbf16> to vector<1x4xf32>
    %cst_243 = arith.constant dense<0.000000e+00> : vector<1x32xf32>
    %386 = tpu.matmul %385, %382, %cst_243 {dimension_numbers = #tpu.dot_dimension_numbers<[1], [0], [0], [1], [0, 0, 1, 1], [], []>} : vector<1x4xf32>, vector<4x32xf32>, vector<1x32xf32> -> vector<1x32xf32>
    %c18 = arith.constant 18 : index
    %c0_244 = arith.constant 0 : index
    %c0_245 = arith.constant 0 : index
    %387 = vector.load %arg8[%c18, %c0_244, %c0_245] : memref<23x32x32xbf16, #tpu.memory_space<vmem>>, vector<1x32x32xbf16>
    %388 = vector.shape_cast %387 : vector<1x32x32xbf16> to vector<32x32xbf16>
    %389 = arith.truncf %386 : vector<1x32xf32> to vector<1x32xbf16>
    %cst_246 = arith.constant dense<0.000000e+00> : vector<1x32xf32>
    %390 = tpu.matmul %389, %388, %cst_246 {dimension_numbers = #tpu.dot_dimension_numbers<[1], [0], [0], [1], [0, 0, 1, 1], [], []>} : vector<1x32xbf16>, vector<32x32xbf16>, vector<1x32xf32> -> vector<1x32xf32>
    %c1_247 = arith.constant 1 : index
    %c0_248 = arith.constant 0 : index
    %c0_249 = arith.constant 0 : index
    %391 = vector.load %arg5[%c1_247, %c0_248, %c0_249] : memref<4x1x4xbf16, #tpu.memory_space<vmem>>, vector<1x1x4xbf16>
    %392 = vector.shape_cast %391 : vector<1x1x4xbf16> to vector<1x4xbf16>
    %393 = arith.extf %392 : vector<1x4xbf16> to vector<1x4xf32>
    %cst_250 = arith.constant dense<0.000000e+00> : vector<1x32xf32>
    %394 = tpu.matmul %393, %382, %cst_250 {dimension_numbers = #tpu.dot_dimension_numbers<[1], [0], [0], [1], [0, 0, 1, 1], [], []>} : vector<1x4xf32>, vector<4x32xf32>, vector<1x32xf32> -> vector<1x32xf32>
    %c19 = arith.constant 19 : index
    %c0_251 = arith.constant 0 : index
    %c0_252 = arith.constant 0 : index
    %395 = vector.load %arg8[%c19, %c0_251, %c0_252] : memref<23x32x32xbf16, #tpu.memory_space<vmem>>, vector<1x32x32xbf16>
    %396 = vector.shape_cast %395 : vector<1x32x32xbf16> to vector<32x32xbf16>
    %397 = arith.truncf %394 : vector<1x32xf32> to vector<1x32xbf16>
    %cst_253 = arith.constant dense<0.000000e+00> : vector<1x32xf32>
    %398 = tpu.matmul %397, %396, %cst_253 {dimension_numbers = #tpu.dot_dimension_numbers<[1], [0], [0], [1], [0, 0, 1, 1], [], []>} : vector<1x32xbf16>, vector<32x32xbf16>, vector<1x32xf32> -> vector<1x32xf32>
    %399 = arith.addf %390, %398 : vector<1x32xf32>
    %c2_254 = arith.constant 2 : index
    %c0_255 = arith.constant 0 : index
    %c0_256 = arith.constant 0 : index
    %400 = vector.load %arg5[%c2_254, %c0_255, %c0_256] : memref<4x1x4xbf16, #tpu.memory_space<vmem>>, vector<1x1x4xbf16>
    %401 = vector.shape_cast %400 : vector<1x1x4xbf16> to vector<1x4xbf16>
    %402 = arith.extf %401 : vector<1x4xbf16> to vector<1x4xf32>
    %cst_257 = arith.constant dense<0.000000e+00> : vector<1x32xf32>
    %403 = tpu.matmul %402, %382, %cst_257 {dimension_numbers = #tpu.dot_dimension_numbers<[1], [0], [0], [1], [0, 0, 1, 1], [], []>} : vector<1x4xf32>, vector<4x32xf32>, vector<1x32xf32> -> vector<1x32xf32>
    %c20 = arith.constant 20 : index
    %c0_258 = arith.constant 0 : index
    %c0_259 = arith.constant 0 : index
    %404 = vector.load %arg8[%c20, %c0_258, %c0_259] : memref<23x32x32xbf16, #tpu.memory_space<vmem>>, vector<1x32x32xbf16>
    %405 = vector.shape_cast %404 : vector<1x32x32xbf16> to vector<32x32xbf16>
    %406 = arith.truncf %403 : vector<1x32xf32> to vector<1x32xbf16>
    %cst_260 = arith.constant dense<0.000000e+00> : vector<1x32xf32>
    %407 = tpu.matmul %406, %405, %cst_260 {dimension_numbers = #tpu.dot_dimension_numbers<[1], [0], [0], [1], [0, 0, 1, 1], [], []>} : vector<1x32xbf16>, vector<32x32xbf16>, vector<1x32xf32> -> vector<1x32xf32>
    %408 = arith.addf %399, %407 : vector<1x32xf32>
    %c3_261 = arith.constant 3 : index
    %c0_262 = arith.constant 0 : index
    %c0_263 = arith.constant 0 : index
    %409 = vector.load %arg5[%c3_261, %c0_262, %c0_263] : memref<4x1x4xbf16, #tpu.memory_space<vmem>>, vector<1x1x4xbf16>
    %410 = vector.shape_cast %409 : vector<1x1x4xbf16> to vector<1x4xbf16>
    %411 = arith.extf %410 : vector<1x4xbf16> to vector<1x4xf32>
    %cst_264 = arith.constant dense<0.000000e+00> : vector<1x32xf32>
    %412 = tpu.matmul %411, %382, %cst_264 {dimension_numbers = #tpu.dot_dimension_numbers<[1], [0], [0], [1], [0, 0, 1, 1], [], []>} : vector<1x4xf32>, vector<4x32xf32>, vector<1x32xf32> -> vector<1x32xf32>
    %c21 = arith.constant 21 : index
    %c0_265 = arith.constant 0 : index
    %c0_266 = arith.constant 0 : index
    %413 = vector.load %arg8[%c21, %c0_265, %c0_266] : memref<23x32x32xbf16, #tpu.memory_space<vmem>>, vector<1x32x32xbf16>
    %414 = vector.shape_cast %413 : vector<1x32x32xbf16> to vector<32x32xbf16>
    %415 = arith.truncf %412 : vector<1x32xf32> to vector<1x32xbf16>
    %cst_267 = arith.constant dense<0.000000e+00> : vector<1x32xf32>
    %416 = tpu.matmul %415, %414, %cst_267 {dimension_numbers = #tpu.dot_dimension_numbers<[1], [0], [0], [1], [0, 0, 1, 1], [], []>} : vector<1x32xbf16>, vector<32x32xbf16>, vector<1x32xf32> -> vector<1x32xf32>
    %417 = arith.addf %408, %416 : vector<1x32xf32>
    %cst_268 = arith.constant dense<0.000000e+00> : vector<32xf32>
    %418 = vector.multi_reduction <add>, %417, %cst_268 [0] : vector<1x32xf32> to vector<32xf32>
    %419 = vector.shape_cast %418 : vector<32xf32> to vector<1x32xf32>
    %cst_269 = arith.constant 1.000000e+00 : f32
    %420 = vector.broadcast %cst_269 : f32 to vector<1x32xf32>
    %421 = arith.divf %419, %420 : vector<1x32xf32>
    %cst_270 = arith.constant dense<0.000000e+00> : vector<1x32xf32>
    %422 = tpu.matmul %421, %0, %cst_270 {dimension_numbers = #tpu.dot_dimension_numbers<[1], [0], [0], [1], [0, 0, 1, 1], [], []>} : vector<1x32xf32>, vector<32x32xf32>, vector<1x32xf32> -> vector<1x32xf32>
    %423 = arith.subf %417, %422 : vector<1x32xf32>
    %424 = arith.mulf %423, %423 : vector<1x32xf32>
    %cst_271 = arith.constant dense<0.000000e+00> : vector<32xf32>
    %425 = vector.multi_reduction <add>, %424, %cst_271 [0] : vector<1x32xf32> to vector<32xf32>
    %426 = vector.shape_cast %425 : vector<32xf32> to vector<1x32xf32>
    %cst_272 = arith.constant 1.000000e+00 : f32
    %427 = vector.broadcast %cst_272 : f32 to vector<1x32xf32>
    %428 = arith.divf %426, %427 : vector<1x32xf32>
    %cst_273 = arith.constant dense<0.000000e+00> : vector<1x32xf32>
    %429 = tpu.matmul %428, %0, %cst_273 {dimension_numbers = #tpu.dot_dimension_numbers<[1], [0], [0], [1], [0, 0, 1, 1], [], []>} : vector<1x32xf32>, vector<32x32xf32>, vector<1x32xf32> -> vector<1x32xf32>
    %cst_274 = arith.constant 9.99999974E-6 : f32
    %430 = vector.broadcast %cst_274 : f32 to vector<1x32xf32>
    %431 = arith.addf %429, %430 : vector<1x32xf32>
    %432 = math.rsqrt %431 : vector<1x32xf32>
    %433 = arith.mulf %423, %432 : vector<1x32xf32>
    %c0_275 = arith.constant 0 : index
    %c3_276 = arith.constant 3 : index
    %c0_277 = arith.constant 0 : index
    %c0_278 = arith.constant 0 : index
    %434 = vector.load %arg9[%c0_275, %c3_276, %c0_277, %c0_278] : memref<2x5x1x32xf32, #tpu.memory_space<vmem>>, vector<1x1x1x32xf32>
    %435 = vector.shape_cast %434 : vector<1x1x1x32xf32> to vector<1x32xf32>
    %436 = arith.mulf %433, %435 : vector<1x32xf32>
    %c1_279 = arith.constant 1 : index
    %c3_280 = arith.constant 3 : index
    %c0_281 = arith.constant 0 : index
    %c0_282 = arith.constant 0 : index
    %437 = vector.load %arg9[%c1_279, %c3_280, %c0_281, %c0_282] : memref<2x5x1x32xf32, #tpu.memory_space<vmem>>, vector<1x1x1x32xf32>
    %438 = vector.shape_cast %437 : vector<1x1x1x32xf32> to vector<1x32xf32>
    %439 = arith.addf %436, %438 : vector<1x32xf32>
    %cst_283 = arith.constant 0.000000e+00 : f32
    %440 = vector.broadcast %cst_283 : f32 to vector<1x32xf32>
    %441 = arith.maximumf %439, %440 : vector<1x32xf32>
    %c22 = arith.constant 22 : index
    %c0_284 = arith.constant 0 : index
    %c0_285 = arith.constant 0 : index
    %442 = vector.load %arg8[%c22, %c0_284, %c0_285] : memref<23x32x32xbf16, #tpu.memory_space<vmem>>, vector<1x32x32xbf16>
    %443 = vector.shape_cast %442 : vector<1x32x32xbf16> to vector<32x32xbf16>
    %444 = arith.truncf %441 : vector<1x32xf32> to vector<1x32xbf16>
    %cst_286 = arith.constant dense<0.000000e+00> : vector<1x32xf32>
    %445 = tpu.matmul %444, %443, %cst_286 {dimension_numbers = #tpu.dot_dimension_numbers<[1], [0], [0], [1], [0, 0, 1, 1], [], []>} : vector<1x32xbf16>, vector<32x32xbf16>, vector<1x32xf32> -> vector<1x32xf32>
    %cst_287 = arith.constant dense<0.000000e+00> : vector<32xf32>
    %446 = vector.multi_reduction <add>, %445, %cst_287 [0] : vector<1x32xf32> to vector<32xf32>
    %447 = vector.shape_cast %446 : vector<32xf32> to vector<1x32xf32>
    %cst_288 = arith.constant 1.000000e+00 : f32
    %448 = vector.broadcast %cst_288 : f32 to vector<1x32xf32>
    %449 = arith.divf %447, %448 : vector<1x32xf32>
    %cst_289 = arith.constant dense<0.000000e+00> : vector<1x32xf32>
    %450 = tpu.matmul %449, %0, %cst_289 {dimension_numbers = #tpu.dot_dimension_numbers<[1], [0], [0], [1], [0, 0, 1, 1], [], []>} : vector<1x32xf32>, vector<32x32xf32>, vector<1x32xf32> -> vector<1x32xf32>
    %451 = arith.subf %445, %450 : vector<1x32xf32>
    %452 = arith.mulf %451, %451 : vector<1x32xf32>
    %cst_290 = arith.constant dense<0.000000e+00> : vector<32xf32>
    %453 = vector.multi_reduction <add>, %452, %cst_290 [0] : vector<1x32xf32> to vector<32xf32>
    %454 = vector.shape_cast %453 : vector<32xf32> to vector<1x32xf32>
    %cst_291 = arith.constant 1.000000e+00 : f32
    %455 = vector.broadcast %cst_291 : f32 to vector<1x32xf32>
    %456 = arith.divf %454, %455 : vector<1x32xf32>
    %cst_292 = arith.constant dense<0.000000e+00> : vector<1x32xf32>
    %457 = tpu.matmul %456, %0, %cst_292 {dimension_numbers = #tpu.dot_dimension_numbers<[1], [0], [0], [1], [0, 0, 1, 1], [], []>} : vector<1x32xf32>, vector<32x32xf32>, vector<1x32xf32> -> vector<1x32xf32>
    %cst_293 = arith.constant 9.99999974E-6 : f32
    %458 = vector.broadcast %cst_293 : f32 to vector<1x32xf32>
    %459 = arith.addf %457, %458 : vector<1x32xf32>
    %460 = math.rsqrt %459 : vector<1x32xf32>
    %461 = arith.mulf %451, %460 : vector<1x32xf32>
    %c0_294 = arith.constant 0 : index
    %c4_295 = arith.constant 4 : index
    %c0_296 = arith.constant 0 : index
    %c0_297 = arith.constant 0 : index
    %462 = vector.load %arg9[%c0_294, %c4_295, %c0_296, %c0_297] : memref<2x5x1x32xf32, #tpu.memory_space<vmem>>, vector<1x1x1x32xf32>
    %463 = vector.shape_cast %462 : vector<1x1x1x32xf32> to vector<1x32xf32>
    %464 = arith.mulf %461, %463 : vector<1x32xf32>
    %c1_298 = arith.constant 1 : index
    %c4_299 = arith.constant 4 : index
    %c0_300 = arith.constant 0 : index
    %c0_301 = arith.constant 0 : index
    %465 = vector.load %arg9[%c1_298, %c4_299, %c0_300, %c0_301] : memref<2x5x1x32xf32, #tpu.memory_space<vmem>>, vector<1x1x1x32xf32>
    %466 = vector.shape_cast %465 : vector<1x1x1x32xf32> to vector<1x32xf32>
    %467 = arith.addf %464, %466 : vector<1x32xf32>
    %cst_302 = arith.constant 0.000000e+00 : f32
    %468 = vector.broadcast %cst_302 : f32 to vector<1x32xf32>
    %469 = arith.maximumf %467, %468 : vector<1x32xf32>
    %cst_303 = arith.constant dense<0.000000e+00> : vector<32xf32>
    %470 = vector.multi_reduction <add>, %469, %cst_303 [0] : vector<1x32xf32> to vector<32xf32>
    %471 = vector.shape_cast %470 : vector<32xf32> to vector<1x32xf32>
    %cst_304 = arith.constant 1.000000e+00 : f32
    %472 = vector.broadcast %cst_304 : f32 to vector<1x32xf32>
    %473 = arith.divf %471, %472 : vector<1x32xf32>
    %c0_305 = arith.constant 0 : index
    %c0_306 = arith.constant 0 : index
    %474 = vector.load %arg1[%c0_305, %c0_306] : memref<1x136xf32, #tpu.memory_space<vmem>>, vector<1x64xf32>
    %c0_307 = arith.constant 0 : index
    %c64 = arith.constant 64 : index
    %475 = vector.load %arg1[%c0_307, %c64] : memref<1x136xf32, #tpu.memory_space<vmem>>, vector<1x64xf32>
    %c0_308 = arith.constant 0 : index
    %c128 = arith.constant 128 : index
    %476 = vector.load %arg1[%c0_308, %c128] : memref<1x136xf32, #tpu.memory_space<vmem>>, vector<1x8xf32>
    %477 = arith.truncf %473 : vector<1x32xf32> to vector<1x32xbf16>
    %c0_309 = arith.constant 0 : index
    %c0_310 = arith.constant 0 : index
    %478 = vector.load %arg11[%c0_309, %c0_310] : memref<96x256xbf16, #tpu.memory_space<vmem>>, vector<32x256xbf16>
    %cst_311 = arith.constant dense<0.000000e+00> : vector<1x256xf32>
    %479 = tpu.matmul %477, %478, %cst_311 {dimension_numbers = #tpu.dot_dimension_numbers<[1], [0], [0], [1], [0, 0, 1, 1], [], []>} : vector<1x32xbf16>, vector<32x256xbf16>, vector<1x256xf32> -> vector<1x256xf32>
    %480 = arith.truncf %474 : vector<1x64xf32> to vector<1x64xbf16>
    %c32 = arith.constant 32 : index
    %c0_312 = arith.constant 0 : index
    %481 = vector.load %arg11[%c32, %c0_312] : memref<96x256xbf16, #tpu.memory_space<vmem>>, vector<64x256xbf16>
    %cst_313 = arith.constant dense<0.000000e+00> : vector<1x256xf32>
    %482 = tpu.matmul %480, %481, %cst_313 {dimension_numbers = #tpu.dot_dimension_numbers<[1], [0], [0], [1], [0, 0, 1, 1], [], []>} : vector<1x64xbf16>, vector<64x256xbf16>, vector<1x256xf32> -> vector<1x256xf32>
    %483 = arith.addf %479, %482 : vector<1x256xf32>
    %c0_314 = arith.constant 0 : index
    %c0_315 = arith.constant 0 : index
    %c0_316 = arith.constant 0 : index
    %484 = vector.load %arg15[%c0_314, %c0_315, %c0_316] : memref<4x1x256xf32, #tpu.memory_space<vmem>>, vector<1x1x256xf32>
    %485 = vector.shape_cast %484 : vector<1x1x256xf32> to vector<1x256xf32>
    %486 = arith.addf %483, %485 : vector<1x256xf32>
    %487 = vector.extract_strided_slice %486 {offsets = [0, 0], sizes = [1, 64], strides = [1, 1]} : vector<1x256xf32> to vector<1x64xf32>
    %488 = arith.negf %487 : vector<1x64xf32>
    %489 = math.exp %488 : vector<1x64xf32>
    %cst_317 = arith.constant 1.000000e+00 : f32
    %490 = vector.broadcast %cst_317 : f32 to vector<1x64xf32>
    %491 = arith.addf %490, %489 : vector<1x64xf32>
    %492 = arith.divf %490, %491 : vector<1x64xf32>
    %493 = vector.extract_strided_slice %486 {offsets = [0, 64], sizes = [1, 64], strides = [1, 1]} : vector<1x256xf32> to vector<1x64xf32>
    %494 = arith.negf %493 : vector<1x64xf32>
    %495 = math.exp %494 : vector<1x64xf32>
    %cst_318 = arith.constant 1.000000e+00 : f32
    %496 = vector.broadcast %cst_318 : f32 to vector<1x64xf32>
    %497 = arith.addf %496, %495 : vector<1x64xf32>
    %498 = arith.divf %496, %497 : vector<1x64xf32>
    %499 = vector.extract_strided_slice %486 {offsets = [0, 128], sizes = [1, 64], strides = [1, 1]} : vector<1x256xf32> to vector<1x64xf32>
    %500 = math.tanh %499 : vector<1x64xf32>
    %501 = vector.extract_strided_slice %486 {offsets = [0, 192], sizes = [1, 64], strides = [1, 1]} : vector<1x256xf32> to vector<1x64xf32>
    %502 = arith.negf %501 : vector<1x64xf32>
    %503 = math.exp %502 : vector<1x64xf32>
    %cst_319 = arith.constant 1.000000e+00 : f32
    %504 = vector.broadcast %cst_319 : f32 to vector<1x64xf32>
    %505 = arith.addf %504, %503 : vector<1x64xf32>
    %506 = arith.divf %504, %505 : vector<1x64xf32>
    %507 = arith.mulf %498, %475 : vector<1x64xf32>
    %508 = arith.mulf %492, %500 : vector<1x64xf32>
    %509 = arith.addf %507, %508 : vector<1x64xf32>
    %510 = math.tanh %509 : vector<1x64xf32>
    %511 = arith.mulf %506, %510 : vector<1x64xf32>
    %512 = arith.truncf %511 : vector<1x64xf32> to vector<1x64xbf16>
    %c0_320 = arith.constant 0 : index
    %c0_321 = arith.constant 0 : index
    %513 = vector.load %arg12[%c0_320, %c0_321] : memref<72x128xbf16, #tpu.memory_space<vmem>>, vector<64x128xbf16>
    %cst_322 = arith.constant dense<0.000000e+00> : vector<1x128xf32>
    %514 = tpu.matmul %512, %513, %cst_322 {dimension_numbers = #tpu.dot_dimension_numbers<[1], [0], [0], [1], [0, 0, 1, 1], [], []>} : vector<1x64xbf16>, vector<64x128xbf16>, vector<1x128xf32> -> vector<1x128xf32>
    %515 = arith.truncf %476 : vector<1x8xf32> to vector<1x8xbf16>
    %c64_323 = arith.constant 64 : index
    %c0_324 = arith.constant 0 : index
    %516 = vector.load %arg12[%c64_323, %c0_324] : memref<72x128xbf16, #tpu.memory_space<vmem>>, vector<8x128xbf16>
    %cst_325 = arith.constant dense<0.000000e+00> : vector<1x128xf32>
    %517 = tpu.matmul %515, %516, %cst_325 {dimension_numbers = #tpu.dot_dimension_numbers<[1], [0], [0], [1], [0, 0, 1, 1], [], []>} : vector<1x8xbf16>, vector<8x128xbf16>, vector<1x128xf32> -> vector<1x128xf32>
    %518 = arith.addf %514, %517 : vector<1x128xf32>
    %c1_326 = arith.constant 1 : index
    %c0_327 = arith.constant 0 : index
    %c0_328 = arith.constant 0 : index
    %519 = vector.load %arg15[%c1_326, %c0_327, %c0_328] : memref<4x1x256xf32, #tpu.memory_space<vmem>>, vector<1x1x256xf32>
    %520 = vector.shape_cast %519 : vector<1x1x256xf32> to vector<1x256xf32>
    %521 = vector.extract_strided_slice %520 {offsets = [0, 0], sizes = [1, 128], strides = [1, 1]} : vector<1x256xf32> to vector<1x128xf32>
    %522 = arith.addf %518, %521 : vector<1x128xf32>
    %cst_329 = arith.constant 0.000000e+00 : f32
    %523 = vector.broadcast %cst_329 : f32 to vector<1x128xf32>
    %524 = arith.maximumf %522, %523 : vector<1x128xf32>
    %525 = arith.truncf %524 : vector<1x128xf32> to vector<1x128xbf16>
    %c0_330 = arith.constant 0 : index
    %c0_331 = arith.constant 0 : index
    %526 = vector.load %arg13[%c0_330, %c0_331] : memref<128x256xbf16, #tpu.memory_space<vmem>>, vector<128x256xbf16>
    %cst_332 = arith.constant dense<0.000000e+00> : vector<1x256xf32>
    %527 = tpu.matmul %525, %526, %cst_332 {dimension_numbers = #tpu.dot_dimension_numbers<[1], [0], [0], [1], [0, 0, 1, 1], [], []>} : vector<1x128xbf16>, vector<128x256xbf16>, vector<1x256xf32> -> vector<1x256xf32>
    %c2_333 = arith.constant 2 : index
    %c0_334 = arith.constant 0 : index
    %c0_335 = arith.constant 0 : index
    %528 = vector.load %arg15[%c2_333, %c0_334, %c0_335] : memref<4x1x256xf32, #tpu.memory_space<vmem>>, vector<1x1x256xf32>
    %529 = vector.shape_cast %528 : vector<1x1x256xf32> to vector<1x256xf32>
    %530 = arith.addf %527, %529 : vector<1x256xf32>
    %cst_336 = arith.constant 0.000000e+00 : f32
    %531 = vector.broadcast %cst_336 : f32 to vector<1x256xf32>
    %532 = arith.maximumf %530, %531 : vector<1x256xf32>
    %533 = arith.truncf %532 : vector<1x256xf32> to vector<1x256xbf16>
    %c0_337 = arith.constant 0 : index
    %c0_338 = arith.constant 0 : index
    %534 = vector.load %arg14[%c0_337, %c0_338] : memref<256x12xbf16, #tpu.memory_space<vmem>>, vector<256x12xbf16>
    %cst_339 = arith.constant dense<0.000000e+00> : vector<1x12xf32>
    %535 = tpu.matmul %533, %534, %cst_339 {dimension_numbers = #tpu.dot_dimension_numbers<[1], [0], [0], [1], [0, 0, 1, 1], [], []>} : vector<1x256xbf16>, vector<256x12xbf16>, vector<1x12xf32> -> vector<1x12xf32>
    %c3_340 = arith.constant 3 : index
    %c0_341 = arith.constant 0 : index
    %c0_342 = arith.constant 0 : index
    %536 = vector.load %arg15[%c3_340, %c0_341, %c0_342] : memref<4x1x256xf32, #tpu.memory_space<vmem>>, vector<1x1x256xf32>
    %537 = vector.shape_cast %536 : vector<1x1x256xf32> to vector<1x256xf32>
    %538 = vector.extract_strided_slice %537 {offsets = [0, 0], sizes = [1, 12], strides = [1, 1]} : vector<1x256xf32> to vector<1x12xf32>
    %539 = arith.addf %535, %538 : vector<1x12xf32>
    %540 = math.tanh %539 : vector<1x12xf32>
    %cst_343 = arith.constant 1.000000e+00 : f32
    %541 = vector.broadcast %cst_343 : f32 to vector<1x12xf32>
    %542 = arith.mulf %541, %540 : vector<1x12xf32>
    %c0_344 = arith.constant 0 : index
    %c0_345 = arith.constant 0 : index
    %543 = vector.load %arg16[%c0_344, %c0_345] : memref<1x12xf32, #tpu.memory_space<vmem>>, vector<1x12xf32>
    tpu.vector_store %arg16[%c0_344, %c0_345], %542 {strides = array<i32>} : memref<1x12xf32, #tpu.memory_space<vmem>>, vector<1x12xf32>,
    %c0_346 = arith.constant 0 : index
    %c0_347 = arith.constant 0 : index
    %544 = vector.load %arg17[%c0_346, %c0_347] : memref<1x128xf32, #tpu.memory_space<vmem>>, vector<1x64xf32>
    tpu.vector_store %arg17[%c0_346, %c0_347], %511 {strides = array<i32>} : memref<1x128xf32, #tpu.memory_space<vmem>>, vector<1x64xf32>,
    %c0_348 = arith.constant 0 : index
    %c64_349 = arith.constant 64 : index
    %545 = vector.load %arg17[%c0_348, %c64_349] : memref<1x128xf32, #tpu.memory_space<vmem>>, vector<1x64xf32>
    tpu.vector_store %arg17[%c0_348, %c64_349], %509 {strides = array<i32>} : memref<1x128xf32, #tpu.memory_space<vmem>>, vector<1x64xf32>,
    return
  }
}

</mosaic_0001>

<llo_original>
// kernel: actor_forward.1
$region0: #{actor_forward.1}
  #allocation0 [shape = 'u32[]', space=smem, size = 0x4, offset = 0x4, fixed_abs, tag = 'smem constant byte address 0x4 - core index']
  #allocation1 [shape = 'u32[72,128]{1,0:T(1,128)}', space=vmem, size = 0x9000, scoped, tag = 'internal scratch']
  #allocation2 [shape = 'bf16[1,1,1]{2,1,0:T(2,128)S(1)}', space=vmem, size = 0x200, scoped, tag = 'scoped memory for actor_forward.1']
  %s0 = inlined_call_operand.vmem [shape: f32[256,2], index: 0, kind: input, shape index: {}]
  %s1 = inlined_call_operand.vmem [shape: f32[1,136], index: 1, kind: input, shape index: {}]
  %s2 = inlined_call_operand.hbm [shape: bf16[9,64,256], index: 2, kind: input, shape index: {}]
  %s3 = inlined_call_operand.vmem [shape: bf16[9,16,64], index: 3, kind: input, shape index: {}]
  %s4 = inlined_call_operand.hbm [shape: bf16[9,4,16], index: 4, kind: input, shape index: {}]
  %s5 = inlined_call_operand.vmem [shape: bf16[4,1,4], index: 5, kind: input, shape index: {}]
  %s6 = inlined_call_operand.<no memory space> [shape: bf16[1,1,1], index: 6, kind: input, shape index: {}]
  %s7 = inlined_call_operand.hbm [shape: f32[9,2,32], index: 7, kind: input, shape index: {}]
  %s8 = inlined_call_operand.vmem [shape: bf16[23,32,32], index: 8, kind: input, shape index: {}]
  %s9 = inlined_call_operand.hbm [shape: f32[2,5,1,32], index: 9, kind: input, shape index: {}]
  %s10 = inlined_call_operand.hbm [shape: f32[32,32], index: 10, kind: input, shape index: {}]
  %s11 = inlined_call_operand.hbm [shape: bf16[96,256], index: 11, kind: input, shape index: {}]
  %s12 = inlined_call_operand.hbm [shape: bf16[72,128], index: 12, kind: input, shape index: {}]
  %s13 = inlined_call_operand.hbm [shape: bf16[128,256], index: 13, kind: input, shape index: {}]
  %s14 = inlined_call_operand.vmem [shape: bf16[256,12], index: 14, kind: input, shape index: {}]
  %s15 = inlined_call_operand.hbm [shape: f32[4,1,256], index: 15, kind: input, shape index: {}]
  %s16 = inlined_call_operand.vmem [shape: f32[1,12], index: 16, kind: output, shape index: {0}]
  %s17 = inlined_call_operand.vmem [shape: f32[1,128], index: 17, kind: output, shape index: {1}]
  %18 = xla_tuple %s16, %s17
  %s19 = sld [smem:[#allocation0]]
  $region118: #{actor_forward.1} parent=0
    _
  %s21 = ssub.s32 1, %s19
  %s22 = scalar_select 0, %s21, %s19
  %v23 = vstv %s6
  %24 = vst [vmem:[#allocation2] sm:$0x1] %v23
  $region1: #{actor_forward.1} parent=0
    #allocation3 [shape = 'u8[294912]{0}', space=vmem, size = 0x48000, scoped, tag = 'input window, operand 2, single buffered']
    #allocation4 [shape = 's32[1]{0}', space=sflag, size = 0x4, scoped, tag = 'scoped memory for actor_forward.1']
    #allocation5 [shape = 'u8[9216]{0}', space=vmem, size = 0x2400, scoped, tag = 'input window, operand 4, single buffered']
    #allocation6 [shape = 's32[1]{0}', space=sflag, size = 0x4, scoped, tag = 'scoped memory for actor_forward.1']
    #allocation7 [shape = 'u8[9216]{0}', space=vmem, size = 0x2400, scoped, tag = 'input window, operand 7, single buffered']
    #allocation8 [shape = 'u8[5120]{0}', space=vmem, size = 0x1400, scoped, tag = 'input window, operand 9, single buffered']
    #allocation9 [shape = 's32[1]{0}', space=sflag, size = 0x4, scoped, tag = 'scoped memory for actor_forward.1']
    #allocation10 [shape = 'u8[16384]{0}', space=vmem, size = 0x4000, scoped, tag = 'input window, operand 10, single buffered']
    #allocation11 [shape = 'u8[49152]{0}', space=vmem, size = 0xc000, scoped, tag = 'input window, operand 11, single buffered']
    #allocation12 [shape = 's32[1]{0}', space=sflag, size = 0x4, scoped, tag = 'scoped memory for actor_forward.1']
    #allocation13 [shape = 'u8[18432]{0}', space=vmem, size = 0x4800, scoped, tag = 'input window, operand 12, single buffered']
    #allocation14 [shape = 'u8[65536]{0}', space=vmem, size = 0x10000, scoped, tag = 'input window, operand 13, single buffered']
    #allocation15 [shape = 's32[1]{0}', space=sflag, size = 0x4, scoped, tag = 'scoped memory for actor_forward.1']
    #allocation16 [shape = 'u8[4096]{0}', space=vmem, size = 0x1000, scoped, tag = 'input window, operand 15, single buffered']
    %25 = vsyncpa [#allocation4], 0
    %26 = vsyncpa [#allocation6], 0
    %27 = vsyncpa [#allocation9], 0
    %28 = vsyncpa [#allocation12], 0
    %29 = vsyncpa [#allocation15], 0
    // Predicated region
    $region2: #{actor_forward.1} parent=1 // pred_check
      _
    $region3: #{actor_forward.1} parent=1 // pred_check_branch
      %31 = sbr.rel (0) target = $region5
    $region4: #{actor_forward.1} parent=1 // pred_region
      _
    $region5: #{actor_forward.1} parent=1 // pred_fallthru
      _
    // Predicated region
    $region6: #{actor_forward.1} parent=1 // pred_check
      _
    $region7: #{actor_forward.1} parent=1 // pred_check_branch
      %33 = sbr.rel (0) target = $region9
    $region8: #{actor_forward.1} parent=1 // pred_region
      _
    $region9: #{actor_forward.1} parent=1 // pred_fallthru
      _
    // Predicated region
    $region10: #{actor_forward.1} parent=1 // pred_check
      _
    $region11: #{actor_forward.1} parent=1 // pred_check_branch
      %35 = sbr.rel (0) target = $region13
    $region12: #{actor_forward.1} parent=1 // pred_region
      %37 = vsyncadd [#allocation4], 0
      %s38 = sshll.u32 %s2, 4
      %s39 = int_to_ptr.hbm [resolvable:$true] %s38
      %s40 = sshll.u32 [#allocation3], 4
      %s41 = int_to_ptr.vmem [resolvable:$true] %s40
      %46 = dma.hbm_to_vmem [thread:$0]  %s39, 9216, %s41, [#allocation4], 128, 128, 8
    $region13: #{actor_forward.1} parent=1 // pred_fallthru
      _
    // Predicated region
    $region14: #{actor_forward.1} parent=1 // pred_check
      _
    $region15: #{actor_forward.1} parent=1 // pred_check_branch
      %48 = sbr.rel (0) target = $region17
    $region16: #{actor_forward.1} parent=1 // pred_region
      _
    $region17: #{actor_forward.1} parent=1 // pred_fallthru
      _
    // Predicated region
    $region18: #{actor_forward.1} parent=1 // pred_check
      _
    $region19: #{actor_forward.1} parent=1 // pred_check_branch
      %50 = sbr.rel (0) target = $region21
    $region20: #{actor_forward.1} parent=1 // pred_region
      %52 = vsyncadd [#allocation6], 0
      %s53 = sshll.u32 %s4, 4
      %s54 = int_to_ptr.hbm [resolvable:$true] %s53
      %s55 = sshll.u32 [#allocation5], 4
      %s56 = int_to_ptr.vmem [resolvable:$true] %s55
      %61 = dma.hbm_to_vmem [thread:$0]  %s54, 288, %s56, [#allocation6], 32, 32, 2
    $region21: #{actor_forward.1} parent=1 // pred_fallthru
      _
    // Predicated region
    $region22: #{actor_forward.1} parent=1 // pred_check
      _
    $region23: #{actor_forward.1} parent=1 // pred_check_branch
      %63 = sbr.rel (0) target = $region25
    $region24: #{actor_forward.1} parent=1 // pred_region
      _
    $region25: #{actor_forward.1} parent=1 // pred_fallthru
      _
    // Predicated region
    $region26: #{actor_forward.1} parent=1 // pred_check
      _
    $region27: #{actor_forward.1} parent=1 // pred_check_branch
      %65 = sbr.rel (0) target = $region29
    $region28: #{actor_forward.1} parent=1 // pred_region
      _
    $region29: #{actor_forward.1} parent=1 // pred_fallthru
      _
    // Predicated region
    $region30: #{actor_forward.1} parent=1 // pred_check
      _
    $region31: #{actor_forward.1} parent=1 // pred_check_branch
      %67 = sbr.rel (0) target = $region33
    $region32: #{actor_forward.1} parent=1 // pred_region
      %69 = vsyncadd [#allocation6], 0
      %s70 = sshll.u32 %s7, 4
      %s71 = int_to_ptr.hbm [resolvable:$true] %s70
      %s72 = sshll.u32 [#allocation7], 4
      %s73 = int_to_ptr.vmem [resolvable:$true] %s72
      %78 = dma.hbm_to_vmem [thread:$0]  %s71, 288, %s73, [#allocation6], 32, 32, 2
    $region33: #{actor_forward.1} parent=1 // pred_fallthru
      _
    // Predicated region
    $region34: #{actor_forward.1} parent=1 // pred_check
      _
    $region35: #{actor_forward.1} parent=1 // pred_check_branch
      %80 = sbr.rel (0) target = $region37
    $region36: #{actor_forward.1} parent=1 // pred_region
      _
    $region37: #{actor_forward.1} parent=1 // pred_fallthru
      _
    // Predicated region
    $region38: #{actor_forward.1} parent=1 // pred_check
      _
    $region39: #{actor_forward.1} parent=1 // pred_check_branch
      %82 = sbr.rel (0) target = $region41
    $region40: #{actor_forward.1} parent=1 // pred_region
      %84 = vsyncadd [#allocation9], 0
      %s85 = sshll.u32 %s9, 4
      %s86 = int_to_ptr.hbm [resolvable:$true] %s85
      %s87 = sshll.u32 [#allocation8], 4
      %s88 = int_to_ptr.vmem [resolvable:$true] %s87
      %93 = dma.hbm_to_vmem [thread:$0]  %s86, 160, %s88, [#allocation9], 16, 16, 1
    $region41: #{actor_forward.1} parent=1 // pred_fallthru
      _
    // Predicated region
    $region42: #{actor_forward.1} parent=1 // pred_check
      _
    $region43: #{actor_forward.1} parent=1 // pred_check_branch
      %95 = sbr.rel (0) target = $region45
    $region44: #{actor_forward.1} parent=1 // pred_region
      %97 = vsyncadd [#allocation9], 0
      %s98 = sshll.u32 %s10, 4
      %s99 = int_to_ptr.hbm [resolvable:$true] %s98
      %s100 = sshll.u32 [#allocation10], 4
      %s101 = int_to_ptr.vmem [resolvable:$true] %s100
      %106 = dma.hbm_to_vmem [thread:$0]  %s99, 512, %s101, [#allocation9], 128, 128, 8
    $region45: #{actor_forward.1} parent=1 // pred_fallthru
      _
    // Predicated region
    $region46: #{actor_forward.1} parent=1 // pred_check
      _
    $region47: #{actor_forward.1} parent=1 // pred_check_branch
      %108 = sbr.rel (0) target = $region49
    $region48: #{actor_forward.1} parent=1 // pred_region
      %110 = vsyncadd [#allocation12], 0
      %s111 = sshll.u32 %s11, 4
      %s112 = int_to_ptr.hbm [resolvable:$true] %s111
      %s113 = sshll.u32 [#allocation11], 4
      %s114 = int_to_ptr.vmem [resolvable:$true] %s113
      %119 = dma.hbm_to_vmem [thread:$0]  %s112, 1536, %s114, [#allocation12], 128, 128, 8
    $region49: #{actor_forward.1} parent=1 // pred_fallthru
      _
    // Predicated region
    $region50: #{actor_forward.1} parent=1 // pred_check
      _
    $region51: #{actor_forward.1} parent=1 // pred_check_branch
      %121 = sbr.rel (0) target = $region53
    $region52: #{actor_forward.1} parent=1 // pred_region
      %123 = vsyncadd [#allocation12], 0
      %s124 = sshll.u32 %s12, 4
      %s125 = int_to_ptr.hbm [resolvable:$true] %s124
      %s126 = sshll.u32 [#allocation13], 4
      %s127 = int_to_ptr.vmem [resolvable:$true] %s126
      %132 = dma.hbm_to_vmem [thread:$0]  %s125, 576, %s127, [#allocation12], 64, 64, 4
    $region53: #{actor_forward.1} parent=1 // pred_fallthru
      _
    // Predicated region
    $region54: #{actor_forward.1} parent=1 // pred_check
      _
    $region55: #{actor_forward.1} parent=1 // pred_check_branch
      %134 = sbr.rel (0) target = $region57
    $region56: #{actor_forward.1} parent=1 // pred_region
      %136 = vsyncadd [#allocation15], 0
      %s137 = sshll.u32 %s13, 4
      %s138 = int_to_ptr.hbm [resolvable:$true] %s137
      %s139 = sshll.u32 [#allocation14], 4
      %s140 = int_to_ptr.vmem [resolvable:$true] %s139
      %145 = dma.hbm_to_vmem [thread:$0]  %s138, 2048, %s140, [#allocation15], 128, 128, 8
    $region57: #{actor_forward.1} parent=1 // pred_fallthru
      _
    // Predicated region
    $region58: #{actor_forward.1} parent=1 // pred_check
      _
    $region59: #{actor_forward.1} parent=1 // pred_check_branch
      %147 = sbr.rel (0) target = $region61
    $region60: #{actor_forward.1} parent=1 // pred_region
      _
    $region61: #{actor_forward.1} parent=1 // pred_fallthru
      _
    // Predicated region
    $region62: #{actor_forward.1} parent=1 // pred_check
      _
    $region63: #{actor_forward.1} parent=1 // pred_check_branch
      %149 = sbr.rel (0) target = $region65
    $region64: #{actor_forward.1} parent=1 // pred_region
      %151 = vsyncadd [#allocation15], 0
      %s152 = sshll.u32 %s15, 4
      %s153 = int_to_ptr.hbm [resolvable:$true] %s152
      %s154 = sshll.u32 [#allocation16], 4
      %s155 = int_to_ptr.vmem [resolvable:$true] %s154
      %160 = dma.hbm_to_vmem [thread:$0]  %s153, 128, %s155, [#allocation15], 32, 32, 2
    $region65: #{actor_forward.1} parent=1 // pred_fallthru
      _
    // Predicated region
    $region66: #{actor_forward.1} parent=1 // pred_check
      _
    $region67: #{actor_forward.1} parent=1 // pred_check_branch
      %162 = sbr.rel (0) target = $region69
    $region68: #{actor_forward.1} parent=1 // pred_region
      %164 = dma.done [#allocation4], 9216
    $region69: #{actor_forward.1} parent=1 // pred_fallthru
      _
    // Predicated region
    $region70: #{actor_forward.1} parent=1 // pred_check
      _
    $region71: #{actor_forward.1} parent=1 // pred_check_branch
      %166 = sbr.rel (0) target = $region73
    $region72: #{actor_forward.1} parent=1 // pred_region
      %168 = dma.done [#allocation6], 288
    $region73: #{actor_forward.1} parent=1 // pred_fallthru
      _
    // Predicated region
    $region74: #{actor_forward.1} parent=1 // pred_check
      _
    $region75: #{actor_forward.1} parent=1 // pred_check_branch
      %170 = sbr.rel (0) target = $region77
    $region76: #{actor_forward.1} parent=1 // pred_region
      %172 = dma.done [#allocation6], 288
    $region77: #{actor_forward.1} parent=1 // pred_fallthru
      _
    // Predicated region
    $region78: #{actor_forward.1} parent=1 // pred_check
      _
    $region79: #{actor_forward.1} parent=1 // pred_check_branch
      %174 = sbr.rel (0) target = $region81
    $region80: #{actor_forward.1} parent=1 // pred_region
      %176 = dma.done [#allocation9], 160
    $region81: #{actor_forward.1} parent=1 // pred_fallthru
      _
    // Predicated region
    $region82: #{actor_forward.1} parent=1 // pred_check
      _
    $region83: #{actor_forward.1} parent=1 // pred_check_branch
      %178 = sbr.rel (0) target = $region85
    $region84: #{actor_forward.1} parent=1 // pred_region
      %180 = dma.done [#allocation9], 512
    $region85: #{actor_forward.1} parent=1 // pred_fallthru
      _
    // Predicated region
    $region86: #{actor_forward.1} parent=1 // pred_check
      _
    $region87: #{actor_forward.1} parent=1 // pred_check_branch
      %182 = sbr.rel (0) target = $region89
    $region88: #{actor_forward.1} parent=1 // pred_region
      %184 = dma.done [#allocation12], 1536
    $region89: #{actor_forward.1} parent=1 // pred_fallthru
      _
    // Predicated region
    $region90: #{actor_forward.1} parent=1 // pred_check
      _
    $region91: #{actor_forward.1} parent=1 // pred_check_branch
      %186 = sbr.rel (0) target = $region93
    $region92: #{actor_forward.1} parent=1 // pred_region
      %188 = dma.done [#allocation12], 576
    $region93: #{actor_forward.1} parent=1 // pred_fallthru
      _
    // Predicated region
    $region94: #{actor_forward.1} parent=1 // pred_check
      _
    $region95: #{actor_forward.1} parent=1 // pred_check_branch
      %190 = sbr.rel (0) target = $region97
    $region96: #{actor_forward.1} parent=1 // pred_region
      %192 = dma.done [#allocation15], 2048
    $region97: #{actor_forward.1} parent=1 // pred_fallthru
      _
    // Predicated region
    $region98: #{actor_forward.1} parent=1 // pred_check
      _
    $region99: #{actor_forward.1} parent=1 // pred_check_branch
      %194 = sbr.rel (0) target = $region101
    $region100: #{actor_forward.1} parent=1 // pred_region
      %196 = dma.done [#allocation15], 128
    $region101: #{actor_forward.1} parent=1 // pred_fallthru
      _
    %v198 = vld [vmem:[#allocation10] sm:$0xff]
    %v199 = vld [vmem:[#allocation10 + $0x8] sm:$0xff]
    %v200 = vld [vmem:[#allocation10 + $0x10] sm:$0xff]
    %v201 = vld [vmem:[#allocation10 + $0x18] sm:$0xff]
    %v202 = vld [vmem:[%s0] sm:$0xff]
    %v203 = vld [vmem:[%s0 + $0x8] sm:$0xff]
    %v204 = vld [vmem:[%s0 + $0x10] sm:$0xff]
    %v205 = vld [vmem:[%s0 + $0x18] sm:$0xff]
    %v206 = vld [vmem:[%s0 + $0x20] sm:$0xff]
    %v207 = vld [vmem:[%s0 + $0x28] sm:$0xff]
    %v208 = vld [vmem:[%s0 + $0x30] sm:$0xff]
    %v209 = vld [vmem:[%s0 + $0x38] sm:$0xff]
    %v210 = vld [vmem:[%s0 + $0x40] sm:$0xff]
    %v211 = vld [vmem:[%s0 + $0x48] sm:$0xff]
    %v212 = vld [vmem:[%s0 + $0x50] sm:$0xff]
    %v213 = vld [vmem:[%s0 + $0x58] sm:$0xff]
    %v214 = vld [vmem:[%s0 + $0x60] sm:$0xff]
    %v215 = vld [vmem:[%s0 + $0x68] sm:$0xff]
    %v216 = vld [vmem:[%s0 + $0x70] sm:$0xff]
    %v217 = vld [vmem:[%s0 + $0x78] sm:$0xff]
    %v218 = vld [vmem:[%s0 + $0x80] sm:$0xff]
    %v219 = vld [vmem:[%s0 + $0x88] sm:$0xff]
    %v220 = vld [vmem:[%s0 + $0x90] sm:$0xff]
    %v221 = vld [vmem:[%s0 + $0x98] sm:$0xff]
    %v222 = vld [vmem:[%s0 + $0xa0] sm:$0xff]
    %v223 = vld [vmem:[%s0 + $0xa8] sm:$0xff]
    %v224 = vld [vmem:[%s0 + $0xb0] sm:$0xff]
    %v225 = vld [vmem:[%s0 + $0xb8] sm:$0xff]
    %v226 = vld [vmem:[%s0 + $0xc0] sm:$0xff]
    %v227 = vld [vmem:[%s0 + $0xc8] sm:$0xff]
    %v228 = vld [vmem:[%s0 + $0xd0] sm:$0xff]
    %v229 = vld [vmem:[%s0 + $0xd8] sm:$0xff]
    %v230 = vld [vmem:[%s0 + $0xe0] sm:$0xff]
    %v231 = vld [vmem:[%s0 + $0xe8] sm:$0xff]
    %v232 = vld [vmem:[%s0 + $0xf0] sm:$0xff]
    %v233 = vld [vmem:[%s0 + $0xf8] sm:$0xff]
    %v234 = vpack.c.bf16 %v203, %v202
    %v235 = vpack.c.bf16 %v205, %v204
    %v236 = vpack.c.bf16 %v207, %v206
    %v237 = vpack.c.bf16 %v209, %v208
    %v238 = vpack.c.bf16 %v211, %v210
    %v239 = vpack.c.bf16 %v213, %v212
    %v240 = vpack.c.bf16 %v215, %v214
    %v241 = vpack.c.bf16 %v217, %v216
    %v242 = vpack.c.bf16 %v219, %v218
    %v243 = vpack.c.bf16 %v221, %v220
    %v244 = vpack.c.bf16 %v223, %v222
    %v245 = vpack.c.bf16 %v225, %v224
    %v246 = vpack.c.bf16 %v227, %v226
    %v247 = vpack.c.bf16 %v229, %v228
    %v248 = vpack.c.bf16 %v231, %v230
    %v249 = vpack.c.bf16 %v233, %v232
    %v250 = vld [vmem:[#allocation3] sm:$0xff]
    %v251 = vld [vmem:[#allocation3 + $0x8] sm:$0xff]
    %v252 = vld [vmem:[#allocation3 + $0x10] sm:$0xff]
    %v253 = vld [vmem:[#allocation3 + $0x18] sm:$0xff]
    %v254 = vld [vmem:[#allocation3 + $0x20] sm:$0xff]
    %v255 = vld [vmem:[#allocation3 + $0x28] sm:$0xff]
    %v256 = vld [vmem:[#allocation3 + $0x30] sm:$0xff]
    %v257 = vld [vmem:[#allocation3 + $0x38] sm:$0xff]
    %v266 = vunpack.c.l.b16 %v250
    %v267 = vunpack.c.h.b16 %v250
    %v268 = vunpack.c.l.b16 %v251
    %v269 = vunpack.c.h.b16 %v251
    %v270 = vunpack.c.l.b16 %v252
    %v271 = vunpack.c.h.b16 %v252
    %v272 = vunpack.c.l.b16 %v253
    %v273 = vunpack.c.h.b16 %v253
    %v274 = vunpack.c.l.b16 %v254
    %v275 = vunpack.c.h.b16 %v254
    %v276 = vunpack.c.l.b16 %v255
    %v277 = vunpack.c.h.b16 %v255
    %v278 = vunpack.c.l.b16 %v256
    %v279 = vunpack.c.h.b16 %v256
    %v280 = vunpack.c.l.b16 %v257
    %v281 = vunpack.c.h.b16 %v257
    %v282 = vpack.c.b16 %v268, %v266
    %v283 = vpack.c.b16 %v269, %v267
    %v284 = vpack.c.b16 %v272, %v270
    %v285 = vpack.c.b16 %v273, %v271
    %v286 = vpack.c.b16 %v276, %v274
    %v287 = vpack.c.b16 %v277, %v275
    %v288 = vpack.c.b16 %v280, %v278
    %v289 = vpack.c.b16 %v281, %v279
    %298 = vmatpush.bf16.msra.mxu0 %v241
    %299 = vmatpush.bf16.msra.mxu0 %v240
    %300 = vmatpush.bf16.msra.mxu0 %v239
    %301 = vmatpush.bf16.msra.mxu0 %v238
    %302 = vmatpush.bf16.msra.mxu0 %v237
    %303 = vmatpush.bf16.msra.mxu0 %v236
    %304 = vmatpush.bf16.msra.mxu0 %v235
    %305 = vmatpush.bf16.msra.mxu0 %v234
    %306 = vmatmul.bf16.gmra.mxu0 %v282
    %v307 = vpop.f32.mrf.mxu0
    %v308 = vadd.f32 0.0, %v307
    %v309 = vpop.f32.mrf.mxu0
    %v310 = vadd.f32 0.0, %v309
    %311 = vmatmul.bf16.gmra.mxu0 %v284
    %v312 = vpop.f32.mrf.mxu0
    %v313 = vadd.f32 0.0, %v312
    %v314 = vpop.f32.mrf.mxu0
    %v315 = vadd.f32 0.0, %v314
    %316 = vmatmul.bf16.gmra.mxu0 %v286
    %v317 = vpop.f32.mrf.mxu0
    %v318 = vadd.f32 0.0, %v317
    %v319 = vpop.f32.mrf.mxu0
    %v320 = vadd.f32 0.0, %v319
    %321 = vmatmul.bf16.gmra.mxu0 %v288
    %v322 = vpop.f32.mrf.mxu0
    %v323 = vadd.f32 0.0, %v322
    %v324 = vpop.f32.mrf.mxu0
    %v325 = vadd.f32 0.0, %v324
    %326 = vdwg.mxu0
    %327 = vmatpush.bf16.msra.mxu0 %v249
    %328 = vmatpush.bf16.msra.mxu0 %v248
    %329 = vmatpush.bf16.msra.mxu0 %v247
    %330 = vmatpush.bf16.msra.mxu0 %v246
    %331 = vmatpush.bf16.msra.mxu0 %v245
    %332 = vmatpush.bf16.msra.mxu0 %v244
    %333 = vmatpush.bf16.msra.mxu0 %v243
    %334 = vmatpush.bf16.msra.mxu0 %v242
    %335 = vmatmul.bf16.gmra.mxu0 %v283
    %v336 = vpop.f32.mrf.mxu0
    %v337 = vadd.f32 %v308, %v336
    %v338 = vpop.f32.mrf.mxu0
    %v339 = vadd.f32 %v310, %v338
    %340 = vmatmul.bf16.gmra.mxu0 %v285
    %v341 = vpop.f32.mrf.mxu0
    %v342 = vadd.f32 %v313, %v341
    %v343 = vpop.f32.mrf.mxu0
    %v344 = vadd.f32 %v315, %v343
    %345 = vmatmul.bf16.gmra.mxu0 %v287
    %v346 = vpop.f32.mrf.mxu0
    %v347 = vadd.f32 %v318, %v346
    %v348 = vpop.f32.mrf.mxu0
    %v349 = vadd.f32 %v320, %v348
    %350 = vmatmul.bf16.gmra.mxu0 %v289
    %v351 = vpop.f32.mrf.mxu0
    %v352 = vadd.f32 %v323, %v351
    %v353 = vpop.f32.mrf.mxu0
    %v354 = vadd.f32 %v325, %v353
    %355 = vdwg.mxu0
    %v356 = vld [vmem:[#allocation7] sm:$0x3]
    %358 = vset.pattern.permute.xlu0 0
    %359 = vperm.xlu0 %358, %v337
    %v360 = vpop.permute.xlu0 %359
    %363 = vset.pattern.permute.xlu0 0
    %364 = vperm.xlu0 %363, %v339
    %v365 = vpop.permute.xlu0 %364
    %368 = vset.pattern.permute.xlu0 0
    %369 = vperm.xlu0 %368, %v342
    %v370 = vpop.permute.xlu0 %369
    %373 = vset.pattern.permute.xlu0 0
    %374 = vperm.xlu0 %373, %v344
    %v375 = vpop.permute.xlu0 %374
    %378 = vset.pattern.permute.xlu0 0
    %379 = vperm.xlu0 %378, %v347
    %v380 = vpop.permute.xlu0 %379
    %383 = vset.pattern.permute.xlu0 0
    %384 = vperm.xlu0 %383, %v349
    %v385 = vpop.permute.xlu0 %384
    %388 = vset.pattern.permute.xlu0 0
    %389 = vperm.xlu0 %388, %v352
    %v390 = vpop.permute.xlu0 %389
    %393 = vset.pattern.permute.xlu0 0
    %394 = vperm.xlu0 %393, %v354
    %v395 = vpop.permute.xlu0 %394
    %v397 = vperm.slane %v356, 0
    %v398 = vmul.f32 %v360, %v397
    %v399 = vmul.f32 %v365, %v397
    %v400 = vmul.f32 %v370, %v397
    %v401 = vmul.f32 %v375, %v397
    %v402 = vmul.f32 %v380, %v397
    %v403 = vmul.f32 %v385, %v397
    %v404 = vmul.f32 %v390, %v397
    %v405 = vmul.f32 %v395, %v397
    %406 = vset.pattern.permute.xlu0 1
    %407 = vperm.xlu0 %406, %v337
    %v408 = vpop.permute.xlu0 %407
    %410 = vset.pattern.permute.xlu0 1
    %411 = vperm.xlu0 %410, %v339
    %v412 = vpop.permute.xlu0 %411
    %414 = vset.pattern.permute.xlu0 1
    %415 = vperm.xlu0 %414, %v342
    %v416 = vpop.permute.xlu0 %415
    %418 = vset.pattern.permute.xlu0 1
    %419 = vperm.xlu0 %418, %v344
    %v420 = vpop.permute.xlu0 %419
    %422 = vset.pattern.permute.xlu0 1
    %423 = vperm.xlu0 %422, %v347
    %v424 = vpop.permute.xlu0 %423
    %426 = vset.pattern.permute.xlu0 1
    %427 = vperm.xlu0 %426, %v349
    %v428 = vpop.permute.xlu0 %427
    %430 = vset.pattern.permute.xlu0 1
    %431 = vperm.xlu0 %430, %v352
    %v432 = vpop.permute.xlu0 %431
    %434 = vset.pattern.permute.xlu0 1
    %435 = vperm.xlu0 %434, %v354
    %v436 = vpop.permute.xlu0 %435
    %v438 = vperm.slane %v356, 1
    %v439 = vmul.f32 %v408, %v438
    %v440 = vmul.f32 %v412, %v438
    %v441 = vmul.f32 %v416, %v438
    %v442 = vmul.f32 %v420, %v438
    %v443 = vmul.f32 %v424, %v438
    %v444 = vmul.f32 %v428, %v438
    %v445 = vmul.f32 %v432, %v438
    %v446 = vmul.f32 %v436, %v438
    %v447 = vadd.f32 %v398, %v439
    %v448 = vadd.f32 %v399, %v440
    %v449 = vadd.f32 %v400, %v441
    %v450 = vadd.f32 %v401, %v442
    %v451 = vadd.f32 %v402, %v443
    %v452 = vadd.f32 %v403, %v444
    %v453 = vadd.f32 %v404, %v445
    %v454 = vadd.f32 %v405, %v446
    %s455 = scalar_lea.vmem [#allocation3], 64
    %v456 = vld [vmem:[%s455] sm:$0xff]
    %v457 = vld [vmem:[%s455 + $0x8] sm:$0xff]
    %v458 = vld [vmem:[%s455 + $0x10] sm:$0xff]
    %v459 = vld [vmem:[%s455 + $0x18] sm:$0xff]
    %v460 = vld [vmem:[%s455 + $0x20] sm:$0xff]
    %v461 = vld [vmem:[%s455 + $0x28] sm:$0xff]
    %v462 = vld [vmem:[%s455 + $0x30] sm:$0xff]
    %v463 = vld [vmem:[%s455 + $0x38] sm:$0xff]
    %v472 = vunpack.c.l.b16 %v456
    %v473 = vunpack.c.h.b16 %v456
    %v474 = vunpack.c.l.b16 %v457
    %v475 = vunpack.c.h.b16 %v457
    %v476 = vunpack.c.l.b16 %v458
    %v477 = vunpack.c.h.b16 %v458
    %v478 = vunpack.c.l.b16 %v459
    %v479 = vunpack.c.h.b16 %v459
    %v480 = vunpack.c.l.b16 %v460
    %v481 = vunpack.c.h.b16 %v460
    %v482 = vunpack.c.l.b16 %v461
    %v483 = vunpack.c.h.b16 %v461
    %v484 = vunpack.c.l.b16 %v462
    %v485 = vunpack.c.h.b16 %v462
    %v486 = vunpack.c.l.b16 %v463
    %v487 = vunpack.c.h.b16 %v463
    %v488 = vpack.c.b16 %v474, %v472
    %v489 = vpack.c.b16 %v475, %v473
    %v490 = vpack.c.b16 %v478, %v476
    %v491 = vpack.c.b16 %v479, %v477
    %v492 = vpack.c.b16 %v482, %v480
    %v493 = vpack.c.b16 %v483, %v481
    %v494 = vpack.c.b16 %v486, %v484
    %v495 = vpack.c.b16 %v487, %v485
    %504 = vmatpush.bf16.msra.mxu0 %v241
    %505 = vmatpush.bf16.msra.mxu0 %v240
    %506 = vmatpush.bf16.msra.mxu0 %v239
    %507 = vmatpush.bf16.msra.mxu0 %v238
    %508 = vmatpush.bf16.msra.mxu0 %v237
    %509 = vmatpush.bf16.msra.mxu0 %v236
    %510 = vmatpush.bf16.msra.mxu0 %v235
    %511 = vmatpush.bf16.msra.mxu0 %v234
    %512 = vmatmul.bf16.gmra.mxu0 %v488
    %v513 = vpop.f32.mrf.mxu0
    %v514 = vadd.f32 0.0, %v513
    %v515 = vpop.f32.mrf.mxu0
    %v516 = vadd.f32 0.0, %v515
    %517 = vmatmul.bf16.gmra.mxu0 %v490
    %v518 = vpop.f32.mrf.mxu0
    %v519 = vadd.f32 0.0, %v518
    %v520 = vpop.f32.mrf.mxu0
    %v521 = vadd.f32 0.0, %v520
    %522 = vmatmul.bf16.gmra.mxu0 %v492
    %v523 = vpop.f32.mrf.mxu0
    %v524 = vadd.f32 0.0, %v523
    %v525 = vpop.f32.mrf.mxu0
    %v526 = vadd.f32 0.0, %v525
    %527 = vmatmul.bf16.gmra.mxu0 %v494
    %v528 = vpop.f32.mrf.mxu0
    %v529 = vadd.f32 0.0, %v528
    %v530 = vpop.f32.mrf.mxu0
    %v531 = vadd.f32 0.0, %v530
    %532 = vdwg.mxu0
    %533 = vmatpush.bf16.msra.mxu0 %v249
    %534 = vmatpush.bf16.msra.mxu0 %v248
    %535 = vmatpush.bf16.msra.mxu0 %v247
    %536 = vmatpush.bf16.msra.mxu0 %v246
    %537 = vmatpush.bf16.msra.mxu0 %v245
    %538 = vmatpush.bf16.msra.mxu0 %v244
    %539 = vmatpush.bf16.msra.mxu0 %v243
    %540 = vmatpush.bf16.msra.mxu0 %v242
    %541 = vmatmul.bf16.gmra.mxu0 %v489
    %v542 = vpop.f32.mrf.mxu0
    %v543 = vadd.f32 %v514, %v542
    %v544 = vpop.f32.mrf.mxu0
    %v545 = vadd.f32 %v516, %v544
    %546 = vmatmul.bf16.gmra.mxu0 %v491
    %v547 = vpop.f32.mrf.mxu0
    %v548 = vadd.f32 %v519, %v547
    %v549 = vpop.f32.mrf.mxu0
    %v550 = vadd.f32 %v521, %v549
    %551 = vmatmul.bf16.gmra.mxu0 %v493
    %v552 = vpop.f32.mrf.mxu0
    %v553 = vadd.f32 %v524, %v552
    %v554 = vpop.f32.mrf.mxu0
    %v555 = vadd.f32 %v526, %v554
    %556 = vmatmul.bf16.gmra.mxu0 %v495
    %v557 = vpop.f32.mrf.mxu0
    %v558 = vadd.f32 %v529, %v557
    %v559 = vpop.f32.mrf.mxu0
    %v560 = vadd.f32 %v531, %v559
    %561 = vdwg.mxu0
    %s562 = scalar_lea.vmem [#allocation7], 2
    %v563 = vld [vmem:[%s562] sm:$0x3]
    %565 = vset.pattern.permute.xlu0 0
    %566 = vperm.xlu0 %565, %v543
    %v567 = vpop.permute.xlu0 %566
    %570 = vset.pattern.permute.xlu0 0
    %571 = vperm.xlu0 %570, %v545
    %v572 = vpop.permute.xlu0 %571
    %575 = vset.pattern.permute.xlu0 0
    %576 = vperm.xlu0 %575, %v548
    %v577 = vpop.permute.xlu0 %576
    %580 = vset.pattern.permute.xlu0 0
    %581 = vperm.xlu0 %580, %v550
    %v582 = vpop.permute.xlu0 %581
    %585 = vset.pattern.permute.xlu0 0
    %586 = vperm.xlu0 %585, %v553
    %v587 = vpop.permute.xlu0 %586
    %590 = vset.pattern.permute.xlu0 0
    %591 = vperm.xlu0 %590, %v555
    %v592 = vpop.permute.xlu0 %591
    %595 = vset.pattern.permute.xlu0 0
    %596 = vperm.xlu0 %595, %v558
    %v597 = vpop.permute.xlu0 %596
    %600 = vset.pattern.permute.xlu0 0
    %601 = vperm.xlu0 %600, %v560
    %v602 = vpop.permute.xlu0 %601
    %v604 = vperm.slane %v563, 0
    %v605 = vmul.f32 %v567, %v604
    %v606 = vmul.f32 %v572, %v604
    %v607 = vmul.f32 %v577, %v604
    %v608 = vmul.f32 %v582, %v604
    %v609 = vmul.f32 %v587, %v604
    %v610 = vmul.f32 %v592, %v604
    %v611 = vmul.f32 %v597, %v604
    %v612 = vmul.f32 %v602, %v604
    %v613 = vadd.f32 %v447, %v605
    %v614 = vadd.f32 %v448, %v606
    %v615 = vadd.f32 %v449, %v607
    %v616 = vadd.f32 %v450, %v608
    %v617 = vadd.f32 %v451, %v609
    %v618 = vadd.f32 %v452, %v610
    %v619 = vadd.f32 %v453, %v611
    %v620 = vadd.f32 %v454, %v612
    %621 = vset.pattern.permute.xlu0 1
    %622 = vperm.xlu0 %621, %v543
    %v623 = vpop.permute.xlu0 %622
    %625 = vset.pattern.permute.xlu0 1
    %626 = vperm.xlu0 %625, %v545
    %v627 = vpop.permute.xlu0 %626
    %629 = vset.pattern.permute.xlu0 1
    %630 = vperm.xlu0 %629, %v548
    %v631 = vpop.permute.xlu0 %630
    %633 = vset.pattern.permute.xlu0 1
    %634 = vperm.xlu0 %633, %v550
    %v635 = vpop.permute.xlu0 %634
    %637 = vset.pattern.permute.xlu0 1
    %638 = vperm.xlu0 %637, %v553
    %v639 = vpop.permute.xlu0 %638
    %641 = vset.pattern.permute.xlu0 1
    %642 = vperm.xlu0 %641, %v555
    %v643 = vpop.permute.xlu0 %642
    %645 = vset.pattern.permute.xlu0 1
    %646 = vperm.xlu0 %645, %v558
    %v647 = vpop.permute.xlu0 %646
    %649 = vset.pattern.permute.xlu0 1
    %650 = vperm.xlu0 %649, %v560
    %v651 = vpop.permute.xlu0 %650
    %v653 = vperm.slane %v563, 1
    %v654 = vmul.f32 %v623, %v653
    %v655 = vmul.f32 %v627, %v653
    %v656 = vmul.f32 %v631, %v653
    %v657 = vmul.f32 %v635, %v653
    %v658 = vmul.f32 %v639, %v653
    %v659 = vmul.f32 %v643, %v653
    %v660 = vmul.f32 %v647, %v653
    %v661 = vmul.f32 %v651, %v653
    %v662 = vadd.f32 %v613, %v654
    %v663 = vadd.f32 %v614, %v655
    %v664 = vadd.f32 %v615, %v656
    %v665 = vadd.f32 %v616, %v657
    %v666 = vadd.f32 %v617, %v658
    %v667 = vadd.f32 %v618, %v659
    %v668 = vadd.f32 %v619, %v660
    %v669 = vadd.f32 %v620, %v661
    %s670 = scalar_lea.vmem [#allocation3], 128
    %v671 = vld [vmem:[%s670] sm:$0xff]
    %v672 = vld [vmem:[%s670 + $0x8] sm:$0xff]
    %v673 = vld [vmem:[%s670 + $0x10] sm:$0xff]
    %v674 = vld [vmem:[%s670 + $0x18] sm:$0xff]
    %v675 = vld [vmem:[%s670 + $0x20] sm:$0xff]
    %v676 = vld [vmem:[%s670 + $0x28] sm:$0xff]
    %v677 = vld [vmem:[%s670 + $0x30] sm:$0xff]
    %v678 = vld [vmem:[%s670 + $0x38] sm:$0xff]
    %v687 = vunpack.c.l.b16 %v671
    %v688 = vunpack.c.h.b16 %v671
    %v689 = vunpack.c.l.b16 %v672
    %v690 = vunpack.c.h.b16 %v672
    %v691 = vunpack.c.l.b16 %v673
    %v692 = vunpack.c.h.b16 %v673
    %v693 = vunpack.c.l.b16 %v674
    %v694 = vunpack.c.h.b16 %v674
    %v695 = vunpack.c.l.b16 %v675
    %v696 = vunpack.c.h.b16 %v675
    %v697 = vunpack.c.l.b16 %v676
    %v698 = vunpack.c.h.b16 %v676
    %v699 = vunpack.c.l.b16 %v677
    %v700 = vunpack.c.h.b16 %v677
    %v701 = vunpack.c.l.b16 %v678
    %v702 = vunpack.c.h.b16 %v678
    %v703 = vpack.c.b16 %v689, %v687
    %v704 = vpack.c.b16 %v690, %v688
    %v705 = vpack.c.b16 %v693, %v691
    %v706 = vpack.c.b16 %v694, %v692
    %v707 = vpack.c.b16 %v697, %v695
    %v708 = vpack.c.b16 %v698, %v696
    %v709 = vpack.c.b16 %v701, %v699
    %v710 = vpack.c.b16 %v702, %v700
    %719 = vmatpush.bf16.msra.mxu0 %v241
    %720 = vmatpush.bf16.msra.mxu0 %v240
    %721 = vmatpush.bf16.msra.mxu0 %v239
    %722 = vmatpush.bf16.msra.mxu0 %v238
    %723 = vmatpush.bf16.msra.mxu0 %v237
    %724 = vmatpush.bf16.msra.mxu0 %v236
    %725 = vmatpush.bf16.msra.mxu0 %v235
    %726 = vmatpush.bf16.msra.mxu0 %v234
    %727 = vmatmul.bf16.gmra.mxu0 %v703
    %v728 = vpop.f32.mrf.mxu0
    %v729 = vadd.f32 0.0, %v728
    %v730 = vpop.f32.mrf.mxu0
    %v731 = vadd.f32 0.0, %v730
    %732 = vmatmul.bf16.gmra.mxu0 %v705
    %v733 = vpop.f32.mrf.mxu0
    %v734 = vadd.f32 0.0, %v733
    %v735 = vpop.f32.mrf.mxu0
    %v736 = vadd.f32 0.0, %v735
    %737 = vmatmul.bf16.gmra.mxu0 %v707
    %v738 = vpop.f32.mrf.mxu0
    %v739 = vadd.f32 0.0, %v738
    %v740 = vpop.f32.mrf.mxu0
    %v741 = vadd.f32 0.0, %v740
    %742 = vmatmul.bf16.gmra.mxu0 %v709
    %v743 = vpop.f32.mrf.mxu0
    %v744 = vadd.f32 0.0, %v743
    %v745 = vpop.f32.mrf.mxu0
    %v746 = vadd.f32 0.0, %v745
    %747 = vdwg.mxu0
    %748 = vmatpush.bf16.msra.mxu0 %v249
    %749 = vmatpush.bf16.msra.mxu0 %v248
    %750 = vmatpush.bf16.msra.mxu0 %v247
    %751 = vmatpush.bf16.msra.mxu0 %v246
    %752 = vmatpush.bf16.msra.mxu0 %v245
    %753 = vmatpush.bf16.msra.mxu0 %v244
    %754 = vmatpush.bf16.msra.mxu0 %v243
    %755 = vmatpush.bf16.msra.mxu0 %v242
    %756 = vmatmul.bf16.gmra.mxu0 %v704
    %v757 = vpop.f32.mrf.mxu0
    %v758 = vadd.f32 %v729, %v757
    %v759 = vpop.f32.mrf.mxu0
    %v760 = vadd.f32 %v731, %v759
    %761 = vmatmul.bf16.gmra.mxu0 %v706
    %v762 = vpop.f32.mrf.mxu0
    %v763 = vadd.f32 %v734, %v762
    %v764 = vpop.f32.mrf.mxu0
    %v765 = vadd.f32 %v736, %v764
    %766 = vmatmul.bf16.gmra.mxu0 %v708
    %v767 = vpop.f32.mrf.mxu0
    %v768 = vadd.f32 %v739, %v767
    %v769 = vpop.f32.mrf.mxu0
    %v770 = vadd.f32 %v741, %v769
    %771 = vmatmul.bf16.gmra.mxu0 %v710
    %v772 = vpop.f32.mrf.mxu0
    %v773 = vadd.f32 %v744, %v772
    %v774 = vpop.f32.mrf.mxu0
    %v775 = vadd.f32 %v746, %v774
    %776 = vdwg.mxu0
    %s777 = scalar_lea.vmem [#allocation7], 4
    %v778 = vld [vmem:[%s777] sm:$0x3]
    %780 = vset.pattern.permute.xlu0 0
    %781 = vperm.xlu0 %780, %v758
    %v782 = vpop.permute.xlu0 %781
    %785 = vset.pattern.permute.xlu0 0
    %786 = vperm.xlu0 %785, %v760
    %v787 = vpop.permute.xlu0 %786
    %790 = vset.pattern.permute.xlu0 0
    %791 = vperm.xlu0 %790, %v763
    %v792 = vpop.permute.xlu0 %791
    %795 = vset.pattern.permute.xlu0 0
    %796 = vperm.xlu0 %795, %v765
    %v797 = vpop.permute.xlu0 %796
    %800 = vset.pattern.permute.xlu0 0
    %801 = vperm.xlu0 %800, %v768
    %v802 = vpop.permute.xlu0 %801
    %805 = vset.pattern.permute.xlu0 0
    %806 = vperm.xlu0 %805, %v770
    %v807 = vpop.permute.xlu0 %806
    %810 = vset.pattern.permute.xlu0 0
    %811 = vperm.xlu0 %810, %v773
    %v812 = vpop.permute.xlu0 %811
    %815 = vset.pattern.permute.xlu0 0
    %816 = vperm.xlu0 %815, %v775
    %v817 = vpop.permute.xlu0 %816
    %v819 = vperm.slane %v778, 0
    %v820 = vmul.f32 %v782, %v819
    %v821 = vmul.f32 %v787, %v819
    %v822 = vmul.f32 %v792, %v819
    %v823 = vmul.f32 %v797, %v819
    %v824 = vmul.f32 %v802, %v819
    %v825 = vmul.f32 %v807, %v819
    %v826 = vmul.f32 %v812, %v819
    %v827 = vmul.f32 %v817, %v819
    %v828 = vadd.f32 %v662, %v820
    %v829 = vadd.f32 %v663, %v821
    %v830 = vadd.f32 %v664, %v822
    %v831 = vadd.f32 %v665, %v823
    %v832 = vadd.f32 %v666, %v824
    %v833 = vadd.f32 %v667, %v825
    %v834 = vadd.f32 %v668, %v826
    %v835 = vadd.f32 %v669, %v827
    %836 = vset.pattern.permute.xlu0 1
    %837 = vperm.xlu0 %836, %v758
    %v838 = vpop.permute.xlu0 %837
    %840 = vset.pattern.permute.xlu0 1
    %841 = vperm.xlu0 %840, %v760
    %v842 = vpop.permute.xlu0 %841
    %844 = vset.pattern.permute.xlu0 1
    %845 = vperm.xlu0 %844, %v763
    %v846 = vpop.permute.xlu0 %845
    %848 = vset.pattern.permute.xlu0 1
    %849 = vperm.xlu0 %848, %v765
    %v850 = vpop.permute.xlu0 %849
    %852 = vset.pattern.permute.xlu0 1
    %853 = vperm.xlu0 %852, %v768
    %v854 = vpop.permute.xlu0 %853
    %856 = vset.pattern.permute.xlu0 1
    %857 = vperm.xlu0 %856, %v770
    %v858 = vpop.permute.xlu0 %857
    %860 = vset.pattern.permute.xlu0 1
    %861 = vperm.xlu0 %860, %v773
    %v862 = vpop.permute.xlu0 %861
    %864 = vset.pattern.permute.xlu0 1
    %865 = vperm.xlu0 %864, %v775
    %v866 = vpop.permute.xlu0 %865
    %v868 = vperm.slane %v778, 1
    %v869 = vmul.f32 %v838, %v868
    %v870 = vmul.f32 %v842, %v868
    %v871 = vmul.f32 %v846, %v868
    %v872 = vmul.f32 %v850, %v868
    %v873 = vmul.f32 %v854, %v868
    %v874 = vmul.f32 %v858, %v868
    %v875 = vmul.f32 %v862, %v868
    %v876 = vmul.f32 %v866, %v868
    %v877 = vadd.f32 %v828, %v869
    %v878 = vadd.f32 %v829, %v870
    %v879 = vadd.f32 %v830, %v871
    %v880 = vadd.f32 %v831, %v872
    %v881 = vadd.f32 %v832, %v873
    %v882 = vadd.f32 %v833, %v874
    %v883 = vadd.f32 %v834, %v875
    %v884 = vadd.f32 %v835, %v876
    %s885 = scalar_lea.vmem [#allocation3], 192
    %v886 = vld [vmem:[%s885] sm:$0xff]
    %v887 = vld [vmem:[%s885 + $0x8] sm:$0xff]
    %v888 = vld [vmem:[%s885 + $0x10] sm:$0xff]
    %v889 = vld [vmem:[%s885 + $0x18] sm:$0xff]
    %v890 = vld [vmem:[%s885 + $0x20] sm:$0xff]
    %v891 = vld [vmem:[%s885 + $0x28] sm:$0xff]
    %v892 = vld [vmem:[%s885 + $0x30] sm:$0xff]
    %v893 = vld [vmem:[%s885 + $0x38] sm:$0xff]
    %v902 = vunpack.c.l.b16 %v886
    %v903 = vunpack.c.h.b16 %v886
    %v904 = vunpack.c.l.b16 %v887
    %v905 = vunpack.c.h.b16 %v887
    %v906 = vunpack.c.l.b16 %v888
    %v907 = vunpack.c.h.b16 %v888
    %v908 = vunpack.c.l.b16 %v889
    %v909 = vunpack.c.h.b16 %v889
    %v910 = vunpack.c.l.b16 %v890
    %v911 = vunpack.c.h.b16 %v890
    %v912 = vunpack.c.l.b16 %v891
    %v913 = vunpack.c.h.b16 %v891
    %v914 = vunpack.c.l.b16 %v892
    %v915 = vunpack.c.h.b16 %v892
    %v916 = vunpack.c.l.b16 %v893
    %v917 = vunpack.c.h.b16 %v893
    %v918 = vpack.c.b16 %v904, %v902
    %v919 = vpack.c.b16 %v905, %v903
    %v920 = vpack.c.b16 %v908, %v906
    %v921 = vpack.c.b16 %v909, %v907
    %v922 = vpack.c.b16 %v912, %v910
    %v923 = vpack.c.b16 %v913, %v911
    %v924 = vpack.c.b16 %v916, %v914
    %v925 = vpack.c.b16 %v917, %v915
    %934 = vmatpush.bf16.msra.mxu0 %v241
    %935 = vmatpush.bf16.msra.mxu0 %v240
    %936 = vmatpush.bf16.msra.mxu0 %v239
    %937 = vmatpush.bf16.msra.mxu0 %v238
    %938 = vmatpush.bf16.msra.mxu0 %v237
    %939 = vmatpush.bf16.msra.mxu0 %v236
    %940 = vmatpush.bf16.msra.mxu0 %v235
    %941 = vmatpush.bf16.msra.mxu0 %v234
    %942 = vmatmul.bf16.gmra.mxu0 %v918
    %v943 = vpop.f32.mrf.mxu0
    %v944 = vadd.f32 0.0, %v943
    %v945 = vpop.f32.mrf.mxu0
    %v946 = vadd.f32 0.0, %v945
    %947 = vmatmul.bf16.gmra.mxu0 %v920
    %v948 = vpop.f32.mrf.mxu0
    %v949 = vadd.f32 0.0, %v948
    %v950 = vpop.f32.mrf.mxu0
    %v951 = vadd.f32 0.0, %v950
    %952 = vmatmul.bf16.gmra.mxu0 %v922
    %v953 = vpop.f32.mrf.mxu0
    %v954 = vadd.f32 0.0, %v953
    %v955 = vpop.f32.mrf.mxu0
    %v956 = vadd.f32 0.0, %v955
    %957 = vmatmul.bf16.gmra.mxu0 %v924
    %v958 = vpop.f32.mrf.mxu0
    %v959 = vadd.f32 0.0, %v958
    %v960 = vpop.f32.mrf.mxu0
    %v961 = vadd.f32 0.0, %v960
    %962 = vdwg.mxu0
    %963 = vmatpush.bf16.msra.mxu0 %v249
    %964 = vmatpush.bf16.msra.mxu0 %v248
    %965 = vmatpush.bf16.msra.mxu0 %v247
    %966 = vmatpush.bf16.msra.mxu0 %v246
    %967 = vmatpush.bf16.msra.mxu0 %v245
    %968 = vmatpush.bf16.msra.mxu0 %v244
    %969 = vmatpush.bf16.msra.mxu0 %v243
    %970 = vmatpush.bf16.msra.mxu0 %v242
    %971 = vmatmul.bf16.gmra.mxu0 %v919
    %v972 = vpop.f32.mrf.mxu0
    %v973 = vadd.f32 %v944, %v972
    %v974 = vpop.f32.mrf.mxu0
    %v975 = vadd.f32 %v946, %v974
    %976 = vmatmul.bf16.gmra.mxu0 %v921
    %v977 = vpop.f32.mrf.mxu0
    %v978 = vadd.f32 %v949, %v977
    %v979 = vpop.f32.mrf.mxu0
    %v980 = vadd.f32 %v951, %v979
    %981 = vmatmul.bf16.gmra.mxu0 %v923
    %v982 = vpop.f32.mrf.mxu0
    %v983 = vadd.f32 %v954, %v982
    %v984 = vpop.f32.mrf.mxu0
    %v985 = vadd.f32 %v956, %v984
    %986 = vmatmul.bf16.gmra.mxu0 %v925
    %v987 = vpop.f32.mrf.mxu0
    %v988 = vadd.f32 %v959, %v987
    %v989 = vpop.f32.mrf.mxu0
    %v990 = vadd.f32 %v961, %v989
    %991 = vdwg.mxu0
    %s992 = scalar_lea.vmem [#allocation7], 6
    %v993 = vld [vmem:[%s992] sm:$0x3]
    %995 = vset.pattern.permute.xlu0 0
    %996 = vperm.xlu0 %995, %v973
    %v997 = vpop.permute.xlu0 %996
    %1000 = vset.pattern.permute.xlu0 0
    %1001 = vperm.xlu0 %1000, %v975
    %v1002 = vpop.permute.xlu0 %1001
    %1005 = vset.pattern.permute.xlu0 0
    %1006 = vperm.xlu0 %1005, %v978
    %v1007 = vpop.permute.xlu0 %1006
    %1010 = vset.pattern.permute.xlu0 0
    %1011 = vperm.xlu0 %1010, %v980
    %v1012 = vpop.permute.xlu0 %1011
    %1015 = vset.pattern.permute.xlu0 0
    %1016 = vperm.xlu0 %1015, %v983
    %v1017 = vpop.permute.xlu0 %1016
    %1020 = vset.pattern.permute.xlu0 0
    %1021 = vperm.xlu0 %1020, %v985
    %v1022 = vpop.permute.xlu0 %1021
    %1025 = vset.pattern.permute.xlu0 0
    %1026 = vperm.xlu0 %1025, %v988
    %v1027 = vpop.permute.xlu0 %1026
    %1030 = vset.pattern.permute.xlu0 0
    %1031 = vperm.xlu0 %1030, %v990
    %v1032 = vpop.permute.xlu0 %1031
    %v1034 = vperm.slane %v993, 0
    %v1035 = vmul.f32 %v997, %v1034
    %v1036 = vmul.f32 %v1002, %v1034
    %v1037 = vmul.f32 %v1007, %v1034
    %v1038 = vmul.f32 %v1012, %v1034
    %v1039 = vmul.f32 %v1017, %v1034
    %v1040 = vmul.f32 %v1022, %v1034
    %v1041 = vmul.f32 %v1027, %v1034
    %v1042 = vmul.f32 %v1032, %v1034
    %v1043 = vadd.f32 %v877, %v1035
    %v1044 = vadd.f32 %v878, %v1036
    %v1045 = vadd.f32 %v879, %v1037
    %v1046 = vadd.f32 %v880, %v1038
    %v1047 = vadd.f32 %v881, %v1039
    %v1048 = vadd.f32 %v882, %v1040
    %v1049 = vadd.f32 %v883, %v1041
    %v1050 = vadd.f32 %v884, %v1042
    %1051 = vset.pattern.permute.xlu0 1
    %1052 = vperm.xlu0 %1051, %v973
    %v1053 = vpop.permute.xlu0 %1052
    %1055 = vset.pattern.permute.xlu0 1
    %1056 = vperm.xlu0 %1055, %v975
    %v1057 = vpop.permute.xlu0 %1056
    %1059 = vset.pattern.permute.xlu0 1
    %1060 = vperm.xlu0 %1059, %v978
    %v1061 = vpop.permute.xlu0 %1060
    %1063 = vset.pattern.permute.xlu0 1
    %1064 = vperm.xlu0 %1063, %v980
    %v1065 = vpop.permute.xlu0 %1064
    %1067 = vset.pattern.permute.xlu0 1
    %1068 = vperm.xlu0 %1067, %v983
    %v1069 = vpop.permute.xlu0 %1068
    %1071 = vset.pattern.permute.xlu0 1
    %1072 = vperm.xlu0 %1071, %v985
    %v1073 = vpop.permute.xlu0 %1072
    %1075 = vset.pattern.permute.xlu0 1
    %1076 = vperm.xlu0 %1075, %v988
    %v1077 = vpop.permute.xlu0 %1076
    %1079 = vset.pattern.permute.xlu0 1
    %1080 = vperm.xlu0 %1079, %v990
    %v1081 = vpop.permute.xlu0 %1080
    %v1083 = vperm.slane %v993, 1
    %v1084 = vmul.f32 %v1053, %v1083
    %v1085 = vmul.f32 %v1057, %v1083
    %v1086 = vmul.f32 %v1061, %v1083
    %v1087 = vmul.f32 %v1065, %v1083
    %v1088 = vmul.f32 %v1069, %v1083
    %v1089 = vmul.f32 %v1073, %v1083
    %v1090 = vmul.f32 %v1077, %v1083
    %v1091 = vmul.f32 %v1081, %v1083
    %v1092 = vadd.f32 %v1043, %v1084
    %v1093 = vadd.f32 %v1044, %v1085
    %v1094 = vadd.f32 %v1045, %v1086
    %v1095 = vadd.f32 %v1046, %v1087
    %v1096 = vadd.f32 %v1047, %v1088
    %v1097 = vadd.f32 %v1048, %v1089
    %v1098 = vadd.f32 %v1049, %v1090
    %v1099 = vadd.f32 %v1050, %v1091
    %s1100 = scalar_lea.vmem [#allocation3], 256
    %v1101 = vld [vmem:[%s1100] sm:$0xff]
    %v1102 = vld [vmem:[%s1100 + $0x8] sm:$0xff]
    %v1103 = vld [vmem:[%s1100 + $0x10] sm:$0xff]
    %v1104 = vld [vmem:[%s1100 + $0x18] sm:$0xff]
    %v1105 = vld [vmem:[%s1100 + $0x20] sm:$0xff]
    %v1106 = vld [vmem:[%s1100 + $0x28] sm:$0xff]
    %v1107 = vld [vmem:[%s1100 + $0x30] sm:$0xff]
    %v1108 = vld [vmem:[%s1100 + $0x38] sm:$0xff]
    %v1117 = vunpack.c.l.b16 %v1101
    %v1118 = vunpack.c.h.b16 %v1101
    %v1119 = vunpack.c.l.b16 %v1102
    %v1120 = vunpack.c.h.b16 %v1102
    %v1121 = vunpack.c.l.b16 %v1103
    %v1122 = vunpack.c.h.b16 %v1103
    %v1123 = vunpack.c.l.b16 %v1104
    %v1124 = vunpack.c.h.b16 %v1104
    %v1125 = vunpack.c.l.b16 %v1105
    %v1126 = vunpack.c.h.b16 %v1105
    %v1127 = vunpack.c.l.b16 %v1106
    %v1128 = vunpack.c.h.b16 %v1106
    %v1129 = vunpack.c.l.b16 %v1107
    %v1130 = vunpack.c.h.b16 %v1107
    %v1131 = vunpack.c.l.b16 %v1108
    %v1132 = vunpack.c.h.b16 %v1108
    %v1133 = vpack.c.b16 %v1119, %v1117
    %v1134 = vpack.c.b16 %v1120, %v1118
    %v1135 = vpack.c.b16 %v1123, %v1121
    %v1136 = vpack.c.b16 %v1124, %v1122
    %v1137 = vpack.c.b16 %v1127, %v1125
    %v1138 = vpack.c.b16 %v1128, %v1126
    %v1139 = vpack.c.b16 %v1131, %v1129
    %v1140 = vpack.c.b16 %v1132, %v1130
    %1149 = vmatpush.bf16.msra.mxu0 %v241
    %1150 = vmatpush.bf16.msra.mxu0 %v240
    %1151 = vmatpush.bf16.msra.mxu0 %v239
    %1152 = vmatpush.bf16.msra.mxu0 %v238
    %1153 = vmatpush.bf16.msra.mxu0 %v237
    %1154 = vmatpush.bf16.msra.mxu0 %v236
    %1155 = vmatpush.bf16.msra.mxu0 %v235
    %1156 = vmatpush.bf16.msra.mxu0 %v234
    %1157 = vmatmul.bf16.gmra.mxu0 %v1133
    %v1158 = vpop.f32.mrf.mxu0
    %v1159 = vadd.f32 0.0, %v1158
    %v1160 = vpop.f32.mrf.mxu0
    %v1161 = vadd.f32 0.0, %v1160
    %1162 = vmatmul.bf16.gmra.mxu0 %v1135
    %v1163 = vpop.f32.mrf.mxu0
    %v1164 = vadd.f32 0.0, %v1163
    %v1165 = vpop.f32.mrf.mxu0
    %v1166 = vadd.f32 0.0, %v1165
    %1167 = vmatmul.bf16.gmra.mxu0 %v1137
    %v1168 = vpop.f32.mrf.mxu0
    %v1169 = vadd.f32 0.0, %v1168
    %v1170 = vpop.f32.mrf.mxu0
    %v1171 = vadd.f32 0.0, %v1170
    %1172 = vmatmul.bf16.gmra.mxu0 %v1139
    %v1173 = vpop.f32.mrf.mxu0
    %v1174 = vadd.f32 0.0, %v1173
    %v1175 = vpop.f32.mrf.mxu0
    %v1176 = vadd.f32 0.0, %v1175
    %1177 = vdwg.mxu0
    %1178 = vmatpush.bf16.msra.mxu0 %v249
    %1179 = vmatpush.bf16.msra.mxu0 %v248
    %1180 = vmatpush.bf16.msra.mxu0 %v247
    %1181 = vmatpush.bf16.msra.mxu0 %v246
    %1182 = vmatpush.bf16.msra.mxu0 %v245
    %1183 = vmatpush.bf16.msra.mxu0 %v244
    %1184 = vmatpush.bf16.msra.mxu0 %v243
    %1185 = vmatpush.bf16.msra.mxu0 %v242
    %1186 = vmatmul.bf16.gmra.mxu0 %v1134
    %v1187 = vpop.f32.mrf.mxu0
    %v1188 = vadd.f32 %v1159, %v1187
    %v1189 = vpop.f32.mrf.mxu0
    %v1190 = vadd.f32 %v1161, %v1189
    %1191 = vmatmul.bf16.gmra.mxu0 %v1136
    %v1192 = vpop.f32.mrf.mxu0
    %v1193 = vadd.f32 %v1164, %v1192
    %v1194 = vpop.f32.mrf.mxu0
    %v1195 = vadd.f32 %v1166, %v1194
    %1196 = vmatmul.bf16.gmra.mxu0 %v1138
    %v1197 = vpop.f32.mrf.mxu0
    %v1198 = vadd.f32 %v1169, %v1197
    %v1199 = vpop.f32.mrf.mxu0
    %v1200 = vadd.f32 %v1171, %v1199
    %1201 = vmatmul.bf16.gmra.mxu0 %v1140
    %v1202 = vpop.f32.mrf.mxu0
    %v1203 = vadd.f32 %v1174, %v1202
    %v1204 = vpop.f32.mrf.mxu0
    %v1205 = vadd.f32 %v1176, %v1204
    %1206 = vdwg.mxu0
    %s1207 = scalar_lea.vmem [#allocation7], 8
    %v1208 = vld [vmem:[%s1207] sm:$0x3]
    %1210 = vset.pattern.permute.xlu0 0
    %1211 = vperm.xlu0 %1210, %v1188
    %v1212 = vpop.permute.xlu0 %1211
    %1215 = vset.pattern.permute.xlu0 0
    %1216 = vperm.xlu0 %1215, %v1190
    %v1217 = vpop.permute.xlu0 %1216
    %1220 = vset.pattern.permute.xlu0 0
    %1221 = vperm.xlu0 %1220, %v1193
    %v1222 = vpop.permute.xlu0 %1221
    %1225 = vset.pattern.permute.xlu0 0
    %1226 = vperm.xlu0 %1225, %v1195
    %v1227 = vpop.permute.xlu0 %1226
    %1230 = vset.pattern.permute.xlu0 0
    %1231 = vperm.xlu0 %1230, %v1198
    %v1232 = vpop.permute.xlu0 %1231
    %1235 = vset.pattern.permute.xlu0 0
    %1236 = vperm.xlu0 %1235, %v1200
    %v1237 = vpop.permute.xlu0 %1236
    %1240 = vset.pattern.permute.xlu0 0
    %1241 = vperm.xlu0 %1240, %v1203
    %v1242 = vpop.permute.xlu0 %1241
    %1245 = vset.pattern.permute.xlu0 0
    %1246 = vperm.xlu0 %1245, %v1205
    %v1247 = vpop.permute.xlu0 %1246
    %v1249 = vperm.slane %v1208, 0
    %v1250 = vmul.f32 %v1212, %v1249
    %v1251 = vmul.f32 %v1217, %v1249
    %v1252 = vmul.f32 %v1222, %v1249
    %v1253 = vmul.f32 %v1227, %v1249
    %v1254 = vmul.f32 %v1232, %v1249
    %v1255 = vmul.f32 %v1237, %v1249
    %v1256 = vmul.f32 %v1242, %v1249
    %v1257 = vmul.f32 %v1247, %v1249
    %v1258 = vadd.f32 %v1092, %v1250
    %v1259 = vadd.f32 %v1093, %v1251
    %v1260 = vadd.f32 %v1094, %v1252
    %v1261 = vadd.f32 %v1095, %v1253
    %v1262 = vadd.f32 %v1096, %v1254
    %v1263 = vadd.f32 %v1097, %v1255
    %v1264 = vadd.f32 %v1098, %v1256
    %v1265 = vadd.f32 %v1099, %v1257
    %1266 = vset.pattern.permute.xlu0 1
    %1267 = vperm.xlu0 %1266, %v1188
    %v1268 = vpop.permute.xlu0 %1267
    %1270 = vset.pattern.permute.xlu0 1
    %1271 = vperm.xlu0 %1270, %v1190
    %v1272 = vpop.permute.xlu0 %1271
    %1274 = vset.pattern.permute.xlu0 1
    %1275 = vperm.xlu0 %1274, %v1193
    %v1276 = vpop.permute.xlu0 %1275
    %1278 = vset.pattern.permute.xlu0 1
    %1279 = vperm.xlu0 %1278, %v1195
    %v1280 = vpop.permute.xlu0 %1279
    %1282 = vset.pattern.permute.xlu0 1
    %1283 = vperm.xlu0 %1282, %v1198
    %v1284 = vpop.permute.xlu0 %1283
    %1286 = vset.pattern.permute.xlu0 1
    %1287 = vperm.xlu0 %1286, %v1200
    %v1288 = vpop.permute.xlu0 %1287
    %1290 = vset.pattern.permute.xlu0 1
    %1291 = vperm.xlu0 %1290, %v1203
    %v1292 = vpop.permute.xlu0 %1291
    %1294 = vset.pattern.permute.xlu0 1
    %1295 = vperm.xlu0 %1294, %v1205
    %v1296 = vpop.permute.xlu0 %1295
    %v1298 = vperm.slane %v1208, 1
    %v1299 = vmul.f32 %v1268, %v1298
    %v1300 = vmul.f32 %v1272, %v1298
    %v1301 = vmul.f32 %v1276, %v1298
    %v1302 = vmul.f32 %v1280, %v1298
    %v1303 = vmul.f32 %v1284, %v1298
    %v1304 = vmul.f32 %v1288, %v1298
    %v1305 = vmul.f32 %v1292, %v1298
    %v1306 = vmul.f32 %v1296, %v1298
    %v1307 = vadd.f32 %v1258, %v1299
    %v1308 = vadd.f32 %v1259, %v1300
    %v1309 = vadd.f32 %v1260, %v1301
    %v1310 = vadd.f32 %v1261, %v1302
    %v1311 = vadd.f32 %v1262, %v1303
    %v1312 = vadd.f32 %v1263, %v1304
    %v1313 = vadd.f32 %v1264, %v1305
    %v1314 = vadd.f32 %v1265, %v1306
    %s1315 = scalar_lea.vmem [#allocation3], 320
    %v1316 = vld [vmem:[%s1315] sm:$0xff]
    %v1317 = vld [vmem:[%s1315 + $0x8] sm:$0xff]
    %v1318 = vld [vmem:[%s1315 + $0x10] sm:$0xff]
    %v1319 = vld [vmem:[%s1315 + $0x18] sm:$0xff]
    %v1320 = vld [vmem:[%s1315 + $0x20] sm:$0xff]
    %v1321 = vld [vmem:[%s1315 + $0x28] sm:$0xff]
    %v1322 = vld [vmem:[%s1315 + $0x30] sm:$0xff]
    %v1323 = vld [vmem:[%s1315 + $0x38] sm:$0xff]
    %v1332 = vunpack.c.l.b16 %v1316
    %v1333 = vunpack.c.h.b16 %v1316
    %v1334 = vunpack.c.l.b16 %v1317
    %v1335 = vunpack.c.h.b16 %v1317
    %v1336 = vunpack.c.l.b16 %v1318
    %v1337 = vunpack.c.h.b16 %v1318
    %v1338 = vunpack.c.l.b16 %v1319
    %v1339 = vunpack.c.h.b16 %v1319
    %v1340 = vunpack.c.l.b16 %v1320
    %v1341 = vunpack.c.h.b16 %v1320
    %v1342 = vunpack.c.l.b16 %v1321
    %v1343 = vunpack.c.h.b16 %v1321
    %v1344 = vunpack.c.l.b16 %v1322
    %v1345 = vunpack.c.h.b16 %v1322
    %v1346 = vunpack.c.l.b16 %v1323
    %v1347 = vunpack.c.h.b16 %v1323
    %v1348 = vpack.c.b16 %v1334, %v1332
    %v1349 = vpack.c.b16 %v1335, %v1333
    %v1350 = vpack.c.b16 %v1338, %v1336
    %v1351 = vpack.c.b16 %v1339, %v1337
    %v1352 = vpack.c.b16 %v1342, %v1340
    %v1353 = vpack.c.b16 %v1343, %v1341
    %v1354 = vpack.c.b16 %v1346, %v1344
    %v1355 = vpack.c.b16 %v1347, %v1345
    %1364 = vmatpush.bf16.msra.mxu0 %v241
    %1365 = vmatpush.bf16.msra.mxu0 %v240
    %1366 = vmatpush.bf16.msra.mxu0 %v239
    %1367 = vmatpush.bf16.msra.mxu0 %v238
    %1368 = vmatpush.bf16.msra.mxu0 %v237
    %1369 = vmatpush.bf16.msra.mxu0 %v236
    %1370 = vmatpush.bf16.msra.mxu0 %v235
    %1371 = vmatpush.bf16.msra.mxu0 %v234
    %1372 = vmatmul.bf16.gmra.mxu0 %v1348
    %v1373 = vpop.f32.mrf.mxu0
    %v1374 = vadd.f32 0.0, %v1373
    %v1375 = vpop.f32.mrf.mxu0
    %v1376 = vadd.f32 0.0, %v1375
    %1377 = vmatmul.bf16.gmra.mxu0 %v1350
    %v1378 = vpop.f32.mrf.mxu0
    %v1379 = vadd.f32 0.0, %v1378
    %v1380 = vpop.f32.mrf.mxu0
    %v1381 = vadd.f32 0.0, %v1380
    %1382 = vmatmul.bf16.gmra.mxu0 %v1352
    %v1383 = vpop.f32.mrf.mxu0
    %v1384 = vadd.f32 0.0, %v1383
    %v1385 = vpop.f32.mrf.mxu0
    %v1386 = vadd.f32 0.0, %v1385
    %1387 = vmatmul.bf16.gmra.mxu0 %v1354
    %v1388 = vpop.f32.mrf.mxu0
    %v1389 = vadd.f32 0.0, %v1388
    %v1390 = vpop.f32.mrf.mxu0
    %v1391 = vadd.f32 0.0, %v1390
    %1392 = vdwg.mxu0
    %1393 = vmatpush.bf16.msra.mxu0 %v249
    %1394 = vmatpush.bf16.msra.mxu0 %v248
    %1395 = vmatpush.bf16.msra.mxu0 %v247
    %1396 = vmatpush.bf16.msra.mxu0 %v246
    %1397 = vmatpush.bf16.msra.mxu0 %v245
    %1398 = vmatpush.bf16.msra.mxu0 %v244
    %1399 = vmatpush.bf16.msra.mxu0 %v243
    %1400 = vmatpush.bf16.msra.mxu0 %v242
    %1401 = vmatmul.bf16.gmra.mxu0 %v1349
    %v1402 = vpop.f32.mrf.mxu0
    %v1403 = vadd.f32 %v1374, %v1402
    %v1404 = vpop.f32.mrf.mxu0
    %v1405 = vadd.f32 %v1376, %v1404
    %1406 = vmatmul.bf16.gmra.mxu0 %v1351
    %v1407 = vpop.f32.mrf.mxu0
    %v1408 = vadd.f32 %v1379, %v1407
    %v1409 = vpop.f32.mrf.mxu0
    %v1410 = vadd.f32 %v1381, %v1409
    %1411 = vmatmul.bf16.gmra.mxu0 %v1353
    %v1412 = vpop.f32.mrf.mxu0
    %v1413 = vadd.f32 %v1384, %v1412
    %v1414 = vpop.f32.mrf.mxu0
    %v1415 = vadd.f32 %v1386, %v1414
    %1416 = vmatmul.bf16.gmra.mxu0 %v1355
    %v1417 = vpop.f32.mrf.mxu0
    %v1418 = vadd.f32 %v1389, %v1417
    %v1419 = vpop.f32.mrf.mxu0
    %v1420 = vadd.f32 %v1391, %v1419
    %1421 = vdwg.mxu0
    %s1422 = scalar_lea.vmem [#allocation7], 10
    %v1423 = vld [vmem:[%s1422] sm:$0x3]
    %1425 = vset.pattern.permute.xlu0 0
    %1426 = vperm.xlu0 %1425, %v1403
    %v1427 = vpop.permute.xlu0 %1426
    %1430 = vset.pattern.permute.xlu0 0
    %1431 = vperm.xlu0 %1430, %v1405
    %v1432 = vpop.permute.xlu0 %1431
    %1435 = vset.pattern.permute.xlu0 0
    %1436 = vperm.xlu0 %1435, %v1408
    %v1437 = vpop.permute.xlu0 %1436
    %1440 = vset.pattern.permute.xlu0 0
    %1441 = vperm.xlu0 %1440, %v1410
    %v1442 = vpop.permute.xlu0 %1441
    %1445 = vset.pattern.permute.xlu0 0
    %1446 = vperm.xlu0 %1445, %v1413
    %v1447 = vpop.permute.xlu0 %1446
    %1450 = vset.pattern.permute.xlu0 0
    %1451 = vperm.xlu0 %1450, %v1415
    %v1452 = vpop.permute.xlu0 %1451
    %1455 = vset.pattern.permute.xlu0 0
    %1456 = vperm.xlu0 %1455, %v1418
    %v1457 = vpop.permute.xlu0 %1456
    %1460 = vset.pattern.permute.xlu0 0
    %1461 = vperm.xlu0 %1460, %v1420
    %v1462 = vpop.permute.xlu0 %1461
    %v1464 = vperm.slane %v1423, 0
    %v1465 = vmul.f32 %v1427, %v1464
    %v1466 = vmul.f32 %v1432, %v1464
    %v1467 = vmul.f32 %v1437, %v1464
    %v1468 = vmul.f32 %v1442, %v1464
    %v1469 = vmul.f32 %v1447, %v1464
    %v1470 = vmul.f32 %v1452, %v1464
    %v1471 = vmul.f32 %v1457, %v1464
    %v1472 = vmul.f32 %v1462, %v1464
    %v1473 = vadd.f32 %v1307, %v1465
    %v1474 = vadd.f32 %v1308, %v1466
    %v1475 = vadd.f32 %v1309, %v1467
    %v1476 = vadd.f32 %v1310, %v1468
    %v1477 = vadd.f32 %v1311, %v1469
    %v1478 = vadd.f32 %v1312, %v1470
    %v1479 = vadd.f32 %v1313, %v1471
    %v1480 = vadd.f32 %v1314, %v1472
    %1481 = vset.pattern.permute.xlu0 1
    %1482 = vperm.xlu0 %1481, %v1403
    %v1483 = vpop.permute.xlu0 %1482
    %1485 = vset.pattern.permute.xlu0 1
    %1486 = vperm.xlu0 %1485, %v1405
    %v1487 = vpop.permute.xlu0 %1486
    %1489 = vset.pattern.permute.xlu0 1
    %1490 = vperm.xlu0 %1489, %v1408
    %v1491 = vpop.permute.xlu0 %1490
    %1493 = vset.pattern.permute.xlu0 1
    %1494 = vperm.xlu0 %1493, %v1410
    %v1495 = vpop.permute.xlu0 %1494
    %1497 = vset.pattern.permute.xlu0 1
    %1498 = vperm.xlu0 %1497, %v1413
    %v1499 = vpop.permute.xlu0 %1498
    %1501 = vset.pattern.permute.xlu0 1
    %1502 = vperm.xlu0 %1501, %v1415
    %v1503 = vpop.permute.xlu0 %1502
    %1505 = vset.pattern.permute.xlu0 1
    %1506 = vperm.xlu0 %1505, %v1418
    %v1507 = vpop.permute.xlu0 %1506
    %1509 = vset.pattern.permute.xlu0 1
    %1510 = vperm.xlu0 %1509, %v1420
    %v1511 = vpop.permute.xlu0 %1510
    %v1513 = vperm.slane %v1423, 1
    %v1514 = vmul.f32 %v1483, %v1513
    %v1515 = vmul.f32 %v1487, %v1513
    %v1516 = vmul.f32 %v1491, %v1513
    %v1517 = vmul.f32 %v1495, %v1513
    %v1518 = vmul.f32 %v1499, %v1513
    %v1519 = vmul.f32 %v1503, %v1513
    %v1520 = vmul.f32 %v1507, %v1513
    %v1521 = vmul.f32 %v1511, %v1513
    %v1522 = vadd.f32 %v1473, %v1514
    %v1523 = vadd.f32 %v1474, %v1515
    %v1524 = vadd.f32 %v1475, %v1516
    %v1525 = vadd.f32 %v1476, %v1517
    %v1526 = vadd.f32 %v1477, %v1518
    %v1527 = vadd.f32 %v1478, %v1519
    %v1528 = vadd.f32 %v1479, %v1520
    %v1529 = vadd.f32 %v1480, %v1521
    %s1530 = scalar_lea.vmem [#allocation3], 384
    %v1531 = vld [vmem:[%s1530] sm:$0xff]
    %v1532 = vld [vmem:[%s1530 + $0x8] sm:$0xff]
    %v1533 = vld [vmem:[%s1530 + $0x10] sm:$0xff]
    %v1534 = vld [vmem:[%s1530 + $0x18] sm:$0xff]
    %v1535 = vld [vmem:[%s1530 + $0x20] sm:$0xff]
    %v1536 = vld [vmem:[%s1530 + $0x28] sm:$0xff]
    %v1537 = vld [vmem:[%s1530 + $0x30] sm:$0xff]
    %v1538 = vld [vmem:[%s1530 + $0x38] sm:$0xff]
    %v1547 = vunpack.c.l.b16 %v1531
    %v1548 = vunpack.c.h.b16 %v1531
    %v1549 = vunpack.c.l.b16 %v1532
    %v1550 = vunpack.c.h.b16 %v1532
    %v1551 = vunpack.c.l.b16 %v1533
    %v1552 = vunpack.c.h.b16 %v1533
    %v1553 = vunpack.c.l.b16 %v1534
    %v1554 = vunpack.c.h.b16 %v1534
    %v1555 = vunpack.c.l.b16 %v1535
    %v1556 = vunpack.c.h.b16 %v1535
    %v1557 = vunpack.c.l.b16 %v1536
    %v1558 = vunpack.c.h.b16 %v1536
    %v1559 = vunpack.c.l.b16 %v1537
    %v1560 = vunpack.c.h.b16 %v1537
    %v1561 = vunpack.c.l.b16 %v1538
    %v1562 = vunpack.c.h.b16 %v1538
    %v1563 = vpack.c.b16 %v1549, %v1547
    %v1564 = vpack.c.b16 %v1550, %v1548
    %v1565 = vpack.c.b16 %v1553, %v1551
    %v1566 = vpack.c.b16 %v1554, %v1552
    %v1567 = vpack.c.b16 %v1557, %v1555
    %v1568 = vpack.c.b16 %v1558, %v1556
    %v1569 = vpack.c.b16 %v1561, %v1559
    %v1570 = vpack.c.b16 %v1562, %v1560
    %1579 = vmatpush.bf16.msra.mxu0 %v241
    %1580 = vmatpush.bf16.msra.mxu0 %v240
    %1581 = vmatpush.bf16.msra.mxu0 %v239
    %1582 = vmatpush.bf16.msra.mxu0 %v238
    %1583 = vmatpush.bf16.msra.mxu0 %v237
    %1584 = vmatpush.bf16.msra.mxu0 %v236
    %1585 = vmatpush.bf16.msra.mxu0 %v235
    %1586 = vmatpush.bf16.msra.mxu0 %v234
    %1587 = vmatmul.bf16.gmra.mxu0 %v1563
    %v1588 = vpop.f32.mrf.mxu0
    %v1589 = vadd.f32 0.0, %v1588
    %v1590 = vpop.f32.mrf.mxu0
    %v1591 = vadd.f32 0.0, %v1590
    %1592 = vmatmul.bf16.gmra.mxu0 %v1565
    %v1593 = vpop.f32.mrf.mxu0
    %v1594 = vadd.f32 0.0, %v1593
    %v1595 = vpop.f32.mrf.mxu0
    %v1596 = vadd.f32 0.0, %v1595
    %1597 = vmatmul.bf16.gmra.mxu0 %v1567
    %v1598 = vpop.f32.mrf.mxu0
    %v1599 = vadd.f32 0.0, %v1598
    %v1600 = vpop.f32.mrf.mxu0
    %v1601 = vadd.f32 0.0, %v1600
    %1602 = vmatmul.bf16.gmra.mxu0 %v1569
    %v1603 = vpop.f32.mrf.mxu0
    %v1604 = vadd.f32 0.0, %v1603
    %v1605 = vpop.f32.mrf.mxu0
    %v1606 = vadd.f32 0.0, %v1605
    %1607 = vdwg.mxu0
    %1608 = vmatpush.bf16.msra.mxu0 %v249
    %1609 = vmatpush.bf16.msra.mxu0 %v248
    %1610 = vmatpush.bf16.msra.mxu0 %v247
    %1611 = vmatpush.bf16.msra.mxu0 %v246
    %1612 = vmatpush.bf16.msra.mxu0 %v245
    %1613 = vmatpush.bf16.msra.mxu0 %v244
    %1614 = vmatpush.bf16.msra.mxu0 %v243
    %1615 = vmatpush.bf16.msra.mxu0 %v242
    %1616 = vmatmul.bf16.gmra.mxu0 %v1564
    %v1617 = vpop.f32.mrf.mxu0
    %v1618 = vadd.f32 %v1589, %v1617
    %v1619 = vpop.f32.mrf.mxu0
    %v1620 = vadd.f32 %v1591, %v1619
    %1621 = vmatmul.bf16.gmra.mxu0 %v1566
    %v1622 = vpop.f32.mrf.mxu0
    %v1623 = vadd.f32 %v1594, %v1622
    %v1624 = vpop.f32.mrf.mxu0
    %v1625 = vadd.f32 %v1596, %v1624
    %1626 = vmatmul.bf16.gmra.mxu0 %v1568
    %v1627 = vpop.f32.mrf.mxu0
    %v1628 = vadd.f32 %v1599, %v1627
    %v1629 = vpop.f32.mrf.mxu0
    %v1630 = vadd.f32 %v1601, %v1629
    %1631 = vmatmul.bf16.gmra.mxu0 %v1570
    %v1632 = vpop.f32.mrf.mxu0
    %v1633 = vadd.f32 %v1604, %v1632
    %v1634 = vpop.f32.mrf.mxu0
    %v1635 = vadd.f32 %v1606, %v1634
    %1636 = vdwg.mxu0
    %s1637 = scalar_lea.vmem [#allocation7], 12
    %v1638 = vld [vmem:[%s1637] sm:$0x3]
    %1640 = vset.pattern.permute.xlu0 0
    %1641 = vperm.xlu0 %1640, %v1618
    %v1642 = vpop.permute.xlu0 %1641
    %1645 = vset.pattern.permute.xlu0 0
    %1646 = vperm.xlu0 %1645, %v1620
    %v1647 = vpop.permute.xlu0 %1646
    %1650 = vset.pattern.permute.xlu0 0
    %1651 = vperm.xlu0 %1650, %v1623
    %v1652 = vpop.permute.xlu0 %1651
    %1655 = vset.pattern.permute.xlu0 0
    %1656 = vperm.xlu0 %1655, %v1625
    %v1657 = vpop.permute.xlu0 %1656
    %1660 = vset.pattern.permute.xlu0 0
    %1661 = vperm.xlu0 %1660, %v1628
    %v1662 = vpop.permute.xlu0 %1661
    %1665 = vset.pattern.permute.xlu0 0
    %1666 = vperm.xlu0 %1665, %v1630
    %v1667 = vpop.permute.xlu0 %1666
    %1670 = vset.pattern.permute.xlu0 0
    %1671 = vperm.xlu0 %1670, %v1633
    %v1672 = vpop.permute.xlu0 %1671
    %1675 = vset.pattern.permute.xlu0 0
    %1676 = vperm.xlu0 %1675, %v1635
    %v1677 = vpop.permute.xlu0 %1676
    %v1679 = vperm.slane %v1638, 0
    %v1680 = vmul.f32 %v1642, %v1679
    %v1681 = vmul.f32 %v1647, %v1679
    %v1682 = vmul.f32 %v1652, %v1679
    %v1683 = vmul.f32 %v1657, %v1679
    %v1684 = vmul.f32 %v1662, %v1679
    %v1685 = vmul.f32 %v1667, %v1679
    %v1686 = vmul.f32 %v1672, %v1679
    %v1687 = vmul.f32 %v1677, %v1679
    %v1688 = vadd.f32 %v1522, %v1680
    %v1689 = vadd.f32 %v1523, %v1681
    %v1690 = vadd.f32 %v1524, %v1682
    %v1691 = vadd.f32 %v1525, %v1683
    %v1692 = vadd.f32 %v1526, %v1684
    %v1693 = vadd.f32 %v1527, %v1685
    %v1694 = vadd.f32 %v1528, %v1686
    %v1695 = vadd.f32 %v1529, %v1687
    %1696 = vset.pattern.permute.xlu0 1
    %1697 = vperm.xlu0 %1696, %v1618
    %v1698 = vpop.permute.xlu0 %1697
    %1700 = vset.pattern.permute.xlu0 1
    %1701 = vperm.xlu0 %1700, %v1620
    %v1702 = vpop.permute.xlu0 %1701
    %1704 = vset.pattern.permute.xlu0 1
    %1705 = vperm.xlu0 %1704, %v1623
    %v1706 = vpop.permute.xlu0 %1705
    %1708 = vset.pattern.permute.xlu0 1
    %1709 = vperm.xlu0 %1708, %v1625
    %v1710 = vpop.permute.xlu0 %1709
    %1712 = vset.pattern.permute.xlu0 1
    %1713 = vperm.xlu0 %1712, %v1628
    %v1714 = vpop.permute.xlu0 %1713
    %1716 = vset.pattern.permute.xlu0 1
    %1717 = vperm.xlu0 %1716, %v1630
    %v1718 = vpop.permute.xlu0 %1717
    %1720 = vset.pattern.permute.xlu0 1
    %1721 = vperm.xlu0 %1720, %v1633
    %v1722 = vpop.permute.xlu0 %1721
    %1724 = vset.pattern.permute.xlu0 1
    %1725 = vperm.xlu0 %1724, %v1635
    %v1726 = vpop.permute.xlu0 %1725
    %v1728 = vperm.slane %v1638, 1
    %v1729 = vmul.f32 %v1698, %v1728
    %v1730 = vmul.f32 %v1702, %v1728
    %v1731 = vmul.f32 %v1706, %v1728
    %v1732 = vmul.f32 %v1710, %v1728
    %v1733 = vmul.f32 %v1714, %v1728
    %v1734 = vmul.f32 %v1718, %v1728
    %v1735 = vmul.f32 %v1722, %v1728
    %v1736 = vmul.f32 %v1726, %v1728
    %v1737 = vadd.f32 %v1688, %v1729
    %v1738 = vadd.f32 %v1689, %v1730
    %v1739 = vadd.f32 %v1690, %v1731
    %v1740 = vadd.f32 %v1691, %v1732
    %v1741 = vadd.f32 %v1692, %v1733
    %v1742 = vadd.f32 %v1693, %v1734
    %v1743 = vadd.f32 %v1694, %v1735
    %v1744 = vadd.f32 %v1695, %v1736
    %s1745 = scalar_lea.vmem [#allocation3], 448
    %v1746 = vld [vmem:[%s1745] sm:$0xff]
    %v1747 = vld [vmem:[%s1745 + $0x8] sm:$0xff]
    %v1748 = vld [vmem:[%s1745 + $0x10] sm:$0xff]
    %v1749 = vld [vmem:[%s1745 + $0x18] sm:$0xff]
    %v1750 = vld [vmem:[%s1745 + $0x20] sm:$0xff]
    %v1751 = vld [vmem:[%s1745 + $0x28] sm:$0xff]
    %v1752 = vld [vmem:[%s1745 + $0x30] sm:$0xff]
    %v1753 = vld [vmem:[%s1745 + $0x38] sm:$0xff]
    %v1762 = vunpack.c.l.b16 %v1746
    %v1763 = vunpack.c.h.b16 %v1746
    %v1764 = vunpack.c.l.b16 %v1747
    %v1765 = vunpack.c.h.b16 %v1747
    %v1766 = vunpack.c.l.b16 %v1748
    %v1767 = vunpack.c.h.b16 %v1748
    %v1768 = vunpack.c.l.b16 %v1749
    %v1769 = vunpack.c.h.b16 %v1749
    %v1770 = vunpack.c.l.b16 %v1750
    %v1771 = vunpack.c.h.b16 %v1750
    %v1772 = vunpack.c.l.b16 %v1751
    %v1773 = vunpack.c.h.b16 %v1751
    %v1774 = vunpack.c.l.b16 %v1752
    %v1775 = vunpack.c.h.b16 %v1752
    %v1776 = vunpack.c.l.b16 %v1753
    %v1777 = vunpack.c.h.b16 %v1753
    %v1778 = vpack.c.b16 %v1764, %v1762
    %v1779 = vpack.c.b16 %v1765, %v1763
    %v1780 = vpack.c.b16 %v1768, %v1766
    %v1781 = vpack.c.b16 %v1769, %v1767
    %v1782 = vpack.c.b16 %v1772, %v1770
    %v1783 = vpack.c.b16 %v1773, %v1771
    %v1784 = vpack.c.b16 %v1776, %v1774
    %v1785 = vpack.c.b16 %v1777, %v1775
    %1794 = vmatpush.bf16.msra.mxu0 %v241
    %1795 = vmatpush.bf16.msra.mxu0 %v240
    %1796 = vmatpush.bf16.msra.mxu0 %v239
    %1797 = vmatpush.bf16.msra.mxu0 %v238
    %1798 = vmatpush.bf16.msra.mxu0 %v237
    %1799 = vmatpush.bf16.msra.mxu0 %v236
    %1800 = vmatpush.bf16.msra.mxu0 %v235
    %1801 = vmatpush.bf16.msra.mxu0 %v234
    %1802 = vmatmul.bf16.gmra.mxu0 %v1778
    %v1803 = vpop.f32.mrf.mxu0
    %v1804 = vadd.f32 0.0, %v1803
    %v1805 = vpop.f32.mrf.mxu0
    %v1806 = vadd.f32 0.0, %v1805
    %1807 = vmatmul.bf16.gmra.mxu0 %v1780
    %v1808 = vpop.f32.mrf.mxu0
    %v1809 = vadd.f32 0.0, %v1808
    %v1810 = vpop.f32.mrf.mxu0
    %v1811 = vadd.f32 0.0, %v1810
    %1812 = vmatmul.bf16.gmra.mxu0 %v1782
    %v1813 = vpop.f32.mrf.mxu0
    %v1814 = vadd.f32 0.0, %v1813
    %v1815 = vpop.f32.mrf.mxu0
    %v1816 = vadd.f32 0.0, %v1815
    %1817 = vmatmul.bf16.gmra.mxu0 %v1784
    %v1818 = vpop.f32.mrf.mxu0
    %v1819 = vadd.f32 0.0, %v1818
    %v1820 = vpop.f32.mrf.mxu0
    %v1821 = vadd.f32 0.0, %v1820
    %1822 = vdwg.mxu0
    %1823 = vmatpush.bf16.msra.mxu0 %v249
    %1824 = vmatpush.bf16.msra.mxu0 %v248
    %1825 = vmatpush.bf16.msra.mxu0 %v247
    %1826 = vmatpush.bf16.msra.mxu0 %v246
    %1827 = vmatpush.bf16.msra.mxu0 %v245
    %1828 = vmatpush.bf16.msra.mxu0 %v244
    %1829 = vmatpush.bf16.msra.mxu0 %v243
    %1830 = vmatpush.bf16.msra.mxu0 %v242
    %1831 = vmatmul.bf16.gmra.mxu0 %v1779
    %v1832 = vpop.f32.mrf.mxu0
    %v1833 = vadd.f32 %v1804, %v1832
    %v1834 = vpop.f32.mrf.mxu0
    %v1835 = vadd.f32 %v1806, %v1834
    %1836 = vmatmul.bf16.gmra.mxu0 %v1781
    %v1837 = vpop.f32.mrf.mxu0
    %v1838 = vadd.f32 %v1809, %v1837
    %v1839 = vpop.f32.mrf.mxu0
    %v1840 = vadd.f32 %v1811, %v1839
    %1841 = vmatmul.bf16.gmra.mxu0 %v1783
    %v1842 = vpop.f32.mrf.mxu0
    %v1843 = vadd.f32 %v1814, %v1842
    %v1844 = vpop.f32.mrf.mxu0
    %v1845 = vadd.f32 %v1816, %v1844
    %1846 = vmatmul.bf16.gmra.mxu0 %v1785
    %v1847 = vpop.f32.mrf.mxu0
    %v1848 = vadd.f32 %v1819, %v1847
    %v1849 = vpop.f32.mrf.mxu0
    %v1850 = vadd.f32 %v1821, %v1849
    %1851 = vdwg.mxu0
    %s1852 = scalar_lea.vmem [#allocation7], 14
    %v1853 = vld [vmem:[%s1852] sm:$0x3]
    %1855 = vset.pattern.permute.xlu0 0
    %1856 = vperm.xlu0 %1855, %v1833
    %v1857 = vpop.permute.xlu0 %1856
    %1860 = vset.pattern.permute.xlu0 0
    %1861 = vperm.xlu0 %1860, %v1835
    %v1862 = vpop.permute.xlu0 %1861
    %1865 = vset.pattern.permute.xlu0 0
    %1866 = vperm.xlu0 %1865, %v1838
    %v1867 = vpop.permute.xlu0 %1866
    %1870 = vset.pattern.permute.xlu0 0
    %1871 = vperm.xlu0 %1870, %v1840
    %v1872 = vpop.permute.xlu0 %1871
    %1875 = vset.pattern.permute.xlu0 0
    %1876 = vperm.xlu0 %1875, %v1843
    %v1877 = vpop.permute.xlu0 %1876
    %1880 = vset.pattern.permute.xlu0 0
    %1881 = vperm.xlu0 %1880, %v1845
    %v1882 = vpop.permute.xlu0 %1881
    %1885 = vset.pattern.permute.xlu0 0
    %1886 = vperm.xlu0 %1885, %v1848
    %v1887 = vpop.permute.xlu0 %1886
    %1890 = vset.pattern.permute.xlu0 0
    %1891 = vperm.xlu0 %1890, %v1850
    %v1892 = vpop.permute.xlu0 %1891
    %v1894 = vperm.slane %v1853, 0
    %v1895 = vmul.f32 %v1857, %v1894
    %v1896 = vmul.f32 %v1862, %v1894
    %v1897 = vmul.f32 %v1867, %v1894
    %v1898 = vmul.f32 %v1872, %v1894
    %v1899 = vmul.f32 %v1877, %v1894
    %v1900 = vmul.f32 %v1882, %v1894
    %v1901 = vmul.f32 %v1887, %v1894
    %v1902 = vmul.f32 %v1892, %v1894
    %v1903 = vadd.f32 %v1737, %v1895
    %v1904 = vadd.f32 %v1738, %v1896
    %v1905 = vadd.f32 %v1739, %v1897
    %v1906 = vadd.f32 %v1740, %v1898
    %v1907 = vadd.f32 %v1741, %v1899
    %v1908 = vadd.f32 %v1742, %v1900
    %v1909 = vadd.f32 %v1743, %v1901
    %v1910 = vadd.f32 %v1744, %v1902
    %1911 = vset.pattern.permute.xlu0 1
    %1912 = vperm.xlu0 %1911, %v1833
    %v1913 = vpop.permute.xlu0 %1912
    %1915 = vset.pattern.permute.xlu0 1
    %1916 = vperm.xlu0 %1915, %v1835
    %v1917 = vpop.permute.xlu0 %1916
    %1919 = vset.pattern.permute.xlu0 1
    %1920 = vperm.xlu0 %1919, %v1838
    %v1921 = vpop.permute.xlu0 %1920
    %1923 = vset.pattern.permute.xlu0 1
    %1924 = vperm.xlu0 %1923, %v1840
    %v1925 = vpop.permute.xlu0 %1924
    %1927 = vset.pattern.permute.xlu0 1
    %1928 = vperm.xlu0 %1927, %v1843
    %v1929 = vpop.permute.xlu0 %1928
    %1931 = vset.pattern.permute.xlu0 1
    %1932 = vperm.xlu0 %1931, %v1845
    %v1933 = vpop.permute.xlu0 %1932
    %1935 = vset.pattern.permute.xlu0 1
    %1936 = vperm.xlu0 %1935, %v1848
    %v1937 = vpop.permute.xlu0 %1936
    %1939 = vset.pattern.permute.xlu0 1
    %1940 = vperm.xlu0 %1939, %v1850
    %v1941 = vpop.permute.xlu0 %1940
    %v1943 = vperm.slane %v1853, 1
    %v1944 = vmul.f32 %v1913, %v1943
    %v1945 = vmul.f32 %v1917, %v1943
    %v1946 = vmul.f32 %v1921, %v1943
    %v1947 = vmul.f32 %v1925, %v1943
    %v1948 = vmul.f32 %v1929, %v1943
    %v1949 = vmul.f32 %v1933, %v1943
    %v1950 = vmul.f32 %v1937, %v1943
    %v1951 = vmul.f32 %v1941, %v1943
    %v1952 = vadd.f32 %v1903, %v1944
    %v1953 = vadd.f32 %v1904, %v1945
    %v1954 = vadd.f32 %v1905, %v1946
    %v1955 = vadd.f32 %v1906, %v1947
    %v1956 = vadd.f32 %v1907, %v1948
    %v1957 = vadd.f32 %v1908, %v1949
    %v1958 = vadd.f32 %v1909, %v1950
    %v1959 = vadd.f32 %v1910, %v1951
    %s1960 = scalar_lea.vmem [#allocation3], 512
    %v1961 = vld [vmem:[%s1960] sm:$0xff]
    %v1962 = vld [vmem:[%s1960 + $0x8] sm:$0xff]
    %v1963 = vld [vmem:[%s1960 + $0x10] sm:$0xff]
    %v1964 = vld [vmem:[%s1960 + $0x18] sm:$0xff]
    %v1965 = vld [vmem:[%s1960 + $0x20] sm:$0xff]
    %v1966 = vld [vmem:[%s1960 + $0x28] sm:$0xff]
    %v1967 = vld [vmem:[%s1960 + $0x30] sm:$0xff]
    %v1968 = vld [vmem:[%s1960 + $0x38] sm:$0xff]
    %v1977 = vunpack.c.l.b16 %v1961
    %v1978 = vunpack.c.h.b16 %v1961
    %v1979 = vunpack.c.l.b16 %v1962
    %v1980 = vunpack.c.h.b16 %v1962
    %v1981 = vunpack.c.l.b16 %v1963
    %v1982 = vunpack.c.h.b16 %v1963
    %v1983 = vunpack.c.l.b16 %v1964
    %v1984 = vunpack.c.h.b16 %v1964
    %v1985 = vunpack.c.l.b16 %v1965
    %v1986 = vunpack.c.h.b16 %v1965
    %v1987 = vunpack.c.l.b16 %v1966
    %v1988 = vunpack.c.h.b16 %v1966
    %v1989 = vunpack.c.l.b16 %v1967
    %v1990 = vunpack.c.h.b16 %v1967
    %v1991 = vunpack.c.l.b16 %v1968
    %v1992 = vunpack.c.h.b16 %v1968
    %v1993 = vpack.c.b16 %v1979, %v1977
    %v1994 = vpack.c.b16 %v1980, %v1978
    %v1995 = vpack.c.b16 %v1983, %v1981
    %v1996 = vpack.c.b16 %v1984, %v1982
    %v1997 = vpack.c.b16 %v1987, %v1985
    %v1998 = vpack.c.b16 %v1988, %v1986
    %v1999 = vpack.c.b16 %v1991, %v1989
    %v2000 = vpack.c.b16 %v1992, %v1990
    %2009 = vmatpush.bf16.msra.mxu0 %v241
    %2010 = vmatpush.bf16.msra.mxu0 %v240
    %2011 = vmatpush.bf16.msra.mxu0 %v239
    %2012 = vmatpush.bf16.msra.mxu0 %v238
    %2013 = vmatpush.bf16.msra.mxu0 %v237
    %2014 = vmatpush.bf16.msra.mxu0 %v236
    %2015 = vmatpush.bf16.msra.mxu0 %v235
    %2016 = vmatpush.bf16.msra.mxu0 %v234
    %2017 = vmatmul.bf16.gmra.mxu0 %v1993
    %v2018 = vpop.f32.mrf.mxu0
    %v2019 = vadd.f32 0.0, %v2018
    %v2020 = vpop.f32.mrf.mxu0
    %v2021 = vadd.f32 0.0, %v2020
    %2022 = vmatmul.bf16.gmra.mxu0 %v1995
    %v2023 = vpop.f32.mrf.mxu0
    %v2024 = vadd.f32 0.0, %v2023
    %v2025 = vpop.f32.mrf.mxu0
    %v2026 = vadd.f32 0.0, %v2025
    %2027 = vmatmul.bf16.gmra.mxu0 %v1997
    %v2028 = vpop.f32.mrf.mxu0
    %v2029 = vadd.f32 0.0, %v2028
    %v2030 = vpop.f32.mrf.mxu0
    %v2031 = vadd.f32 0.0, %v2030
    %2032 = vmatmul.bf16.gmra.mxu0 %v1999
    %v2033 = vpop.f32.mrf.mxu0
    %v2034 = vadd.f32 0.0, %v2033
    %v2035 = vpop.f32.mrf.mxu0
    %v2036 = vadd.f32 0.0, %v2035
    %2037 = vdwg.mxu0
    %2038 = vmatpush.bf16.msra.mxu0 %v249
    %2039 = vmatpush.bf16.msra.mxu0 %v248
    %2040 = vmatpush.bf16.msra.mxu0 %v247
    %2041 = vmatpush.bf16.msra.mxu0 %v246
    %2042 = vmatpush.bf16.msra.mxu0 %v245
    %2043 = vmatpush.bf16.msra.mxu0 %v244
    %2044 = vmatpush.bf16.msra.mxu0 %v243
    %2045 = vmatpush.bf16.msra.mxu0 %v242
    %2046 = vmatmul.bf16.gmra.mxu0 %v1994
    %v2047 = vpop.f32.mrf.mxu0
    %v2048 = vadd.f32 %v2019, %v2047
    %v2049 = vpop.f32.mrf.mxu0
    %v2050 = vadd.f32 %v2021, %v2049
    %2051 = vmatmul.bf16.gmra.mxu0 %v1996
    %v2052 = vpop.f32.mrf.mxu0
    %v2053 = vadd.f32 %v2024, %v2052
    %v2054 = vpop.f32.mrf.mxu0
    %v2055 = vadd.f32 %v2026, %v2054
    %2056 = vmatmul.bf16.gmra.mxu0 %v1998
    %v2057 = vpop.f32.mrf.mxu0
    %v2058 = vadd.f32 %v2029, %v2057
    %v2059 = vpop.f32.mrf.mxu0
    %v2060 = vadd.f32 %v2031, %v2059
    %2061 = vmatmul.bf16.gmra.mxu0 %v2000
    %v2062 = vpop.f32.mrf.mxu0
    %v2063 = vadd.f32 %v2034, %v2062
    %v2064 = vpop.f32.mrf.mxu0
    %v2065 = vadd.f32 %v2036, %v2064
    %2066 = vdwg.mxu0
    %s2067 = scalar_lea.vmem [#allocation7], 16
    %v2068 = vld [vmem:[%s2067] sm:$0x3]
    %2070 = vset.pattern.permute.xlu0 0
    %2071 = vperm.xlu0 %2070, %v2048
    %v2072 = vpop.permute.xlu0 %2071
    %2075 = vset.pattern.permute.xlu0 0
    %2076 = vperm.xlu0 %2075, %v2050
    %v2077 = vpop.permute.xlu0 %2076
    %2080 = vset.pattern.permute.xlu0 0
    %2081 = vperm.xlu0 %2080, %v2053
    %v2082 = vpop.permute.xlu0 %2081
    %2085 = vset.pattern.permute.xlu0 0
    %2086 = vperm.xlu0 %2085, %v2055
    %v2087 = vpop.permute.xlu0 %2086
    %2090 = vset.pattern.permute.xlu0 0
    %2091 = vperm.xlu0 %2090, %v2058
    %v2092 = vpop.permute.xlu0 %2091
    %2095 = vset.pattern.permute.xlu0 0
    %2096 = vperm.xlu0 %2095, %v2060
    %v2097 = vpop.permute.xlu0 %2096
    %2100 = vset.pattern.permute.xlu0 0
    %2101 = vperm.xlu0 %2100, %v2063
    %v2102 = vpop.permute.xlu0 %2101
    %2105 = vset.pattern.permute.xlu0 0
    %2106 = vperm.xlu0 %2105, %v2065
    %v2107 = vpop.permute.xlu0 %2106
    %v2109 = vperm.slane %v2068, 0
    %v2110 = vmul.f32 %v2072, %v2109
    %v2111 = vmul.f32 %v2077, %v2109
    %v2112 = vmul.f32 %v2082, %v2109
    %v2113 = vmul.f32 %v2087, %v2109
    %v2114 = vmul.f32 %v2092, %v2109
    %v2115 = vmul.f32 %v2097, %v2109
    %v2116 = vmul.f32 %v2102, %v2109
    %v2117 = vmul.f32 %v2107, %v2109
    %v2118 = vadd.f32 %v1952, %v2110
    %v2119 = vadd.f32 %v1953, %v2111
    %v2120 = vadd.f32 %v1954, %v2112
    %v2121 = vadd.f32 %v1955, %v2113
    %v2122 = vadd.f32 %v1956, %v2114
    %v2123 = vadd.f32 %v1957, %v2115
    %v2124 = vadd.f32 %v1958, %v2116
    %v2125 = vadd.f32 %v1959, %v2117
    %2126 = vset.pattern.permute.xlu0 1
    %2127 = vperm.xlu0 %2126, %v2048
    %v2128 = vpop.permute.xlu0 %2127
    %2130 = vset.pattern.permute.xlu0 1
    %2131 = vperm.xlu0 %2130, %v2050
    %v2132 = vpop.permute.xlu0 %2131
    %2134 = vset.pattern.permute.xlu0 1
    %2135 = vperm.xlu0 %2134, %v2053
    %v2136 = vpop.permute.xlu0 %2135
    %2138 = vset.pattern.permute.xlu0 1
    %2139 = vperm.xlu0 %2138, %v2055
    %v2140 = vpop.permute.xlu0 %2139
    %2142 = vset.pattern.permute.xlu0 1
    %2143 = vperm.xlu0 %2142, %v2058
    %v2144 = vpop.permute.xlu0 %2143
    %2146 = vset.pattern.permute.xlu0 1
    %2147 = vperm.xlu0 %2146, %v2060
    %v2148 = vpop.permute.xlu0 %2147
    %2150 = vset.pattern.permute.xlu0 1
    %2151 = vperm.xlu0 %2150, %v2063
    %v2152 = vpop.permute.xlu0 %2151
    %2154 = vset.pattern.permute.xlu0 1
    %2155 = vperm.xlu0 %2154, %v2065
    %v2156 = vpop.permute.xlu0 %2155
    %v2158 = vperm.slane %v2068, 1
    %v2159 = vmul.f32 %v2128, %v2158
    %v2160 = vmul.f32 %v2132, %v2158
    %v2161 = vmul.f32 %v2136, %v2158
    %v2162 = vmul.f32 %v2140, %v2158
    %v2163 = vmul.f32 %v2144, %v2158
    %v2164 = vmul.f32 %v2148, %v2158
    %v2165 = vmul.f32 %v2152, %v2158
    %v2166 = vmul.f32 %v2156, %v2158
    %v2167 = vadd.f32 %v2118, %v2159
    %v2168 = vadd.f32 %v2119, %v2160
    %v2169 = vadd.f32 %v2120, %v2161
    %v2170 = vadd.f32 %v2121, %v2162
    %v2171 = vadd.f32 %v2122, %v2163
    %v2172 = vadd.f32 %v2123, %v2164
    %v2173 = vadd.f32 %v2124, %v2165
    %v2174 = vadd.f32 %v2125, %v2166
    %vm2175 = vcmask 261120
    %v2176 = vsel %vm2175, %v2167, 0.0
    %v2177 = vsel %vm2175, %v2168, 0.0
    %v2178 = vadd.f32 %v2176, %v2177
    %v2179 = vsel %vm2175, %v2169, 0.0
    %v2180 = vadd.f32 %v2178, %v2179
    %v2181 = vsel %vm2175, %v2170, 0.0
    %v2182 = vadd.f32 %v2180, %v2181
    %v2183 = vsel %vm2175, %v2171, 0.0
    %v2184 = vadd.f32 %v2182, %v2183
    %v2185 = vsel %vm2175, %v2172, 0.0
    %v2186 = vadd.f32 %v2184, %v2185
    %v2187 = vsel %vm2175, %v2173, 0.0
    %v2188 = vadd.f32 %v2186, %v2187
    %v2189 = vsel %vm2175, %v2174, 0.0
    %v2190 = vadd.f32 %v2188, %v2189
    %v2191 = vrot.slane %v2190, 4
    %v2192 = vadd.f32 %v2190, %v2191
    %v2193 = vrot.slane %v2192, 2
    %v2194 = vadd.f32 %v2192, %v2193
    %v2195 = vrot.slane %v2194, 1
    %v2196 = vadd.f32 %v2194, %v2195
    %v2197 = vrcp.pop 64.0
    %v2198 = vmul.f32 64.0, %v2197
    %v2199 = vsub.f32 1.0, %v2198
    %v2200 = vmul.f32 %v2197, %v2199
    %v2201 = vadd.f32 %v2197, %v2200
    %vm2202 = vweird.f32 %v2197
    %v2203 = vsel %vm2202, %v2197, %v2201
    %v2204 = vmul.f32 %v2196, %v2203
    %v2206 = vsel %vm2175, %v2204, 0
    %2208 = vmatpush.msra.mxu0 0.0
    %2209 = vmatpush.msra.mxu0 0.0
    %2210 = vmatpush.msra.mxu0 0.0
    %2211 = vmatpush.msra.mxu0 0.0
    %2212 = vmatpush.msra.mxu0 0.0
    %2213 = vmatpush.msra.mxu0 0.0
    %2214 = vmatpush.msra.mxu0 0.0
    %2215 = vmatpush.msra.mxu0 0.0
    %2216 = vmatpush.msra.mxu0 0.0
    %2217 = vmatpush.msra.mxu0 0.0
    %2218 = vmatpush.msra.mxu0 0.0
    %2219 = vmatpush.msra.mxu0 0.0
    %2220 = vmatpush.msra.mxu0 %v201
    %2221 = vmatpush.msra.mxu0 %v200
    %2222 = vmatpush.msra.mxu0 %v199
    %2223 = vmatpush.msra.mxu0 %v198
    %2224 = vmatmul.f32.gmra.mxu0 %v2206
    %v2225 = vpop.f32.mrf.mxu0
    %v2226 = vadd.f32 0.0, %v2225
    %2227 = vdwg.mxu0
    %v2228 = vperm.slane %v2226, 0
    %v2229 = vsub.f32 %v2167, %v2228
    %v2230 = vsub.f32 %v2168, %v2228
    %v2231 = vsub.f32 %v2169, %v2228
    %v2232 = vsub.f32 %v2170, %v2228
    %v2233 = vsub.f32 %v2171, %v2228
    %v2234 = vsub.f32 %v2172, %v2228
    %v2235 = vsub.f32 %v2173, %v2228
    %v2236 = vsub.f32 %v2174, %v2228
    %v2237 = vmul.f32 %v2229, %v2229
    %v2238 = vmul.f32 %v2230, %v2230
    %v2239 = vmul.f32 %v2231, %v2231
    %v2240 = vmul.f32 %v2232, %v2232
    %v2241 = vmul.f32 %v2233, %v2233
    %v2242 = vmul.f32 %v2234, %v2234
    %v2243 = vmul.f32 %v2235, %v2235
    %v2244 = vmul.f32 %v2236, %v2236
    %v2245 = vsel %vm2175, %v2237, 0.0
    %v2246 = vsel %vm2175, %v2238, 0.0
    %v2247 = vadd.f32 %v2245, %v2246
    %v2248 = vsel %vm2175, %v2239, 0.0
    %v2249 = vadd.f32 %v2247, %v2248
    %v2250 = vsel %vm2175, %v2240, 0.0
    %v2251 = vadd.f32 %v2249, %v2250
    %v2252 = vsel %vm2175, %v2241, 0.0
    %v2253 = vadd.f32 %v2251, %v2252
    %v2254 = vsel %vm2175, %v2242, 0.0
    %v2255 = vadd.f32 %v2253, %v2254
    %v2256 = vsel %vm2175, %v2243, 0.0
    %v2257 = vadd.f32 %v2255, %v2256
    %v2258 = vsel %vm2175, %v2244, 0.0
    %v2259 = vadd.f32 %v2257, %v2258
    %v2260 = vrot.slane %v2259, 4
    %v2261 = vadd.f32 %v2259, %v2260
    %v2262 = vrot.slane %v2261, 2
    %v2263 = vadd.f32 %v2261, %v2262
    %v2264 = vrot.slane %v2263, 1
    %v2265 = vadd.f32 %v2263, %v2264
    %v2266 = vmul.f32 %v2265, %v2203
    %v2268 = vsel %vm2175, %v2266, 0
    %2270 = vmatpush.msra.mxu0 0.0
    %2271 = vmatpush.msra.mxu0 0.0
    %2272 = vmatpush.msra.mxu0 0.0
    %2273 = vmatpush.msra.mxu0 0.0
    %2274 = vmatpush.msra.mxu0 0.0
    %2275 = vmatpush.msra.mxu0 0.0
    %2276 = vmatpush.msra.mxu0 0.0
    %2277 = vmatpush.msra.mxu0 0.0
    %2278 = vmatpush.msra.mxu0 0.0
    %2279 = vmatpush.msra.mxu0 0.0
    %2280 = vmatpush.msra.mxu0 0.0
    %2281 = vmatpush.msra.mxu0 0.0
    %2282 = vmatpush.msra.mxu0 %v201
    %2283 = vmatpush.msra.mxu0 %v200
    %2284 = vmatpush.msra.mxu0 %v199
    %2285 = vmatpush.msra.mxu0 %v198
    %2286 = vmatmul.f32.gmra.mxu0 %v2268
    %v2287 = vpop.f32.mrf.mxu0
    %v2288 = vadd.f32 1e-05, %v2287
    %2289 = vdwg.mxu0
    %v2290 = vrsqrt.pop %v2288
    %v2291 = vmul.f32 %v2290, %v2288
    %v2292 = vmul.f32 %v2291, %v2290
    %v2293 = vmul.f32 0.5, %v2292
    %v2294 = vsub.f32 1.5, %v2293
    %v2295 = vmul.f32 %v2290, %v2294
    %vm2296 = vweird.f32 %v2288
    %vm2297 = vweird.f32 %v2290
    %vm2298 = vmor %vm2296, %vm2297
    %v2299 = vsel %vm2298, %v2290, %v2295
    %v2300 = vperm.slane %v2299, 0
    %v2301 = vmul.f32 %v2229, %v2300
    %v2302 = vmul.f32 %v2230, %v2300
    %v2303 = vmul.f32 %v2231, %v2300
    %v2304 = vmul.f32 %v2232, %v2300
    %v2305 = vmul.f32 %v2233, %v2300
    %v2306 = vmul.f32 %v2234, %v2300
    %v2307 = vmul.f32 %v2235, %v2300
    %v2308 = vmul.f32 %v2236, %v2300
    %v2309 = vld [vmem:[#allocation8] sm:$0x1]
    %v2311 = vperm.slane %v2309, 0
    %v2313 = vmul.f32 %v2301, %v2311
    %v2314 = vmul.f32 %v2302, %v2311
    %v2315 = vmul.f32 %v2303, %v2311
    %v2316 = vmul.f32 %v2304, %v2311
    %v2317 = vmul.f32 %v2305, %v2311
    %v2318 = vmul.f32 %v2306, %v2311
    %v2319 = vmul.f32 %v2307, %v2311
    %v2320 = vmul.f32 %v2308, %v2311
    %s2321 = scalar_lea.vmem [#allocation8], 5
    %v2322 = vld [vmem:[%s2321] sm:$0x1]
    %v2324 = vperm.slane %v2322, 0
    %v2326 = vadd.f32 %v2313, %v2324
    %v2327 = vadd.f32 %v2314, %v2324
    %v2328 = vadd.f32 %v2315, %v2324
    %v2329 = vadd.f32 %v2316, %v2324
    %v2330 = vadd.f32 %v2317, %v2324
    %v2331 = vadd.f32 %v2318, %v2324
    %v2332 = vadd.f32 %v2319, %v2324
    %v2333 = vadd.f32 %v2320, %v2324
    %v2334 = vmax.f32 %v2326, 0.0
    %v2335 = vmax.f32 %v2327, 0.0
    %v2336 = vmax.f32 %v2328, 0.0
    %v2337 = vmax.f32 %v2329, 0.0
    %v2338 = vmax.f32 %v2330, 0.0
    %v2339 = vmax.f32 %v2331, 0.0
    %v2340 = vmax.f32 %v2332, 0.0
    %v2341 = vmax.f32 %v2333, 0.0
    %v2342 = vpack.c.bf16 %v2335, %v2334
    %v2343 = vpack.c.bf16 %v2337, %v2336
    %v2344 = vpack.c.bf16 %v2339, %v2338
    %v2345 = vpack.c.bf16 %v2341, %v2340
    %v2346 = vld [vmem:[%s3] sm:$0xf]
    %v2347 = vld [vmem:[%s3 + $0x4] sm:$0xf]
    %v2350 = vunpack.c.l.b16 %v2346
    %v2351 = vunpack.c.l.b16 %v2347
    %v2352 = vpack.c.b16 %v2351, %v2350
    %vm2353 = vcmask 523264
    %v2355 = vsel %vm2353, %v2352, 0
    %2357 = vmatpush.bf16.msra.mxu0 0
    %2358 = vmatpush.bf16.msra.mxu0 0
    %2359 = vmatpush.bf16.msra.mxu0 0
    %2360 = vmatpush.bf16.msra.mxu0 0
    %2361 = vmatpush.bf16.msra.mxu0 %v2345
    %2362 = vmatpush.bf16.msra.mxu0 %v2344
    %2363 = vmatpush.bf16.msra.mxu0 %v2343
    %2364 = vmatpush.bf16.msra.mxu0 %v2342
    %2365 = vmatmul.bf16.gmra.mxu0 %v2355
    %v2366 = vpop.f32.mrf.mxu0
    %v2367 = vadd.f32 0.0, %v2366
    %v2368 = vpop.f32.mrf.mxu0
    %v2369 = vadd.f32 0.0, %v2368
    %2370 = vdwg.mxu0
    %v2371 = vld [vmem:[%s8] sm:$0xf]
    %v2372 = vld [vmem:[%s8 + $0x4] sm:$0xf]
    %v2373 = vld [vmem:[%s8 + $0x8] sm:$0xf]
    %v2374 = vld [vmem:[%s8 + $0xc] sm:$0xf]
    %v2375 = vpack.c.bf16 %v2369, %v2367
    %s2376 = scalar_lea.vmem %s3, 8
    %v2377 = vld [vmem:[%s2376] sm:$0xf]
    %v2378 = vld [vmem:[%s2376 + $0x4] sm:$0xf]
    %v2381 = vunpack.c.l.b16 %v2377
    %v2382 = vunpack.c.l.b16 %v2378
    %v2383 = vpack.c.b16 %v2382, %v2381
    %v2385 = vsel %vm2353, %v2383, 0
    %2387 = vmatpush.bf16.msra.mxu0 0
    %2388 = vmatpush.bf16.msra.mxu0 0
    %2389 = vmatpush.bf16.msra.mxu0 0
    %2390 = vmatpush.bf16.msra.mxu0 0
    %2391 = vmatpush.bf16.msra.mxu0 %v2345
    %2392 = vmatpush.bf16.msra.mxu0 %v2344
    %2393 = vmatpush.bf16.msra.mxu0 %v2343
    %2394 = vmatpush.bf16.msra.mxu0 %v2342
    %2395 = vmatmul.bf16.gmra.mxu0 %v2385
    %v2396 = vpop.f32.mrf.mxu0
    %v2397 = vadd.f32 0.0, %v2396
    %v2398 = vpop.f32.mrf.mxu0
    %v2399 = vadd.f32 0.0, %v2398
    %2400 = vdwg.mxu0
    %s2401 = scalar_lea.vmem %s8, 16
    %v2402 = vld [vmem:[%s2401] sm:$0xf]
    %v2403 = vld [vmem:[%s2401 + $0x4] sm:$0xf]
    %v2404 = vld [vmem:[%s2401 + $0x8] sm:$0xf]
    %v2405 = vld [vmem:[%s2401 + $0xc] sm:$0xf]
    %v2406 = vpack.c.bf16 %v2399, %v2397
    %v2411 = vunpack.c.l.b16 %v2402
    %v2412 = vunpack.c.l.b16 %v2403
    %v2413 = vunpack.c.l.b16 %v2404
    %v2414 = vunpack.c.l.b16 %v2405
    %v2415 = vpack.c.b16 %v2412, %v2411
    %v2416 = vpack.c.b16 %v2414, %v2413
    %v2420 = vsel %vm2175, %v2406, 0
    %2422 = vmatpush.bf16.msra.mxu0 0
    %2423 = vmatpush.bf16.msra.mxu0 0
    %2424 = vmatpush.bf16.msra.mxu0 0
    %2425 = vmatpush.bf16.msra.mxu0 0
    %2426 = vmatpush.bf16.msra.mxu0 0
    %2427 = vmatpush.bf16.msra.mxu0 0
    %2428 = vmatpush.bf16.msra.mxu0 %v2416
    %2429 = vmatpush.bf16.msra.mxu0 %v2415
    %2430 = vmatmul.bf16.gmra.mxu0 %v2420
    %v2431 = vpop.f32.mrf.mxu0
    %v2432 = vadd.f32 0.0, %v2431
    %v2433 = vpop.f32.mrf.mxu0
    %v2434 = vadd.f32 0.0, %v2433
    %2435 = vdwg.mxu0
    %v2440 = vunpack.c.l.b16 %v2371
    %v2441 = vunpack.c.l.b16 %v2372
    %v2442 = vunpack.c.l.b16 %v2373
    %v2443 = vunpack.c.l.b16 %v2374
    %v2444 = vpack.c.b16 %v2441, %v2440
    %v2445 = vpack.c.b16 %v2443, %v2442
    %v2449 = vsel %vm2175, %v2375, 0
    %2451 = vmatpush.bf16.msra.mxu0 0
    %2452 = vmatpush.bf16.msra.mxu0 0
    %2453 = vmatpush.bf16.msra.mxu0 0
    %2454 = vmatpush.bf16.msra.mxu0 0
    %2455 = vmatpush.bf16.msra.mxu0 0
    %2456 = vmatpush.bf16.msra.mxu0 0
    %2457 = vmatpush.bf16.msra.mxu0 %v2445
    %2458 = vmatpush.bf16.msra.mxu0 %v2444
    %2459 = vmatmul.bf16.gmra.mxu0 %v2449
    %v2460 = vpop.f32.mrf.mxu0
    %v2461 = vadd.f32 %v2432, %v2460
    %v2462 = vpop.f32.mrf.mxu0
    %v2463 = vadd.f32 %v2434, %v2462
    %2464 = vdwg.mxu0
    %s2465 = scalar_lea.vmem %s3, 16
    %v2466 = vld [vmem:[%s2465] sm:$0xf]
    %v2467 = vld [vmem:[%s2465 + $0x4] sm:$0xf]
    %v2470 = vunpack.c.l.b16 %v2466
    %v2471 = vunpack.c.l.b16 %v2467
    %v2472 = vpack.c.b16 %v2471, %v2470
    %v2474 = vsel %vm2353, %v2472, 0
    %2476 = vmatpush.bf16.msra.mxu0 0
    %2477 = vmatpush.bf16.msra.mxu0 0
    %2478 = vmatpush.bf16.msra.mxu0 0
    %2479 = vmatpush.bf16.msra.mxu0 0
    %2480 = vmatpush.bf16.msra.mxu0 %v2345
    %2481 = vmatpush.bf16.msra.mxu0 %v2344
    %2482 = vmatpush.bf16.msra.mxu0 %v2343
    %2483 = vmatpush.bf16.msra.mxu0 %v2342
    %2484 = vmatmul.bf16.gmra.mxu0 %v2474
    %v2485 = vpop.f32.mrf.mxu0
    %v2486 = vadd.f32 0.0, %v2485
    %v2487 = vpop.f32.mrf.mxu0
    %v2488 = vadd.f32 0.0, %v2487
    %2489 = vdwg.mxu0
    %s2490 = scalar_lea.vmem %s8, 32
    %v2491 = vld [vmem:[%s2490] sm:$0xf]
    %v2492 = vld [vmem:[%s2490 + $0x4] sm:$0xf]
    %v2493 = vld [vmem:[%s2490 + $0x8] sm:$0xf]
    %v2494 = vld [vmem:[%s2490 + $0xc] sm:$0xf]
    %v2495 = vpack.c.bf16 %v2488, %v2486
    %v2500 = vunpack.c.l.b16 %v2491
    %v2501 = vunpack.c.l.b16 %v2492
    %v2502 = vunpack.c.l.b16 %v2493
    %v2503 = vunpack.c.l.b16 %v2494
    %v2504 = vpack.c.b16 %v2501, %v2500
    %v2505 = vpack.c.b16 %v2503, %v2502
    %v2509 = vsel %vm2175, %v2495, 0
    %2511 = vmatpush.bf16.msra.mxu0 0
    %2512 = vmatpush.bf16.msra.mxu0 0
    %2513 = vmatpush.bf16.msra.mxu0 0
    %2514 = vmatpush.bf16.msra.mxu0 0
    %2515 = vmatpush.bf16.msra.mxu0 0
    %2516 = vmatpush.bf16.msra.mxu0 0
    %2517 = vmatpush.bf16.msra.mxu0 %v2505
    %2518 = vmatpush.bf16.msra.mxu0 %v2504
    %2519 = vmatmul.bf16.gmra.mxu0 %v2509
    %v2520 = vpop.f32.mrf.mxu0
    %v2521 = vadd.f32 0.0, %v2520
    %v2522 = vpop.f32.mrf.mxu0
    %v2523 = vadd.f32 0.0, %v2522
    %2524 = vdwg.mxu0
    %v2525 = vadd.f32 %v2461, %v2521
    %v2526 = vadd.f32 %v2463, %v2523
    %s2527 = scalar_lea.vmem %s3, 24
    %v2528 = vld [vmem:[%s2527] sm:$0xf]
    %v2529 = vld [vmem:[%s2527 + $0x4] sm:$0xf]
    %v2532 = vunpack.c.l.b16 %v2528
    %v2533 = vunpack.c.l.b16 %v2529
    %v2534 = vpack.c.b16 %v2533, %v2532
    %v2536 = vsel %vm2353, %v2534, 0
    %2538 = vmatpush.bf16.msra.mxu0 0
    %2539 = vmatpush.bf16.msra.mxu0 0
    %2540 = vmatpush.bf16.msra.mxu0 0
    %2541 = vmatpush.bf16.msra.mxu0 0
    %2542 = vmatpush.bf16.msra.mxu0 %v2345
    %2543 = vmatpush.bf16.msra.mxu0 %v2344
    %2544 = vmatpush.bf16.msra.mxu0 %v2343
    %2545 = vmatpush.bf16.msra.mxu0 %v2342
    %2546 = vmatmul.bf16.gmra.mxu0 %v2536
    %v2547 = vpop.f32.mrf.mxu0
    %v2548 = vadd.f32 0.0, %v2547
    %v2549 = vpop.f32.mrf.mxu0
    %v2550 = vadd.f32 0.0, %v2549
    %2551 = vdwg.mxu0
    %s2552 = scalar_lea.vmem %s8, 48
    %v2553 = vld [vmem:[%s2552] sm:$0xf]
    %v2554 = vld [vmem:[%s2552 + $0x4] sm:$0xf]
    %v2555 = vld [vmem:[%s2552 + $0x8] sm:$0xf]
    %v2556 = vld [vmem:[%s2552 + $0xc] sm:$0xf]
    %v2557 = vpack.c.bf16 %v2550, %v2548
    %v2562 = vunpack.c.l.b16 %v2553
    %v2563 = vunpack.c.l.b16 %v2554
    %v2564 = vunpack.c.l.b16 %v2555
    %v2565 = vunpack.c.l.b16 %v2556
    %v2566 = vpack.c.b16 %v2563, %v2562
    %v2567 = vpack.c.b16 %v2565, %v2564
    %v2571 = vsel %vm2175, %v2557, 0
    %2573 = vmatpush.bf16.msra.mxu0 0
    %2574 = vmatpush.bf16.msra.mxu0 0
    %2575 = vmatpush.bf16.msra.mxu0 0
    %2576 = vmatpush.bf16.msra.mxu0 0
    %2577 = vmatpush.bf16.msra.mxu0 0
    %2578 = vmatpush.bf16.msra.mxu0 0
    %2579 = vmatpush.bf16.msra.mxu0 %v2567
    %2580 = vmatpush.bf16.msra.mxu0 %v2566
    %2581 = vmatmul.bf16.gmra.mxu0 %v2571
    %v2582 = vpop.f32.mrf.mxu0
    %v2583 = vadd.f32 0.0, %v2582
    %v2584 = vpop.f32.mrf.mxu0
    %v2585 = vadd.f32 0.0, %v2584
    %2586 = vdwg.mxu0
    %v2587 = vadd.f32 %v2525, %v2583
    %v2588 = vadd.f32 %v2526, %v2585
    %s2589 = scalar_lea.vmem %s3, 32
    %v2590 = vld [vmem:[%s2589] sm:$0xf]
    %v2591 = vld [vmem:[%s2589 + $0x4] sm:$0xf]
    %v2594 = vunpack.c.l.b16 %v2590
    %v2595 = vunpack.c.l.b16 %v2591
    %v2596 = vpack.c.b16 %v2595, %v2594
    %v2598 = vsel %vm2353, %v2596, 0
    %2600 = vmatpush.bf16.msra.mxu0 0
    %2601 = vmatpush.bf16.msra.mxu0 0
    %2602 = vmatpush.bf16.msra.mxu0 0
    %2603 = vmatpush.bf16.msra.mxu0 0
    %2604 = vmatpush.bf16.msra.mxu0 %v2345
    %2605 = vmatpush.bf16.msra.mxu0 %v2344
    %2606 = vmatpush.bf16.msra.mxu0 %v2343
    %2607 = vmatpush.bf16.msra.mxu0 %v2342
    %2608 = vmatmul.bf16.gmra.mxu0 %v2598
    %v2609 = vpop.f32.mrf.mxu0
    %v2610 = vadd.f32 0.0, %v2609
    %v2611 = vpop.f32.mrf.mxu0
    %v2612 = vadd.f32 0.0, %v2611
    %2613 = vdwg.mxu0
    %s2614 = scalar_lea.vmem %s8, 64
    %v2615 = vld [vmem:[%s2614] sm:$0xf]
    %v2616 = vld [vmem:[%s2614 + $0x4] sm:$0xf]
    %v2617 = vld [vmem:[%s2614 + $0x8] sm:$0xf]
    %v2618 = vld [vmem:[%s2614 + $0xc] sm:$0xf]
    %v2619 = vpack.c.bf16 %v2612, %v2610
    %v2624 = vunpack.c.l.b16 %v2615
    %v2625 = vunpack.c.l.b16 %v2616
    %v2626 = vunpack.c.l.b16 %v2617
    %v2627 = vunpack.c.l.b16 %v2618
    %v2628 = vpack.c.b16 %v2625, %v2624
    %v2629 = vpack.c.b16 %v2627, %v2626
    %v2633 = vsel %vm2175, %v2619, 0
    %2635 = vmatpush.bf16.msra.mxu0 0
    %2636 = vmatpush.bf16.msra.mxu0 0
    %2637 = vmatpush.bf16.msra.mxu0 0
    %2638 = vmatpush.bf16.msra.mxu0 0
    %2639 = vmatpush.bf16.msra.mxu0 0
    %2640 = vmatpush.bf16.msra.mxu0 0
    %2641 = vmatpush.bf16.msra.mxu0 %v2629
    %2642 = vmatpush.bf16.msra.mxu0 %v2628
    %2643 = vmatmul.bf16.gmra.mxu0 %v2633
    %v2644 = vpop.f32.mrf.mxu0
    %v2645 = vadd.f32 0.0, %v2644
    %v2646 = vpop.f32.mrf.mxu0
    %v2647 = vadd.f32 0.0, %v2646
    %2648 = vdwg.mxu0
    %v2649 = vadd.f32 %v2587, %v2645
    %v2650 = vadd.f32 %v2588, %v2647
    %s2651 = scalar_lea.vmem %s3, 40
    %v2652 = vld [vmem:[%s2651] sm:$0xf]
    %v2653 = vld [vmem:[%s2651 + $0x4] sm:$0xf]
    %v2656 = vunpack.c.l.b16 %v2652
    %v2657 = vunpack.c.l.b16 %v2653
    %v2658 = vpack.c.b16 %v2657, %v2656
    %v2660 = vsel %vm2353, %v2658, 0
    %2662 = vmatpush.bf16.msra.mxu0 0
    %2663 = vmatpush.bf16.msra.mxu0 0
    %2664 = vmatpush.bf16.msra.mxu0 0
    %2665 = vmatpush.bf16.msra.mxu0 0
    %2666 = vmatpush.bf16.msra.mxu0 %v2345
    %2667 = vmatpush.bf16.msra.mxu0 %v2344
    %2668 = vmatpush.bf16.msra.mxu0 %v2343
    %2669 = vmatpush.bf16.msra.mxu0 %v2342
    %2670 = vmatmul.bf16.gmra.mxu0 %v2660
    %v2671 = vpop.f32.mrf.mxu0
    %v2672 = vadd.f32 0.0, %v2671
    %v2673 = vpop.f32.mrf.mxu0
    %v2674 = vadd.f32 0.0, %v2673
    %2675 = vdwg.mxu0
    %s2676 = scalar_lea.vmem %s8, 80
    %v2677 = vld [vmem:[%s2676] sm:$0xf]
    %v2678 = vld [vmem:[%s2676 + $0x4] sm:$0xf]
    %v2679 = vld [vmem:[%s2676 + $0x8] sm:$0xf]
    %v2680 = vld [vmem:[%s2676 + $0xc] sm:$0xf]
    %v2681 = vpack.c.bf16 %v2674, %v2672
    %v2686 = vunpack.c.l.b16 %v2677
    %v2687 = vunpack.c.l.b16 %v2678
    %v2688 = vunpack.c.l.b16 %v2679
    %v2689 = vunpack.c.l.b16 %v2680
    %v2690 = vpack.c.b16 %v2687, %v2686
    %v2691 = vpack.c.b16 %v2689, %v2688
    %v2695 = vsel %vm2175, %v2681, 0
    %2697 = vmatpush.bf16.msra.mxu0 0
    %2698 = vmatpush.bf16.msra.mxu0 0
    %2699 = vmatpush.bf16.msra.mxu0 0
    %2700 = vmatpush.bf16.msra.mxu0 0
    %2701 = vmatpush.bf16.msra.mxu0 0
    %2702 = vmatpush.bf16.msra.mxu0 0
    %2703 = vmatpush.bf16.msra.mxu0 %v2691
    %2704 = vmatpush.bf16.msra.mxu0 %v2690
    %2705 = vmatmul.bf16.gmra.mxu0 %v2695
    %v2706 = vpop.f32.mrf.mxu0
    %v2707 = vadd.f32 0.0, %v2706
    %v2708 = vpop.f32.mrf.mxu0
    %v2709 = vadd.f32 0.0, %v2708
    %2710 = vdwg.mxu0
    %v2711 = vadd.f32 %v2649, %v2707
    %v2712 = vadd.f32 %v2650, %v2709
    %s2713 = scalar_lea.vmem %s3, 48
    %v2714 = vld [vmem:[%s2713] sm:$0xf]
    %v2715 = vld [vmem:[%s2713 + $0x4] sm:$0xf]
    %v2718 = vunpack.c.l.b16 %v2714
    %v2719 = vunpack.c.l.b16 %v2715
    %v2720 = vpack.c.b16 %v2719, %v2718
    %v2722 = vsel %vm2353, %v2720, 0
    %2724 = vmatpush.bf16.msra.mxu0 0
    %2725 = vmatpush.bf16.msra.mxu0 0
    %2726 = vmatpush.bf16.msra.mxu0 0
    %2727 = vmatpush.bf16.msra.mxu0 0
    %2728 = vmatpush.bf16.msra.mxu0 %v2345
    %2729 = vmatpush.bf16.msra.mxu0 %v2344
    %2730 = vmatpush.bf16.msra.mxu0 %v2343
    %2731 = vmatpush.bf16.msra.mxu0 %v2342
    %2732 = vmatmul.bf16.gmra.mxu0 %v2722
    %v2733 = vpop.f32.mrf.mxu0
    %v2734 = vadd.f32 0.0, %v2733
    %v2735 = vpop.f32.mrf.mxu0
    %v2736 = vadd.f32 0.0, %v2735
    %2737 = vdwg.mxu0
    %s2738 = scalar_lea.vmem %s8, 96
    %v2739 = vld [vmem:[%s2738] sm:$0xf]
    %v2740 = vld [vmem:[%s2738 + $0x4] sm:$0xf]
    %v2741 = vld [vmem:[%s2738 + $0x8] sm:$0xf]
    %v2742 = vld [vmem:[%s2738 + $0xc] sm:$0xf]
    %v2743 = vpack.c.bf16 %v2736, %v2734
    %v2748 = vunpack.c.l.b16 %v2739
    %v2749 = vunpack.c.l.b16 %v2740
    %v2750 = vunpack.c.l.b16 %v2741
    %v2751 = vunpack.c.l.b16 %v2742
    %v2752 = vpack.c.b16 %v2749, %v2748
    %v2753 = vpack.c.b16 %v2751, %v2750
    %v2757 = vsel %vm2175, %v2743, 0
    %2759 = vmatpush.bf16.msra.mxu0 0
    %2760 = vmatpush.bf16.msra.mxu0 0
    %2761 = vmatpush.bf16.msra.mxu0 0
    %2762 = vmatpush.bf16.msra.mxu0 0
    %2763 = vmatpush.bf16.msra.mxu0 0
    %2764 = vmatpush.bf16.msra.mxu0 0
    %2765 = vmatpush.bf16.msra.mxu0 %v2753
    %2766 = vmatpush.bf16.msra.mxu0 %v2752
    %2767 = vmatmul.bf16.gmra.mxu0 %v2757
    %v2768 = vpop.f32.mrf.mxu0
    %v2769 = vadd.f32 0.0, %v2768
    %v2770 = vpop.f32.mrf.mxu0
    %v2771 = vadd.f32 0.0, %v2770
    %2772 = vdwg.mxu0
    %v2773 = vadd.f32 %v2711, %v2769
    %v2774 = vadd.f32 %v2712, %v2771
    %s2775 = scalar_lea.vmem %s3, 56
    %v2776 = vld [vmem:[%s2775] sm:$0xf]
    %v2777 = vld [vmem:[%s2775 + $0x4] sm:$0xf]
    %v2780 = vunpack.c.l.b16 %v2776
    %v2781 = vunpack.c.l.b16 %v2777
    %v2782 = vpack.c.b16 %v2781, %v2780
    %v2784 = vsel %vm2353, %v2782, 0
    %2786 = vmatpush.bf16.msra.mxu0 0
    %2787 = vmatpush.bf16.msra.mxu0 0
    %2788 = vmatpush.bf16.msra.mxu0 0
    %2789 = vmatpush.bf16.msra.mxu0 0
    %2790 = vmatpush.bf16.msra.mxu0 %v2345
    %2791 = vmatpush.bf16.msra.mxu0 %v2344
    %2792 = vmatpush.bf16.msra.mxu0 %v2343
    %2793 = vmatpush.bf16.msra.mxu0 %v2342
    %2794 = vmatmul.bf16.gmra.mxu0 %v2784
    %v2795 = vpop.f32.mrf.mxu0
    %v2796 = vadd.f32 0.0, %v2795
    %v2797 = vpop.f32.mrf.mxu0
    %v2798 = vadd.f32 0.0, %v2797
    %2799 = vdwg.mxu0
    %s2800 = scalar_lea.vmem %s8, 112
    %v2801 = vld [vmem:[%s2800] sm:$0xf]
    %v2802 = vld [vmem:[%s2800 + $0x4] sm:$0xf]
    %v2803 = vld [vmem:[%s2800 + $0x8] sm:$0xf]
    %v2804 = vld [vmem:[%s2800 + $0xc] sm:$0xf]
    %v2805 = vpack.c.bf16 %v2798, %v2796
    %v2810 = vunpack.c.l.b16 %v2801
    %v2811 = vunpack.c.l.b16 %v2802
    %v2812 = vunpack.c.l.b16 %v2803
    %v2813 = vunpack.c.l.b16 %v2804
    %v2814 = vpack.c.b16 %v2811, %v2810
    %v2815 = vpack.c.b16 %v2813, %v2812
    %v2819 = vsel %vm2175, %v2805, 0
    %2821 = vmatpush.bf16.msra.mxu0 0
    %2822 = vmatpush.bf16.msra.mxu0 0
    %2823 = vmatpush.bf16.msra.mxu0 0
    %2824 = vmatpush.bf16.msra.mxu0 0
    %2825 = vmatpush.bf16.msra.mxu0 0
    %2826 = vmatpush.bf16.msra.mxu0 0
    %2827 = vmatpush.bf16.msra.mxu0 %v2815
    %2828 = vmatpush.bf16.msra.mxu0 %v2814
    %2829 = vmatmul.bf16.gmra.mxu0 %v2819
    %v2830 = vpop.f32.mrf.mxu0
    %v2831 = vadd.f32 0.0, %v2830
    %v2832 = vpop.f32.mrf.mxu0
    %v2833 = vadd.f32 0.0, %v2832
    %2834 = vdwg.mxu0
    %v2835 = vadd.f32 %v2773, %v2831
    %v2836 = vadd.f32 %v2774, %v2833
    %s2837 = scalar_lea.vmem %s3, 64
    %v2838 = vld [vmem:[%s2837] sm:$0xf]
    %v2839 = vld [vmem:[%s2837 + $0x4] sm:$0xf]
    %v2842 = vunpack.c.l.b16 %v2838
    %v2843 = vunpack.c.l.b16 %v2839
    %v2844 = vpack.c.b16 %v2843, %v2842
    %v2846 = vsel %vm2353, %v2844, 0
    %2848 = vmatpush.bf16.msra.mxu0 0
    %2849 = vmatpush.bf16.msra.mxu0 0
    %2850 = vmatpush.bf16.msra.mxu0 0
    %2851 = vmatpush.bf16.msra.mxu0 0
    %2852 = vmatpush.bf16.msra.mxu0 %v2345
    %2853 = vmatpush.bf16.msra.mxu0 %v2344
    %2854 = vmatpush.bf16.msra.mxu0 %v2343
    %2855 = vmatpush.bf16.msra.mxu0 %v2342
    %2856 = vmatmul.bf16.gmra.mxu0 %v2846
    %v2857 = vpop.f32.mrf.mxu0
    %v2858 = vadd.f32 0.0, %v2857
    %v2859 = vpop.f32.mrf.mxu0
    %v2860 = vadd.f32 0.0, %v2859
    %2861 = vdwg.mxu0
    %s2862 = scalar_lea.vmem %s8, 128
    %v2863 = vld [vmem:[%s2862] sm:$0xf]
    %v2864 = vld [vmem:[%s2862 + $0x4] sm:$0xf]
    %v2865 = vld [vmem:[%s2862 + $0x8] sm:$0xf]
    %v2866 = vld [vmem:[%s2862 + $0xc] sm:$0xf]
    %v2867 = vpack.c.bf16 %v2860, %v2858
    %v2872 = vunpack.c.l.b16 %v2863
    %v2873 = vunpack.c.l.b16 %v2864
    %v2874 = vunpack.c.l.b16 %v2865
    %v2875 = vunpack.c.l.b16 %v2866
    %v2876 = vpack.c.b16 %v2873, %v2872
    %v2877 = vpack.c.b16 %v2875, %v2874
    %v2881 = vsel %vm2175, %v2867, 0
    %2883 = vmatpush.bf16.msra.mxu0 0
    %2884 = vmatpush.bf16.msra.mxu0 0
    %2885 = vmatpush.bf16.msra.mxu0 0
    %2886 = vmatpush.bf16.msra.mxu0 0
    %2887 = vmatpush.bf16.msra.mxu0 0
    %2888 = vmatpush.bf16.msra.mxu0 0
    %2889 = vmatpush.bf16.msra.mxu0 %v2877
    %2890 = vmatpush.bf16.msra.mxu0 %v2876
    %2891 = vmatmul.bf16.gmra.mxu0 %v2881
    %v2892 = vpop.f32.mrf.mxu0
    %v2893 = vadd.f32 0.0, %v2892
    %v2894 = vpop.f32.mrf.mxu0
    %v2895 = vadd.f32 0.0, %v2894
    %2896 = vdwg.mxu0
    %v2897 = vadd.f32 %v2835, %v2893
    %v2898 = vadd.f32 %v2836, %v2895
    %v2899 = vsel %vm2175, %v2897, 0.0
    %v2900 = vsel %vm2175, %v2898, 0.0
    %v2901 = vadd.f32 %v2899, %v2900
    %v2902 = vrot.slane %v2901, 4
    %v2903 = vadd.f32 %v2901, %v2902
    %v2904 = vrot.slane %v2903, 2
    %v2905 = vadd.f32 %v2903, %v2904
    %v2906 = vrot.slane %v2905, 1
    %v2907 = vadd.f32 %v2905, %v2906
    %v2908 = vrcp.pop 16.0
    %v2909 = vmul.f32 16.0, %v2908
    %v2910 = vsub.f32 1.0, %v2909
    %v2911 = vmul.f32 %v2908, %v2910
    %v2912 = vadd.f32 %v2908, %v2911
    %vm2913 = vweird.f32 %v2908
    %v2914 = vsel %vm2913, %v2908, %v2912
    %v2915 = vmul.f32 %v2907, %v2914
    %v2917 = vsel %vm2175, %v2915, 0
    %2919 = vmatpush.msra.mxu0 0.0
    %2920 = vmatpush.msra.mxu0 0.0
    %2921 = vmatpush.msra.mxu0 0.0
    %2922 = vmatpush.msra.mxu0 0.0
    %2923 = vmatpush.msra.mxu0 0.0
    %2924 = vmatpush.msra.mxu0 0.0
    %2925 = vmatpush.msra.mxu0 0.0
    %2926 = vmatpush.msra.mxu0 0.0
    %2927 = vmatpush.msra.mxu0 0.0
    %2928 = vmatpush.msra.mxu0 0.0
    %2929 = vmatpush.msra.mxu0 0.0
    %2930 = vmatpush.msra.mxu0 0.0
    %2931 = vmatpush.msra.mxu0 %v201
    %2932 = vmatpush.msra.mxu0 %v200
    %2933 = vmatpush.msra.mxu0 %v199
    %2934 = vmatpush.msra.mxu0 %v198
    %2935 = vmatmul.f32.gmra.mxu0 %v2917
    %v2936 = vpop.f32.mrf.mxu0
    %v2937 = vadd.f32 0.0, %v2936
    %2938 = vdwg.mxu0
    %v2939 = vperm.slane %v2937, 0
    %v2940 = vsub.f32 %v2897, %v2939
    %v2941 = vsub.f32 %v2898, %v2939
    %v2942 = vmul.f32 %v2940, %v2940
    %v2943 = vmul.f32 %v2941, %v2941
    %v2944 = vsel %vm2175, %v2942, 0.0
    %v2945 = vsel %vm2175, %v2943, 0.0
    %v2946 = vadd.f32 %v2944, %v2945
    %v2947 = vrot.slane %v2946, 4
    %v2948 = vadd.f32 %v2946, %v2947
    %v2949 = vrot.slane %v2948, 2
    %v2950 = vadd.f32 %v2948, %v2949
    %v2951 = vrot.slane %v2950, 1
    %v2952 = vadd.f32 %v2950, %v2951
    %v2953 = vmul.f32 %v2952, %v2914
    %v2955 = vsel %vm2175, %v2953, 0
    %2957 = vmatpush.msra.mxu0 0.0
    %2958 = vmatpush.msra.mxu0 0.0
    %2959 = vmatpush.msra.mxu0 0.0
    %2960 = vmatpush.msra.mxu0 0.0
    %2961 = vmatpush.msra.mxu0 0.0
    %2962 = vmatpush.msra.mxu0 0.0
    %2963 = vmatpush.msra.mxu0 0.0
    %2964 = vmatpush.msra.mxu0 0.0
    %2965 = vmatpush.msra.mxu0 0.0
    %2966 = vmatpush.msra.mxu0 0.0
    %2967 = vmatpush.msra.mxu0 0.0
    %2968 = vmatpush.msra.mxu0 0.0
    %2969 = vmatpush.msra.mxu0 %v201
    %2970 = vmatpush.msra.mxu0 %v200
    %2971 = vmatpush.msra.mxu0 %v199
    %2972 = vmatpush.msra.mxu0 %v198
    %2973 = vmatmul.f32.gmra.mxu0 %v2955
    %v2974 = vpop.f32.mrf.mxu0
    %v2975 = vadd.f32 1e-05, %v2974
    %2976 = vdwg.mxu0
    %v2977 = vrsqrt.pop %v2975
    %v2978 = vmul.f32 %v2977, %v2975
    %v2979 = vmul.f32 %v2978, %v2977
    %v2980 = vmul.f32 0.5, %v2979
    %v2981 = vsub.f32 1.5, %v2980
    %v2982 = vmul.f32 %v2977, %v2981
    %vm2983 = vweird.f32 %v2975
    %vm2984 = vweird.f32 %v2977
    %vm2985 = vmor %vm2983, %vm2984
    %v2986 = vsel %vm2985, %v2977, %v2982
    %v2987 = vperm.slane %v2986, 0
    %v2988 = vmul.f32 %v2940, %v2987
    %v2989 = vmul.f32 %v2941, %v2987
    %s2990 = scalar_lea.vmem [#allocation8], 1
    %v2991 = vld [vmem:[%s2990] sm:$0x1]
    %v2993 = vperm.slane %v2991, 0
    %v2995 = vmul.f32 %v2988, %v2993
    %v2996 = vmul.f32 %v2989, %v2993
    %s2997 = scalar_lea.vmem [#allocation8], 6
    %v2998 = vld [vmem:[%s2997] sm:$0x1]
    %v3000 = vperm.slane %v2998, 0
    %v3002 = vadd.f32 %v2995, %v3000
    %v3003 = vadd.f32 %v2996, %v3000
    %v3004 = vmax.f32 %v3002, 0.0
    %v3005 = vmax.f32 %v3003, 0.0
    %v3006 = vpack.c.bf16 %v3005, %v3004
    %v3007 = vld [vmem:[#allocation5] sm:$0x3]
    %vm3008 = vcmask 130048
    %v3010 = vsel %vm3008, %v3007, 0
    %3012 = vmatpush.bf16.msra.mxu0 0
    %3013 = vmatpush.bf16.msra.mxu0 0
    %3014 = vmatpush.bf16.msra.mxu0 0
    %3015 = vmatpush.bf16.msra.mxu0 0
    %3016 = vmatpush.bf16.msra.mxu0 0
    %3017 = vmatpush.bf16.msra.mxu0 0
    %3018 = vmatpush.bf16.msra.mxu0 0
    %3019 = vmatpush.bf16.msra.mxu0 %v3006
    %3020 = vmatmul.bf16.gmra.mxu0 %v3010
    %v3021 = vpop.f32.mrf.mxu0
    %v3022 = vadd.f32 0.0, %v3021
    %v3023 = vpop.f32.mrf.mxu0
    %3024 = vdwg.mxu0
    %s3025 = scalar_lea.vmem %s8, 144
    %v3026 = vld [vmem:[%s3025] sm:$0xf]
    %v3027 = vld [vmem:[%s3025 + $0x4] sm:$0xf]
    %v3028 = vld [vmem:[%s3025 + $0x8] sm:$0xf]
    %v3029 = vld [vmem:[%s3025 + $0xc] sm:$0xf]
    %v3030 = vpack.c.bf16 %v3022, %v3022
    %s3031 = scalar_lea.vmem [#allocation5], 2
    %v3032 = vld [vmem:[%s3031] sm:$0x3]
    %v3034 = vsel %vm3008, %v3032, 0
    %3036 = vmatpush.bf16.msra.mxu0 0
    %3037 = vmatpush.bf16.msra.mxu0 0
    %3038 = vmatpush.bf16.msra.mxu0 0
    %3039 = vmatpush.bf16.msra.mxu0 0
    %3040 = vmatpush.bf16.msra.mxu0 0
    %3041 = vmatpush.bf16.msra.mxu0 0
    %3042 = vmatpush.bf16.msra.mxu0 0
    %3043 = vmatpush.bf16.msra.mxu0 %v3006
    %3044 = vmatmul.bf16.gmra.mxu0 %v3034
    %v3045 = vpop.f32.mrf.mxu0
    %v3046 = vadd.f32 0.0, %v3045
    %v3047 = vpop.f32.mrf.mxu0
    %3048 = vdwg.mxu0
    %s3049 = scalar_lea.vmem %s8, 160
    %v3050 = vld [vmem:[%s3049] sm:$0xf]
    %v3051 = vld [vmem:[%s3049 + $0x4] sm:$0xf]
    %v3052 = vld [vmem:[%s3049 + $0x8] sm:$0xf]
    %v3053 = vld [vmem:[%s3049 + $0xc] sm:$0xf]
    %v3054 = vpack.c.bf16 %v3046, %v3046
    %v3059 = vunpack.c.l.b16 %v3050
    %v3060 = vunpack.c.l.b16 %v3051
    %v3061 = vunpack.c.l.b16 %v3052
    %v3062 = vunpack.c.l.b16 %v3053
    %v3063 = vpack.c.b16 %v3060, %v3059
    %v3064 = vpack.c.b16 %v3062, %v3061
    %v3068 = vsel %vm2175, %v3054, 0
    %3070 = vmatpush.bf16.msra.mxu0 0
    %3071 = vmatpush.bf16.msra.mxu0 0
    %3072 = vmatpush.bf16.msra.mxu0 0
    %3073 = vmatpush.bf16.msra.mxu0 0
    %3074 = vmatpush.bf16.msra.mxu0 0
    %3075 = vmatpush.bf16.msra.mxu0 0
    %3076 = vmatpush.bf16.msra.mxu0 %v3064
    %3077 = vmatpush.bf16.msra.mxu0 %v3063
    %3078 = vmatmul.bf16.gmra.mxu0 %v3068
    %v3079 = vpop.f32.mrf.mxu0
    %v3080 = vadd.f32 0.0, %v3079
    %v3081 = vpop.f32.mrf.mxu0
    %3082 = vdwg.mxu0
    %v3087 = vunpack.c.l.b16 %v3026
    %v3088 = vunpack.c.l.b16 %v3027
    %v3089 = vunpack.c.l.b16 %v3028
    %v3090 = vunpack.c.l.b16 %v3029
    %v3091 = vpack.c.b16 %v3088, %v3087
    %v3092 = vpack.c.b16 %v3090, %v3089
    %v3096 = vsel %vm2175, %v3030, 0
    %3098 = vmatpush.bf16.msra.mxu0 0
    %3099 = vmatpush.bf16.msra.mxu0 0
    %3100 = vmatpush.bf16.msra.mxu0 0
    %3101 = vmatpush.bf16.msra.mxu0 0
    %3102 = vmatpush.bf16.msra.mxu0 0
    %3103 = vmatpush.bf16.msra.mxu0 0
    %3104 = vmatpush.bf16.msra.mxu0 %v3092
    %3105 = vmatpush.bf16.msra.mxu0 %v3091
    %3106 = vmatmul.bf16.gmra.mxu0 %v3096
    %v3107 = vpop.f32.mrf.mxu0
    %v3108 = vadd.f32 %v3080, %v3107
    %v3109 = vpop.f32.mrf.mxu0
    %3110 = vdwg.mxu0
    %s3111 = scalar_lea.vmem [#allocation5], 4
    %v3112 = vld [vmem:[%s3111] sm:$0x3]
    %v3114 = vsel %vm3008, %v3112, 0
    %3116 = vmatpush.bf16.msra.mxu0 0
    %3117 = vmatpush.bf16.msra.mxu0 0
    %3118 = vmatpush.bf16.msra.mxu0 0
    %3119 = vmatpush.bf16.msra.mxu0 0
    %3120 = vmatpush.bf16.msra.mxu0 0
    %3121 = vmatpush.bf16.msra.mxu0 0
    %3122 = vmatpush.bf16.msra.mxu0 0
    %3123 = vmatpush.bf16.msra.mxu0 %v3006
    %3124 = vmatmul.bf16.gmra.mxu0 %v3114
    %v3125 = vpop.f32.mrf.mxu0
    %v3126 = vadd.f32 0.0, %v3125
    %v3127 = vpop.f32.mrf.mxu0
    %3128 = vdwg.mxu0
    %s3129 = scalar_lea.vmem %s8, 176
    %v3130 = vld [vmem:[%s3129] sm:$0xf]
    %v3131 = vld [vmem:[%s3129 + $0x4] sm:$0xf]
    %v3132 = vld [vmem:[%s3129 + $0x8] sm:$0xf]
    %v3133 = vld [vmem:[%s3129 + $0xc] sm:$0xf]
    %v3134 = vpack.c.bf16 %v3126, %v3126
    %v3139 = vunpack.c.l.b16 %v3130
    %v3140 = vunpack.c.l.b16 %v3131
    %v3141 = vunpack.c.l.b16 %v3132
    %v3142 = vunpack.c.l.b16 %v3133
    %v3143 = vpack.c.b16 %v3140, %v3139
    %v3144 = vpack.c.b16 %v3142, %v3141
    %v3148 = vsel %vm2175, %v3134, 0
    %3150 = vmatpush.bf16.msra.mxu0 0
    %3151 = vmatpush.bf16.msra.mxu0 0
    %3152 = vmatpush.bf16.msra.mxu0 0
    %3153 = vmatpush.bf16.msra.mxu0 0
    %3154 = vmatpush.bf16.msra.mxu0 0
    %3155 = vmatpush.bf16.msra.mxu0 0
    %3156 = vmatpush.bf16.msra.mxu0 %v3144
    %3157 = vmatpush.bf16.msra.mxu0 %v3143
    %3158 = vmatmul.bf16.gmra.mxu0 %v3148
    %v3159 = vpop.f32.mrf.mxu0
    %v3160 = vadd.f32 0.0, %v3159
    %v3161 = vpop.f32.mrf.mxu0
    %3162 = vdwg.mxu0
    %v3163 = vadd.f32 %v3108, %v3160
    %s3164 = scalar_lea.vmem [#allocation5], 6
    %v3165 = vld [vmem:[%s3164] sm:$0x3]
    %v3167 = vsel %vm3008, %v3165, 0
    %3169 = vmatpush.bf16.msra.mxu0 0
    %3170 = vmatpush.bf16.msra.mxu0 0
    %3171 = vmatpush.bf16.msra.mxu0 0
    %3172 = vmatpush.bf16.msra.mxu0 0
    %3173 = vmatpush.bf16.msra.mxu0 0
    %3174 = vmatpush.bf16.msra.mxu0 0
    %3175 = vmatpush.bf16.msra.mxu0 0
    %3176 = vmatpush.bf16.msra.mxu0 %v3006
    %3177 = vmatmul.bf16.gmra.mxu0 %v3167
    %v3178 = vpop.f32.mrf.mxu0
    %v3179 = vadd.f32 0.0, %v3178
    %v3180 = vpop.f32.mrf.mxu0
    %3181 = vdwg.mxu0
    %s3182 = scalar_lea.vmem %s8, 192
    %v3183 = vld [vmem:[%s3182] sm:$0xf]
    %v3184 = vld [vmem:[%s3182 + $0x4] sm:$0xf]
    %v3185 = vld [vmem:[%s3182 + $0x8] sm:$0xf]
    %v3186 = vld [vmem:[%s3182 + $0xc] sm:$0xf]
    %v3187 = vpack.c.bf16 %v3179, %v3179
    %v3192 = vunpack.c.l.b16 %v3183
    %v3193 = vunpack.c.l.b16 %v3184
    %v3194 = vunpack.c.l.b16 %v3185
    %v3195 = vunpack.c.l.b16 %v3186
    %v3196 = vpack.c.b16 %v3193, %v3192
    %v3197 = vpack.c.b16 %v3195, %v3194
    %v3201 = vsel %vm2175, %v3187, 0
    %3203 = vmatpush.bf16.msra.mxu0 0
    %3204 = vmatpush.bf16.msra.mxu0 0
    %3205 = vmatpush.bf16.msra.mxu0 0
    %3206 = vmatpush.bf16.msra.mxu0 0
    %3207 = vmatpush.bf16.msra.mxu0 0
    %3208 = vmatpush.bf16.msra.mxu0 0
    %3209 = vmatpush.bf16.msra.mxu0 %v3197
    %3210 = vmatpush.bf16.msra.mxu0 %v3196
    %3211 = vmatmul.bf16.gmra.mxu0 %v3201
    %v3212 = vpop.f32.mrf.mxu0
    %v3213 = vadd.f32 0.0, %v3212
    %v3214 = vpop.f32.mrf.mxu0
    %3215 = vdwg.mxu0
    %v3216 = vadd.f32 %v3163, %v3213
    %s3217 = scalar_lea.vmem [#allocation5], 8
    %v3218 = vld [vmem:[%s3217] sm:$0x3]
    %v3220 = vsel %vm3008, %v3218, 0
    %3222 = vmatpush.bf16.msra.mxu0 0
    %3223 = vmatpush.bf16.msra.mxu0 0
    %3224 = vmatpush.bf16.msra.mxu0 0
    %3225 = vmatpush.bf16.msra.mxu0 0
    %3226 = vmatpush.bf16.msra.mxu0 0
    %3227 = vmatpush.bf16.msra.mxu0 0
    %3228 = vmatpush.bf16.msra.mxu0 0
    %3229 = vmatpush.bf16.msra.mxu0 %v3006
    %3230 = vmatmul.bf16.gmra.mxu0 %v3220
    %v3231 = vpop.f32.mrf.mxu0
    %v3232 = vadd.f32 0.0, %v3231
    %v3233 = vpop.f32.mrf.mxu0
    %3234 = vdwg.mxu0
    %s3235 = scalar_lea.vmem %s8, 208
    %v3236 = vld [vmem:[%s3235] sm:$0xf]
    %v3237 = vld [vmem:[%s3235 + $0x4] sm:$0xf]
    %v3238 = vld [vmem:[%s3235 + $0x8] sm:$0xf]
    %v3239 = vld [vmem:[%s3235 + $0xc] sm:$0xf]
    %v3240 = vpack.c.bf16 %v3232, %v3232
    %v3245 = vunpack.c.l.b16 %v3236
    %v3246 = vunpack.c.l.b16 %v3237
    %v3247 = vunpack.c.l.b16 %v3238
    %v3248 = vunpack.c.l.b16 %v3239
    %v3249 = vpack.c.b16 %v3246, %v3245
    %v3250 = vpack.c.b16 %v3248, %v3247
    %v3254 = vsel %vm2175, %v3240, 0
    %3256 = vmatpush.bf16.msra.mxu0 0
    %3257 = vmatpush.bf16.msra.mxu0 0
    %3258 = vmatpush.bf16.msra.mxu0 0
    %3259 = vmatpush.bf16.msra.mxu0 0
    %3260 = vmatpush.bf16.msra.mxu0 0
    %3261 = vmatpush.bf16.msra.mxu0 0
    %3262 = vmatpush.bf16.msra.mxu0 %v3250
    %3263 = vmatpush.bf16.msra.mxu0 %v3249
    %3264 = vmatmul.bf16.gmra.mxu0 %v3254
    %v3265 = vpop.f32.mrf.mxu0
    %v3266 = vadd.f32 0.0, %v3265
    %v3267 = vpop.f32.mrf.mxu0
    %3268 = vdwg.mxu0
    %v3269 = vadd.f32 %v3216, %v3266
    %s3270 = scalar_lea.vmem [#allocation5], 10
    %v3271 = vld [vmem:[%s3270] sm:$0x3]
    %v3273 = vsel %vm3008, %v3271, 0
    %3275 = vmatpush.bf16.msra.mxu0 0
    %3276 = vmatpush.bf16.msra.mxu0 0
    %3277 = vmatpush.bf16.msra.mxu0 0
    %3278 = vmatpush.bf16.msra.mxu0 0
    %3279 = vmatpush.bf16.msra.mxu0 0
    %3280 = vmatpush.bf16.msra.mxu0 0
    %3281 = vmatpush.bf16.msra.mxu0 0
    %3282 = vmatpush.bf16.msra.mxu0 %v3006
    %3283 = vmatmul.bf16.gmra.mxu0 %v3273
    %v3284 = vpop.f32.mrf.mxu0
    %v3285 = vadd.f32 0.0, %v3284
    %v3286 = vpop.f32.mrf.mxu0
    %3287 = vdwg.mxu0
    %s3288 = scalar_lea.vmem %s8, 224
    %v3289 = vld [vmem:[%s3288] sm:$0xf]
    %v3290 = vld [vmem:[%s3288 + $0x4] sm:$0xf]
    %v3291 = vld [vmem:[%s3288 + $0x8] sm:$0xf]
    %v3292 = vld [vmem:[%s3288 + $0xc] sm:$0xf]
    %v3293 = vpack.c.bf16 %v3285, %v3285
    %v3298 = vunpack.c.l.b16 %v3289
    %v3299 = vunpack.c.l.b16 %v3290
    %v3300 = vunpack.c.l.b16 %v3291
    %v3301 = vunpack.c.l.b16 %v3292
    %v3302 = vpack.c.b16 %v3299, %v3298
    %v3303 = vpack.c.b16 %v3301, %v3300
    %v3307 = vsel %vm2175, %v3293, 0
    %3309 = vmatpush.bf16.msra.mxu0 0
    %3310 = vmatpush.bf16.msra.mxu0 0
    %3311 = vmatpush.bf16.msra.mxu0 0
    %3312 = vmatpush.bf16.msra.mxu0 0
    %3313 = vmatpush.bf16.msra.mxu0 0
    %3314 = vmatpush.bf16.msra.mxu0 0
    %3315 = vmatpush.bf16.msra.mxu0 %v3303
    %3316 = vmatpush.bf16.msra.mxu0 %v3302
    %3317 = vmatmul.bf16.gmra.mxu0 %v3307
    %v3318 = vpop.f32.mrf.mxu0
    %v3319 = vadd.f32 0.0, %v3318
    %v3320 = vpop.f32.mrf.mxu0
    %3321 = vdwg.mxu0
    %v3322 = vadd.f32 %v3269, %v3319
    %s3323 = scalar_lea.vmem [#allocation5], 12
    %v3324 = vld [vmem:[%s3323] sm:$0x3]
    %v3326 = vsel %vm3008, %v3324, 0
    %3328 = vmatpush.bf16.msra.mxu0 0
    %3329 = vmatpush.bf16.msra.mxu0 0
    %3330 = vmatpush.bf16.msra.mxu0 0
    %3331 = vmatpush.bf16.msra.mxu0 0
    %3332 = vmatpush.bf16.msra.mxu0 0
    %3333 = vmatpush.bf16.msra.mxu0 0
    %3334 = vmatpush.bf16.msra.mxu0 0
    %3335 = vmatpush.bf16.msra.mxu0 %v3006
    %3336 = vmatmul.bf16.gmra.mxu0 %v3326
    %v3337 = vpop.f32.mrf.mxu0
    %v3338 = vadd.f32 0.0, %v3337
    %v3339 = vpop.f32.mrf.mxu0
    %3340 = vdwg.mxu0
    %s3341 = scalar_lea.vmem %s8, 240
    %v3342 = vld [vmem:[%s3341] sm:$0xf]
    %v3343 = vld [vmem:[%s3341 + $0x4] sm:$0xf]
    %v3344 = vld [vmem:[%s3341 + $0x8] sm:$0xf]
    %v3345 = vld [vmem:[%s3341 + $0xc] sm:$0xf]
    %v3346 = vpack.c.bf16 %v3338, %v3338
    %v3351 = vunpack.c.l.b16 %v3342
    %v3352 = vunpack.c.l.b16 %v3343
    %v3353 = vunpack.c.l.b16 %v3344
    %v3354 = vunpack.c.l.b16 %v3345
    %v3355 = vpack.c.b16 %v3352, %v3351
    %v3356 = vpack.c.b16 %v3354, %v3353
    %v3360 = vsel %vm2175, %v3346, 0
    %3362 = vmatpush.bf16.msra.mxu0 0
    %3363 = vmatpush.bf16.msra.mxu0 0
    %3364 = vmatpush.bf16.msra.mxu0 0
    %3365 = vmatpush.bf16.msra.mxu0 0
    %3366 = vmatpush.bf16.msra.mxu0 0
    %3367 = vmatpush.bf16.msra.mxu0 0
    %3368 = vmatpush.bf16.msra.mxu0 %v3356
    %3369 = vmatpush.bf16.msra.mxu0 %v3355
    %3370 = vmatmul.bf16.gmra.mxu0 %v3360
    %v3371 = vpop.f32.mrf.mxu0
    %v3372 = vadd.f32 0.0, %v3371
    %v3373 = vpop.f32.mrf.mxu0
    %3374 = vdwg.mxu0
    %v3375 = vadd.f32 %v3322, %v3372
    %s3376 = scalar_lea.vmem [#allocation5], 14
    %v3377 = vld [vmem:[%s3376] sm:$0x3]
    %v3379 = vsel %vm3008, %v3377, 0
    %3381 = vmatpush.bf16.msra.mxu0 0
    %3382 = vmatpush.bf16.msra.mxu0 0
    %3383 = vmatpush.bf16.msra.mxu0 0
    %3384 = vmatpush.bf16.msra.mxu0 0
    %3385 = vmatpush.bf16.msra.mxu0 0
    %3386 = vmatpush.bf16.msra.mxu0 0
    %3387 = vmatpush.bf16.msra.mxu0 0
    %3388 = vmatpush.bf16.msra.mxu0 %v3006
    %3389 = vmatmul.bf16.gmra.mxu0 %v3379
    %v3390 = vpop.f32.mrf.mxu0
    %v3391 = vadd.f32 0.0, %v3390
    %v3392 = vpop.f32.mrf.mxu0
    %3393 = vdwg.mxu0
    %s3394 = scalar_lea.vmem %s8, 256
    %v3395 = vld [vmem:[%s3394] sm:$0xf]
    %v3396 = vld [vmem:[%s3394 + $0x4] sm:$0xf]
    %v3397 = vld [vmem:[%s3394 + $0x8] sm:$0xf]
    %v3398 = vld [vmem:[%s3394 + $0xc] sm:$0xf]
    %v3399 = vpack.c.bf16 %v3391, %v3391
    %v3404 = vunpack.c.l.b16 %v3395
    %v3405 = vunpack.c.l.b16 %v3396
    %v3406 = vunpack.c.l.b16 %v3397
    %v3407 = vunpack.c.l.b16 %v3398
    %v3408 = vpack.c.b16 %v3405, %v3404
    %v3409 = vpack.c.b16 %v3407, %v3406
    %v3413 = vsel %vm2175, %v3399, 0
    %3415 = vmatpush.bf16.msra.mxu0 0
    %3416 = vmatpush.bf16.msra.mxu0 0
    %3417 = vmatpush.bf16.msra.mxu0 0
    %3418 = vmatpush.bf16.msra.mxu0 0
    %3419 = vmatpush.bf16.msra.mxu0 0
    %3420 = vmatpush.bf16.msra.mxu0 0
    %3421 = vmatpush.bf16.msra.mxu0 %v3409
    %3422 = vmatpush.bf16.msra.mxu0 %v3408
    %3423 = vmatmul.bf16.gmra.mxu0 %v3413
    %v3424 = vpop.f32.mrf.mxu0
    %v3425 = vadd.f32 0.0, %v3424
    %v3426 = vpop.f32.mrf.mxu0
    %3427 = vdwg.mxu0
    %v3428 = vadd.f32 %v3375, %v3425
    %s3429 = scalar_lea.vmem [#allocation5], 16
    %v3430 = vld [vmem:[%s3429] sm:$0x3]
    %v3432 = vsel %vm3008, %v3430, 0
    %3434 = vmatpush.bf16.msra.mxu0 0
    %3435 = vmatpush.bf16.msra.mxu0 0
    %3436 = vmatpush.bf16.msra.mxu0 0
    %3437 = vmatpush.bf16.msra.mxu0 0
    %3438 = vmatpush.bf16.msra.mxu0 0
    %3439 = vmatpush.bf16.msra.mxu0 0
    %3440 = vmatpush.bf16.msra.mxu0 0
    %3441 = vmatpush.bf16.msra.mxu0 %v3006
    %3442 = vmatmul.bf16.gmra.mxu0 %v3432
    %v3443 = vpop.f32.mrf.mxu0
    %v3444 = vadd.f32 0.0, %v3443
    %v3445 = vpop.f32.mrf.mxu0
    %3446 = vdwg.mxu0
    %s3447 = scalar_lea.vmem %s8, 272
    %v3448 = vld [vmem:[%s3447] sm:$0xf]
    %v3449 = vld [vmem:[%s3447 + $0x4] sm:$0xf]
    %v3450 = vld [vmem:[%s3447 + $0x8] sm:$0xf]
    %v3451 = vld [vmem:[%s3447 + $0xc] sm:$0xf]
    %v3452 = vpack.c.bf16 %v3444, %v3444
    %v3457 = vunpack.c.l.b16 %v3448
    %v3458 = vunpack.c.l.b16 %v3449
    %v3459 = vunpack.c.l.b16 %v3450
    %v3460 = vunpack.c.l.b16 %v3451
    %v3461 = vpack.c.b16 %v3458, %v3457
    %v3462 = vpack.c.b16 %v3460, %v3459
    %v3466 = vsel %vm2175, %v3452, 0
    %3468 = vmatpush.bf16.msra.mxu0 0
    %3469 = vmatpush.bf16.msra.mxu0 0
    %3470 = vmatpush.bf16.msra.mxu0 0
    %3471 = vmatpush.bf16.msra.mxu0 0
    %3472 = vmatpush.bf16.msra.mxu0 0
    %3473 = vmatpush.bf16.msra.mxu0 0
    %3474 = vmatpush.bf16.msra.mxu0 %v3462
    %3475 = vmatpush.bf16.msra.mxu0 %v3461
    %3476 = vmatmul.bf16.gmra.mxu0 %v3466
    %v3477 = vpop.f32.mrf.mxu0
    %v3478 = vadd.f32 0.0, %v3477
    %v3479 = vpop.f32.mrf.mxu0
    %3480 = vdwg.mxu0
    %v3481 = vadd.f32 %v3428, %v3478
    %vm3482 = vcmask 257024
    %v3483 = vsel %vm3482, %v3481, 0.0
    %v3484 = vrot.slane %v3483, 4
    %v3485 = vadd.f32 %v3483, %v3484
    %v3486 = vrot.slane %v3485, 2
    %v3487 = vadd.f32 %v3485, %v3486
    %v3488 = vrot.slane %v3487, 1
    %v3489 = vadd.f32 %v3487, %v3488
    %v3490 = vrcp.pop 4.0
    %v3491 = vmul.f32 4.0, %v3490
    %v3492 = vsub.f32 1.0, %v3491
    %v3493 = vmul.f32 %v3490, %v3492
    %v3494 = vadd.f32 %v3490, %v3493
    %vm3495 = vweird.f32 %v3490
    %v3496 = vsel %vm3495, %v3490, %v3494
    %v3497 = vmul.f32 %v3489, %v3496
    %v3499 = vsel %vm2175, %v3497, 0
    %3501 = vmatpush.msra.mxu0 0.0
    %3502 = vmatpush.msra.mxu0 0.0
    %3503 = vmatpush.msra.mxu0 0.0
    %3504 = vmatpush.msra.mxu0 0.0
    %3505 = vmatpush.msra.mxu0 0.0
    %3506 = vmatpush.msra.mxu0 0.0
    %3507 = vmatpush.msra.mxu0 0.0
    %3508 = vmatpush.msra.mxu0 0.0
    %3509 = vmatpush.msra.mxu0 0.0
    %3510 = vmatpush.msra.mxu0 0.0
    %3511 = vmatpush.msra.mxu0 0.0
    %3512 = vmatpush.msra.mxu0 0.0
    %3513 = vmatpush.msra.mxu0 %v201
    %3514 = vmatpush.msra.mxu0 %v200
    %3515 = vmatpush.msra.mxu0 %v199
    %3516 = vmatpush.msra.mxu0 %v198
    %3517 = vmatmul.f32.gmra.mxu0 %v3499
    %v3518 = vpop.f32.mrf.mxu0
    %v3519 = vadd.f32 0.0, %v3518
    %3520 = vdwg.mxu0
    %v3521 = vperm.slane %v3519, 0
    %v3522 = vsub.f32 %v3481, %v3521
    %v3523 = vmul.f32 %v3522, %v3522
    %v3524 = vsel %vm3482, %v3523, 0.0
    %v3525 = vrot.slane %v3524, 4
    %v3526 = vadd.f32 %v3524, %v3525
    %v3527 = vrot.slane %v3526, 2
    %v3528 = vadd.f32 %v3526, %v3527
    %v3529 = vrot.slane %v3528, 1
    %v3530 = vadd.f32 %v3528, %v3529
    %v3531 = vmul.f32 %v3530, %v3496
    %v3533 = vsel %vm2175, %v3531, 0
    %3535 = vmatpush.msra.mxu0 0.0
    %3536 = vmatpush.msra.mxu0 0.0
    %3537 = vmatpush.msra.mxu0 0.0
    %3538 = vmatpush.msra.mxu0 0.0
    %3539 = vmatpush.msra.mxu0 0.0
    %3540 = vmatpush.msra.mxu0 0.0
    %3541 = vmatpush.msra.mxu0 0.0
    %3542 = vmatpush.msra.mxu0 0.0
    %3543 = vmatpush.msra.mxu0 0.0
    %3544 = vmatpush.msra.mxu0 0.0
    %3545 = vmatpush.msra.mxu0 0.0
    %3546 = vmatpush.msra.mxu0 0.0
    %3547 = vmatpush.msra.mxu0 %v201
    %3548 = vmatpush.msra.mxu0 %v200
    %3549 = vmatpush.msra.mxu0 %v199
    %3550 = vmatpush.msra.mxu0 %v198
    %3551 = vmatmul.f32.gmra.mxu0 %v3533
    %v3552 = vpop.f32.mrf.mxu0
    %v3553 = vadd.f32 1e-05, %v3552
    %3554 = vdwg.mxu0
    %v3555 = vrsqrt.pop %v3553
    %v3556 = vmul.f32 %v3555, %v3553
    %v3557 = vmul.f32 %v3556, %v3555
    %v3558 = vmul.f32 0.5, %v3557
    %v3559 = vsub.f32 1.5, %v3558
    %v3560 = vmul.f32 %v3555, %v3559
    %vm3561 = vweird.f32 %v3553
    %vm3562 = vweird.f32 %v3555
    %vm3563 = vmor %vm3561, %vm3562
    %v3564 = vsel %vm3563, %v3555, %v3560
    %v3565 = vperm.slane %v3564, 0
    %v3566 = vmul.f32 %v3522, %v3565
    %s3567 = scalar_lea.vmem [#allocation8], 2
    %v3568 = vld [vmem:[%s3567] sm:$0x1]
    %v3570 = vperm.slane %v3568, 0
    %v3572 = vmul.f32 %v3566, %v3570
    %s3573 = scalar_lea.vmem [#allocation8], 7
    %v3574 = vld [vmem:[%s3573] sm:$0x1]
    %v3576 = vperm.slane %v3574, 0
    %v3578 = vadd.f32 %v3572, %v3576
    %v3579 = vmax.f32 %v3578, 0.0
    %v3580 = vld [vmem:[%s5] sm:$0x1]
    %v3581 = vunpack.c.l.bf16 %v3580
    %vm3582 = vcmask 31744
    %v3584 = vsel %vm3582, %v3581, 0
    %vm3586 = vcmask 1043456
    %v3588 = vsel %vm3586, %v3579, 0
    %3590 = vmatpush.msra.mxu0 0.0
    %3591 = vmatpush.msra.mxu0 0.0
    %3592 = vmatpush.msra.mxu0 0.0
    %3593 = vmatpush.msra.mxu0 0.0
    %3594 = vmatpush.msra.mxu0 0.0
    %3595 = vmatpush.msra.mxu0 0.0
    %3596 = vmatpush.msra.mxu0 0.0
    %3597 = vmatpush.msra.mxu0 0.0
    %3598 = vmatpush.msra.mxu0 0.0
    %3599 = vmatpush.msra.mxu0 0.0
    %3600 = vmatpush.msra.mxu0 0.0
    %3601 = vmatpush.msra.mxu0 0.0
    %3602 = vmatpush.msra.mxu0 0.0
    %3603 = vmatpush.msra.mxu0 0.0
    %3604 = vmatpush.msra.mxu0 0.0
    %3605 = vmatpush.msra.mxu0 %v3588
    %3606 = vmatmul.f32.gmra.mxu0 %v3584
    %v3607 = vpop.f32.mrf.mxu0
    %v3608 = vadd.f32 0.0, %v3607
    %3609 = vdwg.mxu0
    %s3610 = scalar_lea.vmem %s8, 288
    %v3611 = vld [vmem:[%s3610] sm:$0xf]
    %v3612 = vld [vmem:[%s3610 + $0x4] sm:$0xf]
    %v3613 = vld [vmem:[%s3610 + $0x8] sm:$0xf]
    %v3614 = vld [vmem:[%s3610 + $0xc] sm:$0xf]
    %v3615 = vpack.c.bf16 %v3608, %v3608
    %s3616 = scalar_lea.vmem %s5, 1
    %v3617 = vld [vmem:[%s3616] sm:$0x1]
    %v3618 = vunpack.c.l.bf16 %v3617
    %v3620 = vsel %vm3582, %v3618, 0
    %3622 = vmatpush.msra.mxu0 0.0
    %3623 = vmatpush.msra.mxu0 0.0
    %3624 = vmatpush.msra.mxu0 0.0
    %3625 = vmatpush.msra.mxu0 0.0
    %3626 = vmatpush.msra.mxu0 0.0
    %3627 = vmatpush.msra.mxu0 0.0
    %3628 = vmatpush.msra.mxu0 0.0
    %3629 = vmatpush.msra.mxu0 0.0
    %3630 = vmatpush.msra.mxu0 0.0
    %3631 = vmatpush.msra.mxu0 0.0
    %3632 = vmatpush.msra.mxu0 0.0
    %3633 = vmatpush.msra.mxu0 0.0
    %3634 = vmatpush.msra.mxu0 0.0
    %3635 = vmatpush.msra.mxu0 0.0
    %3636 = vmatpush.msra.mxu0 0.0
    %3637 = vmatpush.msra.mxu0 %v3588
    %3638 = vmatmul.f32.gmra.mxu0 %v3620
    %v3639 = vpop.f32.mrf.mxu0
    %v3640 = vadd.f32 0.0, %v3639
    %3641 = vdwg.mxu0
    %s3642 = scalar_lea.vmem %s8, 304
    %v3643 = vld [vmem:[%s3642] sm:$0xf]
    %v3644 = vld [vmem:[%s3642 + $0x4] sm:$0xf]
    %v3645 = vld [vmem:[%s3642 + $0x8] sm:$0xf]
    %v3646 = vld [vmem:[%s3642 + $0xc] sm:$0xf]
    %v3647 = vpack.c.bf16 %v3640, %v3640
    %v3652 = vunpack.c.l.b16 %v3643
    %v3653 = vunpack.c.l.b16 %v3644
    %v3654 = vunpack.c.l.b16 %v3645
    %v3655 = vunpack.c.l.b16 %v3646
    %v3656 = vpack.c.b16 %v3653, %v3652
    %v3657 = vpack.c.b16 %v3655, %v3654
    %v3661 = vsel %vm2175, %v3647, 0
    %3663 = vmatpush.bf16.msra.mxu0 0
    %3664 = vmatpush.bf16.msra.mxu0 0
    %3665 = vmatpush.bf16.msra.mxu0 0
    %3666 = vmatpush.bf16.msra.mxu0 0
    %3667 = vmatpush.bf16.msra.mxu0 0
    %3668 = vmatpush.bf16.msra.mxu0 0
    %3669 = vmatpush.bf16.msra.mxu0 %v3657
    %3670 = vmatpush.bf16.msra.mxu0 %v3656
    %3671 = vmatmul.bf16.gmra.mxu0 %v3661
    %v3672 = vpop.f32.mrf.mxu0
    %v3673 = vadd.f32 0.0, %v3672
    %v3674 = vpop.f32.mrf.mxu0
    %3675 = vdwg.mxu0
    %v3680 = vunpack.c.l.b16 %v3611
    %v3681 = vunpack.c.l.b16 %v3612
    %v3682 = vunpack.c.l.b16 %v3613
    %v3683 = vunpack.c.l.b16 %v3614
    %v3684 = vpack.c.b16 %v3681, %v3680
    %v3685 = vpack.c.b16 %v3683, %v3682
    %v3689 = vsel %vm2175, %v3615, 0
    %3691 = vmatpush.bf16.msra.mxu0 0
    %3692 = vmatpush.bf16.msra.mxu0 0
    %3693 = vmatpush.bf16.msra.mxu0 0
    %3694 = vmatpush.bf16.msra.mxu0 0
    %3695 = vmatpush.bf16.msra.mxu0 0
    %3696 = vmatpush.bf16.msra.mxu0 0
    %3697 = vmatpush.bf16.msra.mxu0 %v3685
    %3698 = vmatpush.bf16.msra.mxu0 %v3684
    %3699 = vmatmul.bf16.gmra.mxu0 %v3689
    %v3700 = vpop.f32.mrf.mxu0
    %v3701 = vadd.f32 %v3673, %v3700
    %v3702 = vpop.f32.mrf.mxu0
    %3703 = vdwg.mxu0
    %s3704 = scalar_lea.vmem %s5, 2
    %v3705 = vld [vmem:[%s3704] sm:$0x1]
    %v3706 = vunpack.c.l.bf16 %v3705
    %v3708 = vsel %vm3582, %v3706, 0
    %3710 = vmatpush.msra.mxu0 0.0
    %3711 = vmatpush.msra.mxu0 0.0
    %3712 = vmatpush.msra.mxu0 0.0
    %3713 = vmatpush.msra.mxu0 0.0
    %3714 = vmatpush.msra.mxu0 0.0
    %3715 = vmatpush.msra.mxu0 0.0
    %3716 = vmatpush.msra.mxu0 0.0
    %3717 = vmatpush.msra.mxu0 0.0
    %3718 = vmatpush.msra.mxu0 0.0
    %3719 = vmatpush.msra.mxu0 0.0
    %3720 = vmatpush.msra.mxu0 0.0
    %3721 = vmatpush.msra.mxu0 0.0
    %3722 = vmatpush.msra.mxu0 0.0
    %3723 = vmatpush.msra.mxu0 0.0
    %3724 = vmatpush.msra.mxu0 0.0
    %3725 = vmatpush.msra.mxu0 %v3588
    %3726 = vmatmul.f32.gmra.mxu0 %v3708
    %v3727 = vpop.f32.mrf.mxu0
    %v3728 = vadd.f32 0.0, %v3727
    %3729 = vdwg.mxu0
    %s3730 = scalar_lea.vmem %s8, 320
    %v3731 = vld [vmem:[%s3730] sm:$0xf]
    %v3732 = vld [vmem:[%s3730 + $0x4] sm:$0xf]
    %v3733 = vld [vmem:[%s3730 + $0x8] sm:$0xf]
    %v3734 = vld [vmem:[%s3730 + $0xc] sm:$0xf]
    %v3735 = vpack.c.bf16 %v3728, %v3728
    %v3740 = vunpack.c.l.b16 %v3731
    %v3741 = vunpack.c.l.b16 %v3732
    %v3742 = vunpack.c.l.b16 %v3733
    %v3743 = vunpack.c.l.b16 %v3734
    %v3744 = vpack.c.b16 %v3741, %v3740
    %v3745 = vpack.c.b16 %v3743, %v3742
    %v3749 = vsel %vm2175, %v3735, 0
    %3751 = vmatpush.bf16.msra.mxu0 0
    %3752 = vmatpush.bf16.msra.mxu0 0
    %3753 = vmatpush.bf16.msra.mxu0 0
    %3754 = vmatpush.bf16.msra.mxu0 0
    %3755 = vmatpush.bf16.msra.mxu0 0
    %3756 = vmatpush.bf16.msra.mxu0 0
    %3757 = vmatpush.bf16.msra.mxu0 %v3745
    %3758 = vmatpush.bf16.msra.mxu0 %v3744
    %3759 = vmatmul.bf16.gmra.mxu0 %v3749
    %v3760 = vpop.f32.mrf.mxu0
    %v3761 = vadd.f32 0.0, %v3760
    %v3762 = vpop.f32.mrf.mxu0
    %3763 = vdwg.mxu0
    %v3764 = vadd.f32 %v3701, %v3761
    %s3765 = scalar_lea.vmem %s5, 3
    %v3766 = vld [vmem:[%s3765] sm:$0x1]
    %v3767 = vunpack.c.l.bf16 %v3766
    %v3769 = vsel %vm3582, %v3767, 0
    %3771 = vmatpush.msra.mxu0 0.0
    %3772 = vmatpush.msra.mxu0 0.0
    %3773 = vmatpush.msra.mxu0 0.0
    %3774 = vmatpush.msra.mxu0 0.0
    %3775 = vmatpush.msra.mxu0 0.0
    %3776 = vmatpush.msra.mxu0 0.0
    %3777 = vmatpush.msra.mxu0 0.0
    %3778 = vmatpush.msra.mxu0 0.0
    %3779 = vmatpush.msra.mxu0 0.0
    %3780 = vmatpush.msra.mxu0 0.0
    %3781 = vmatpush.msra.mxu0 0.0
    %3782 = vmatpush.msra.mxu0 0.0
    %3783 = vmatpush.msra.mxu0 0.0
    %3784 = vmatpush.msra.mxu0 0.0
    %3785 = vmatpush.msra.mxu0 0.0
    %3786 = vmatpush.msra.mxu0 %v3588
    %3787 = vmatmul.f32.gmra.mxu0 %v3769
    %v3788 = vpop.f32.mrf.mxu0
    %v3789 = vadd.f32 0.0, %v3788
    %3790 = vdwg.mxu0
    %s3791 = scalar_lea.vmem %s8, 336
    %v3792 = vld [vmem:[%s3791] sm:$0xf]
    %v3793 = vld [vmem:[%s3791 + $0x4] sm:$0xf]
    %v3794 = vld [vmem:[%s3791 + $0x8] sm:$0xf]
    %v3795 = vld [vmem:[%s3791 + $0xc] sm:$0xf]
    %v3796 = vpack.c.bf16 %v3789, %v3789
    %v3801 = vunpack.c.l.b16 %v3792
    %v3802 = vunpack.c.l.b16 %v3793
    %v3803 = vunpack.c.l.b16 %v3794
    %v3804 = vunpack.c.l.b16 %v3795
    %v3805 = vpack.c.b16 %v3802, %v3801
    %v3806 = vpack.c.b16 %v3804, %v3803
    %v3810 = vsel %vm2175, %v3796, 0
    %3812 = vmatpush.bf16.msra.mxu0 0
    %3813 = vmatpush.bf16.msra.mxu0 0
    %3814 = vmatpush.bf16.msra.mxu0 0
    %3815 = vmatpush.bf16.msra.mxu0 0
    %3816 = vmatpush.bf16.msra.mxu0 0
    %3817 = vmatpush.bf16.msra.mxu0 0
    %3818 = vmatpush.bf16.msra.mxu0 %v3806
    %3819 = vmatpush.bf16.msra.mxu0 %v3805
    %3820 = vmatmul.bf16.gmra.mxu0 %v3810
    %v3821 = vpop.f32.mrf.mxu0
    %v3822 = vadd.f32 0.0, %v3821
    %v3823 = vpop.f32.mrf.mxu0
    %3824 = vdwg.mxu0
    %v3825 = vadd.f32 %v3764, %v3822
    %v3826 = vadd.f32 %v3825, 0.0
    %v3828 = vsel %vm2175, %v3826, 0
    %3830 = vmatpush.msra.mxu0 0.0
    %3831 = vmatpush.msra.mxu0 0.0
    %3832 = vmatpush.msra.mxu0 0.0
    %3833 = vmatpush.msra.mxu0 0.0
    %3834 = vmatpush.msra.mxu0 0.0
    %3835 = vmatpush.msra.mxu0 0.0
    %3836 = vmatpush.msra.mxu0 0.0
    %3837 = vmatpush.msra.mxu0 0.0
    %3838 = vmatpush.msra.mxu0 0.0
    %3839 = vmatpush.msra.mxu0 0.0
    %3840 = vmatpush.msra.mxu0 0.0
    %3841 = vmatpush.msra.mxu0 0.0
    %3842 = vmatpush.msra.mxu0 %v201
    %3843 = vmatpush.msra.mxu0 %v200
    %3844 = vmatpush.msra.mxu0 %v199
    %3845 = vmatpush.msra.mxu0 %v198
    %3846 = vmatmul.f32.gmra.mxu0 %v3828
    %v3847 = vpop.f32.mrf.mxu0
    %v3848 = vadd.f32 0.0, %v3847
    %3849 = vdwg.mxu0
    %v3850 = vsub.f32 %v3825, %v3848
    %v3851 = vmul.f32 %v3850, %v3850
    %v3852 = vadd.f32 %v3851, 0.0
    %v3854 = vsel %vm2175, %v3852, 0
    %3856 = vmatpush.msra.mxu0 0.0
    %3857 = vmatpush.msra.mxu0 0.0
    %3858 = vmatpush.msra.mxu0 0.0
    %3859 = vmatpush.msra.mxu0 0.0
    %3860 = vmatpush.msra.mxu0 0.0
    %3861 = vmatpush.msra.mxu0 0.0
    %3862 = vmatpush.msra.mxu0 0.0
    %3863 = vmatpush.msra.mxu0 0.0
    %3864 = vmatpush.msra.mxu0 0.0
    %3865 = vmatpush.msra.mxu0 0.0
    %3866 = vmatpush.msra.mxu0 0.0
    %3867 = vmatpush.msra.mxu0 0.0
    %3868 = vmatpush.msra.mxu0 %v201
    %3869 = vmatpush.msra.mxu0 %v200
    %3870 = vmatpush.msra.mxu0 %v199
    %3871 = vmatpush.msra.mxu0 %v198
    %3872 = vmatmul.f32.gmra.mxu0 %v3854
    %v3873 = vpop.f32.mrf.mxu0
    %v3874 = vadd.f32 1e-05, %v3873
    %3875 = vdwg.mxu0
    %v3876 = vrsqrt.pop %v3874
    %v3877 = vmul.f32 %v3876, %v3874
    %v3878 = vmul.f32 %v3877, %v3876
    %v3879 = vmul.f32 0.5, %v3878
    %v3880 = vsub.f32 1.5, %v3879
    %v3881 = vmul.f32 %v3876, %v3880
    %vm3882 = vweird.f32 %v3874
    %vm3883 = vweird.f32 %v3876
    %vm3884 = vmor %vm3882, %vm3883
    %v3885 = vsel %vm3884, %v3876, %v3881
    %v3886 = vmul.f32 %v3850, %v3885
    %s3887 = scalar_lea.vmem [#allocation8], 3
    %v3888 = vld [vmem:[%s3887] sm:$0x1]
    %v3889 = vmul.f32 %v3886, %v3888
    %s3890 = scalar_lea.vmem [#allocation8], 8
    %v3891 = vld [vmem:[%s3890] sm:$0x1]
    %v3892 = vadd.f32 %v3889, %v3891
    %v3893 = vmax.f32 %v3892, 0.0
    %s3894 = scalar_lea.vmem %s8, 352
    %v3895 = vld [vmem:[%s3894] sm:$0xf]
    %v3896 = vld [vmem:[%s3894 + $0x4] sm:$0xf]
    %v3897 = vld [vmem:[%s3894 + $0x8] sm:$0xf]
    %v3898 = vld [vmem:[%s3894 + $0xc] sm:$0xf]
    %v3899 = vpack.c.bf16 %v3893, %v3893
    %v3904 = vunpack.c.l.b16 %v3895
    %v3905 = vunpack.c.l.b16 %v3896
    %v3906 = vunpack.c.l.b16 %v3897
    %v3907 = vunpack.c.l.b16 %v3898
    %v3908 = vpack.c.b16 %v3905, %v3904
    %v3909 = vpack.c.b16 %v3907, %v3906
    %v3913 = vsel %vm2175, %v3899, 0
    %3915 = vmatpush.bf16.msra.mxu0 0
    %3916 = vmatpush.bf16.msra.mxu0 0
    %3917 = vmatpush.bf16.msra.mxu0 0
    %3918 = vmatpush.bf16.msra.mxu0 0
    %3919 = vmatpush.bf16.msra.mxu0 0
    %3920 = vmatpush.bf16.msra.mxu0 0
    %3921 = vmatpush.bf16.msra.mxu0 %v3909
    %3922 = vmatpush.bf16.msra.mxu0 %v3908
    %3923 = vmatmul.bf16.gmra.mxu0 %v3913
    %v3924 = vpop.f32.mrf.mxu0
    %v3925 = vadd.f32 0.0, %v3924
    %v3926 = vpop.f32.mrf.mxu0
    %3927 = vdwg.mxu0
    %v3928 = vadd.f32 %v3925, 0.0
    %v3930 = vsel %vm2175, %v3928, 0
    %3932 = vmatpush.msra.mxu0 0.0
    %3933 = vmatpush.msra.mxu0 0.0
    %3934 = vmatpush.msra.mxu0 0.0
    %3935 = vmatpush.msra.mxu0 0.0
    %3936 = vmatpush.msra.mxu0 0.0
    %3937 = vmatpush.msra.mxu0 0.0
    %3938 = vmatpush.msra.mxu0 0.0
    %3939 = vmatpush.msra.mxu0 0.0
    %3940 = vmatpush.msra.mxu0 0.0
    %3941 = vmatpush.msra.mxu0 0.0
    %3942 = vmatpush.msra.mxu0 0.0
    %3943 = vmatpush.msra.mxu0 0.0
    %3944 = vmatpush.msra.mxu0 %v201
    %3945 = vmatpush.msra.mxu0 %v200
    %3946 = vmatpush.msra.mxu0 %v199
    %3947 = vmatpush.msra.mxu0 %v198
    %3948 = vmatmul.f32.gmra.mxu0 %v3930
    %v3949 = vpop.f32.mrf.mxu0
    %v3950 = vadd.f32 0.0, %v3949
    %3951 = vdwg.mxu0
    %v3952 = vsub.f32 %v3925, %v3950
    %v3953 = vmul.f32 %v3952, %v3952
    %v3954 = vadd.f32 %v3953, 0.0
    %v3956 = vsel %vm2175, %v3954, 0
    %3958 = vmatpush.msra.mxu0 0.0
    %3959 = vmatpush.msra.mxu0 0.0
    %3960 = vmatpush.msra.mxu0 0.0
    %3961 = vmatpush.msra.mxu0 0.0
    %3962 = vmatpush.msra.mxu0 0.0
    %3963 = vmatpush.msra.mxu0 0.0
    %3964 = vmatpush.msra.mxu0 0.0
    %3965 = vmatpush.msra.mxu0 0.0
    %3966 = vmatpush.msra.mxu0 0.0
    %3967 = vmatpush.msra.mxu0 0.0
    %3968 = vmatpush.msra.mxu0 0.0
    %3969 = vmatpush.msra.mxu0 0.0
    %3970 = vmatpush.msra.mxu0 %v201
    %3971 = vmatpush.msra.mxu0 %v200
    %3972 = vmatpush.msra.mxu0 %v199
    %3973 = vmatpush.msra.mxu0 %v198
    %3974 = vmatmul.f32.gmra.mxu0 %v3956
    %v3975 = vpop.f32.mrf.mxu0
    %v3976 = vadd.f32 1e-05, %v3975
    %3977 = vdwg.mxu0
    %v3978 = vrsqrt.pop %v3976
    %v3979 = vmul.f32 %v3978, %v3976
    %v3980 = vmul.f32 %v3979, %v3978
    %v3981 = vmul.f32 0.5, %v3980
    %v3982 = vsub.f32 1.5, %v3981
    %v3983 = vmul.f32 %v3978, %v3982
    %vm3984 = vweird.f32 %v3976
    %vm3985 = vweird.f32 %v3978
    %vm3986 = vmor %vm3984, %vm3985
    %v3987 = vsel %vm3986, %v3978, %v3983
    %v3988 = vmul.f32 %v3952, %v3987
    %s3989 = scalar_lea.vmem [#allocation8], 4
    %v3990 = vld [vmem:[%s3989] sm:$0x1]
    %v3991 = vmul.f32 %v3988, %v3990
    %s3992 = scalar_lea.vmem [#allocation8], 9
    %v3993 = vld [vmem:[%s3992] sm:$0x1]
    %v3994 = vadd.f32 %v3991, %v3993
    %v3995 = vmax.f32 %v3994, 0.0
    %v3996 = vadd.f32 %v3995, 0.0
    %v3997 = vld [vmem:[%s1] sm:$0x1]
    %v3998 = vld [vmem:[%s1 + $0x1] sm:$0x1]
    %v3999 = vpack.c.bf16 %v3996, %v3996
    %v4000 = vld [vmem:[#allocation11] sm:$0xff]
    %v4001 = vld [vmem:[#allocation11 + $0x8] sm:$0xff]
    %v4002 = vld [vmem:[#allocation11 + $0x10] sm:$0xff]
    %v4003 = vld [vmem:[#allocation11 + $0x18] sm:$0xff]
    %v4004 = vpack.c.bf16 %v3997, %v3997
    %v4005 = vld [vmem:[#allocation11 + $0x20] sm:$0xff]
    %v4006 = vld [vmem:[#allocation11 + $0x28] sm:$0xff]
    %v4007 = vld [vmem:[#allocation11 + $0x30] sm:$0xff]
    %v4008 = vld [vmem:[#allocation11 + $0x38] sm:$0xff]
    %v4009 = vld [vmem:[#allocation11 + $0x40] sm:$0xff]
    %v4010 = vld [vmem:[#allocation11 + $0x48] sm:$0xff]
    %v4011 = vld [vmem:[#allocation11 + $0x50] sm:$0xff]
    %v4012 = vld [vmem:[#allocation11 + $0x58] sm:$0xff]
    %v4021 = vunpack.c.l.b16 %v4005
    %v4022 = vunpack.c.h.b16 %v4005
    %v4023 = vunpack.c.l.b16 %v4006
    %v4024 = vunpack.c.h.b16 %v4006
    %v4025 = vunpack.c.l.b16 %v4007
    %v4026 = vunpack.c.h.b16 %v4007
    %v4027 = vunpack.c.l.b16 %v4008
    %v4028 = vunpack.c.h.b16 %v4008
    %v4029 = vunpack.c.l.b16 %v4009
    %v4030 = vunpack.c.h.b16 %v4009
    %v4031 = vunpack.c.l.b16 %v4010
    %v4032 = vunpack.c.h.b16 %v4010
    %v4033 = vunpack.c.l.b16 %v4011
    %v4034 = vunpack.c.h.b16 %v4011
    %v4035 = vunpack.c.l.b16 %v4012
    %v4036 = vunpack.c.h.b16 %v4012
    %v4037 = vpack.c.b16 %v4023, %v4021
    %v4038 = vpack.c.b16 %v4024, %v4022
    %v4039 = vpack.c.b16 %v4027, %v4025
    %v4040 = vpack.c.b16 %v4028, %v4026
    %v4041 = vpack.c.b16 %v4031, %v4029
    %v4042 = vpack.c.b16 %v4032, %v4030
    %v4043 = vpack.c.b16 %v4035, %v4033
    %v4044 = vpack.c.b16 %v4036, %v4034
    %v4054 = vsel %vm2353, %v4004, 0
    %4056 = vmatpush.bf16.msra.mxu0 0
    %4057 = vmatpush.bf16.msra.mxu0 0
    %4058 = vmatpush.bf16.msra.mxu0 0
    %4059 = vmatpush.bf16.msra.mxu0 0
    %4060 = vmatpush.bf16.msra.mxu0 %v4043
    %4061 = vmatpush.bf16.msra.mxu0 %v4041
    %4062 = vmatpush.bf16.msra.mxu0 %v4039
    %4063 = vmatpush.bf16.msra.mxu0 %v4037
    %4064 = vmatmul.bf16.gmra.mxu0 %v4054
    %v4065 = vpop.f32.mrf.mxu0
    %v4066 = vadd.f32 0.0, %v4065
    %v4067 = vpop.f32.mrf.mxu0
    %4068 = vdwg.mxu0
    %4069 = vmatpush.bf16.msra.mxu0 0
    %4070 = vmatpush.bf16.msra.mxu0 0
    %4071 = vmatpush.bf16.msra.mxu0 0
    %4072 = vmatpush.bf16.msra.mxu0 0
    %4073 = vmatpush.bf16.msra.mxu0 %v4044
    %4074 = vmatpush.bf16.msra.mxu0 %v4042
    %4075 = vmatpush.bf16.msra.mxu0 %v4040
    %4076 = vmatpush.bf16.msra.mxu0 %v4038
    %4077 = vmatmul.bf16.gmra.mxu0 %v4054
    %v4078 = vpop.f32.mrf.mxu0
    %v4079 = vadd.f32 0.0, %v4078
    %v4080 = vpop.f32.mrf.mxu0
    %4081 = vdwg.mxu0
    %v4086 = vunpack.c.l.b16 %v4000
    %v4087 = vunpack.c.h.b16 %v4000
    %v4088 = vunpack.c.l.b16 %v4001
    %v4089 = vunpack.c.h.b16 %v4001
    %v4090 = vunpack.c.l.b16 %v4002
    %v4091 = vunpack.c.h.b16 %v4002
    %v4092 = vunpack.c.l.b16 %v4003
    %v4093 = vunpack.c.h.b16 %v4003
    %v4094 = vpack.c.b16 %v4088, %v4086
    %v4095 = vpack.c.b16 %v4089, %v4087
    %v4096 = vpack.c.b16 %v4092, %v4090
    %v4097 = vpack.c.b16 %v4093, %v4091
    %v4103 = vsel %vm2175, %v3999, 0
    %4105 = vmatpush.bf16.msra.mxu0 0
    %4106 = vmatpush.bf16.msra.mxu0 0
    %4107 = vmatpush.bf16.msra.mxu0 0
    %4108 = vmatpush.bf16.msra.mxu0 0
    %4109 = vmatpush.bf16.msra.mxu0 0
    %4110 = vmatpush.bf16.msra.mxu0 0
    %4111 = vmatpush.bf16.msra.mxu0 %v4096
    %4112 = vmatpush.bf16.msra.mxu0 %v4094
    %4113 = vmatmul.bf16.gmra.mxu0 %v4103
    %v4114 = vpop.f32.mrf.mxu0
    %v4115 = vadd.f32 %v4066, %v4114
    %v4116 = vpop.f32.mrf.mxu0
    %4117 = vdwg.mxu0
    %4118 = vmatpush.bf16.msra.mxu0 0
    %4119 = vmatpush.bf16.msra.mxu0 0
    %4120 = vmatpush.bf16.msra.mxu0 0
    %4121 = vmatpush.bf16.msra.mxu0 0
    %4122 = vmatpush.bf16.msra.mxu0 0
    %4123 = vmatpush.bf16.msra.mxu0 0
    %4124 = vmatpush.bf16.msra.mxu0 %v4097
    %4125 = vmatpush.bf16.msra.mxu0 %v4095
    %4126 = vmatmul.bf16.gmra.mxu0 %v4103
    %v4127 = vpop.f32.mrf.mxu0
    %v4128 = vadd.f32 %v4079, %v4127
    %v4129 = vpop.f32.mrf.mxu0
    %4130 = vdwg.mxu0
    %v4131 = vld [vmem:[#allocation16] sm:$0x3]
    %v4133 = vperm.slane %v4131, 0
    %v4134 = vperm.slane %v4131, 1
    %v4137 = vadd.f32 %v4115, %v4133
    %v4138 = vadd.f32 %v4128, %v4134
    %v4139 = vxor.u32 %v4137, 2147483648
    %v4140 = vmul.f32 %v4139, 1.442695
    %v4141 = vpow.pop %v4140
    %v4142 = vadd.f32 %v4141, 1.0
    %v4143 = vrcp.pop %v4142
    %v4144 = vmul.f32 %v4142, %v4143
    %v4145 = vsub.f32 1.0, %v4144
    %v4146 = vmul.f32 %v4143, %v4145
    %v4147 = vadd.f32 %v4143, %v4146
    %vm4148 = vweird.f32 %v4142
    %vm4149 = vweird.f32 %v4143
    %vm4150 = vmor %vm4148, %vm4149
    %v4151 = vsel %vm4150, %v4143, %v4147
    %v4152 = vand.u32 2147483647, %v4142
    %vm4153 = vcmp.eq.f32.partialorder %v4152, 8.507059e+37
    %v4154 = vand.u32 %v4142, 2147483648
    %v4155 = vor.u32 1.1754944e-38, %v4154
    %v4156 = vsel %vm4153, %v4155, %v4151
    %v4157 = vmul.f32 1.0, %v4156
    %v4158 = vtanh.pop %v4138
    %v4159 = vxor.u32 %v4138, 2147483648
    %v4160 = vmul.f32 %v4159, 1.442695
    %v4161 = vpow.pop %v4160
    %v4162 = vadd.f32 %v4161, 1.0
    %v4163 = vrcp.pop %v4162
    %v4164 = vmul.f32 %v4162, %v4163
    %v4165 = vsub.f32 1.0, %v4164
    %v4166 = vmul.f32 %v4163, %v4165
    %v4167 = vadd.f32 %v4163, %v4166
    %vm4168 = vweird.f32 %v4162
    %vm4169 = vweird.f32 %v4163
    %vm4170 = vmor %vm4168, %vm4169
    %v4171 = vsel %vm4170, %v4163, %v4167
    %v4172 = vand.u32 2147483647, %v4162
    %vm4173 = vcmp.eq.f32.partialorder %v4172, 8.507059e+37
    %v4174 = vand.u32 %v4162, 2147483648
    %v4175 = vor.u32 1.1754944e-38, %v4174
    %v4176 = vsel %vm4173, %v4175, %v4171
    %v4177 = vmul.f32 1.0, %v4176
    %v4178 = vmul.f32 %v4157, %v3997
    %v4179 = vmul.f32 %v4157, %v4158
    %4181 = vrot.lane.b32.xlu0 %v4179, 64
    %v4182 = vpop.permute.xlu0 %4181
    %v4184 = vadd.f32 %v4178, %v4182
    %v4185 = vtanh.pop %v4184
    %v4186 = vmul.f32 %v4177, %v4185
    %v4187 = vpack.c.bf16 %v4186, %v4186
    %v4188 = vld [vmem:[#allocation13] sm:$0xf]
    %v4189 = vld [vmem:[#allocation13 + $0x4] sm:$0xf]
    %v4190 = vld [vmem:[#allocation13 + $0x8] sm:$0xf]
    %v4191 = vld [vmem:[#allocation13 + $0xc] sm:$0xf]
    %v4192 = vld [vmem:[#allocation13 + $0x10] sm:$0xf]
    %v4193 = vld [vmem:[#allocation13 + $0x14] sm:$0xf]
    %v4194 = vld [vmem:[#allocation13 + $0x18] sm:$0xf]
    %v4195 = vld [vmem:[#allocation13 + $0x1c] sm:$0xf]
    %v4196 = vpack.c.bf16 %v3998, %v3998
    %v4197 = vld [vmem:[#allocation13 + $0x20] sm:$0xf]
    %vm4198 = vcmask 64512
    %v4200 = vsel %vm4198, %v4196, 0
    %v4203 = vsel %vm3586, %v4197, 0
    %4205 = vmatpush.bf16.msra.mxu0 0
    %4206 = vmatpush.bf16.msra.mxu0 0
    %4207 = vmatpush.bf16.msra.mxu0 0
    %4208 = vmatpush.bf16.msra.mxu0 0
    %4209 = vmatpush.bf16.msra.mxu0 0
    %4210 = vmatpush.bf16.msra.mxu0 0
    %4211 = vmatpush.bf16.msra.mxu0 0
    %4212 = vmatpush.bf16.msra.mxu0 %v4203
    %4213 = vmatmul.bf16.gmra.mxu0 %v4200
    %v4214 = vpop.f32.mrf.mxu0
    %v4215 = vadd.f32 0.0, %v4214
    %v4216 = vpop.f32.mrf.mxu0
    %4217 = vdwg.mxu0
    %4219 = vrot.lane.b32.xlu0 %v4187, 64
    %v4220 = vpop.permute.xlu0 %4219
    %v4229 = vunpack.c.l.b16 %v4188
    %v4230 = vunpack.c.l.b16 %v4189
    %v4231 = vunpack.c.l.b16 %v4190
    %v4232 = vunpack.c.l.b16 %v4191
    %v4233 = vunpack.c.l.b16 %v4192
    %v4234 = vunpack.c.l.b16 %v4193
    %v4235 = vunpack.c.l.b16 %v4194
    %v4236 = vunpack.c.l.b16 %v4195
    %v4237 = vpack.c.b16 %v4230, %v4229
    %v4238 = vpack.c.b16 %v4232, %v4231
    %v4239 = vpack.c.b16 %v4234, %v4233
    %v4240 = vpack.c.b16 %v4236, %v4235
    %v4246 = vsel %vm2353, %v4220, 0
    %4248 = vmatpush.bf16.msra.mxu0 0
    %4249 = vmatpush.bf16.msra.mxu0 0
    %4250 = vmatpush.bf16.msra.mxu0 0
    %4251 = vmatpush.bf16.msra.mxu0 0
    %4252 = vmatpush.bf16.msra.mxu0 %v4240
    %4253 = vmatpush.bf16.msra.mxu0 %v4239
    %4254 = vmatpush.bf16.msra.mxu0 %v4238
    %4255 = vmatpush.bf16.msra.mxu0 %v4237
    %4256 = vmatmul.bf16.gmra.mxu0 %v4246
    %v4257 = vpop.f32.mrf.mxu0
    %v4258 = vadd.f32 %v4215, %v4257
    %v4259 = vpop.f32.mrf.mxu0
    %4260 = vdwg.mxu0
    %s4261 = scalar_lea.vmem [#allocation16], 2
    %v4262 = vld [vmem:[%s4261] sm:$0x3]
    %v4263 = vadd.f32 %v4258, %v4262
    %v4264 = vmax.f32 %v4263, 0.0
    %v4265 = vpack.c.bf16 %v4264, %v4264
    %v4266 = vld [vmem:[#allocation14] sm:$0xff]
    %v4267 = vld [vmem:[#allocation14 + $0x8] sm:$0xff]
    %v4268 = vld [vmem:[#allocation14 + $0x10] sm:$0xff]
    %v4269 = vld [vmem:[#allocation14 + $0x18] sm:$0xff]
    %v4270 = vld [vmem:[#allocation14 + $0x20] sm:$0xff]
    %v4271 = vld [vmem:[#allocation14 + $0x28] sm:$0xff]
    %v4272 = vld [vmem:[#allocation14 + $0x30] sm:$0xff]
    %v4273 = vld [vmem:[#allocation14 + $0x38] sm:$0xff]
    %v4274 = vld [vmem:[#allocation14 + $0x40] sm:$0xff]
    %v4275 = vld [vmem:[#allocation14 + $0x48] sm:$0xff]
    %v4276 = vld [vmem:[#allocation14 + $0x50] sm:$0xff]
    %v4277 = vld [vmem:[#allocation14 + $0x58] sm:$0xff]
    %v4278 = vld [vmem:[#allocation14 + $0x60] sm:$0xff]
    %v4279 = vld [vmem:[#allocation14 + $0x68] sm:$0xff]
    %v4280 = vld [vmem:[#allocation14 + $0x70] sm:$0xff]
    %v4281 = vld [vmem:[#allocation14 + $0x78] sm:$0xff]
    %s4282 = scalar_lea.vmem [#allocation16], 4
    %v4283 = vld [vmem:[%s4282] sm:$0x3]
    %v4300 = vunpack.c.l.b16 %v4266
    %v4301 = vunpack.c.h.b16 %v4266
    %v4302 = vunpack.c.l.b16 %v4267
    %v4303 = vunpack.c.h.b16 %v4267
    %v4304 = vunpack.c.l.b16 %v4268
    %v4305 = vunpack.c.h.b16 %v4268
    %v4306 = vunpack.c.l.b16 %v4269
    %v4307 = vunpack.c.h.b16 %v4269
    %v4308 = vunpack.c.l.b16 %v4270
    %v4309 = vunpack.c.h.b16 %v4270
    %v4310 = vunpack.c.l.b16 %v4271
    %v4311 = vunpack.c.h.b16 %v4271
    %v4312 = vunpack.c.l.b16 %v4272
    %v4313 = vunpack.c.h.b16 %v4272
    %v4314 = vunpack.c.l.b16 %v4273
    %v4315 = vunpack.c.h.b16 %v4273
    %v4316 = vunpack.c.l.b16 %v4274
    %v4317 = vunpack.c.h.b16 %v4274
    %v4318 = vunpack.c.l.b16 %v4275
    %v4319 = vunpack.c.h.b16 %v4275
    %v4320 = vunpack.c.l.b16 %v4276
    %v4321 = vunpack.c.h.b16 %v4276
    %v4322 = vunpack.c.l.b16 %v4277
    %v4323 = vunpack.c.h.b16 %v4277
    %v4324 = vunpack.c.l.b16 %v4278
    %v4325 = vunpack.c.h.b16 %v4278
    %v4326 = vunpack.c.l.b16 %v4279
    %v4327 = vunpack.c.h.b16 %v4279
    %v4328 = vunpack.c.l.b16 %v4280
    %v4329 = vunpack.c.h.b16 %v4280
    %v4330 = vunpack.c.l.b16 %v4281
    %v4331 = vunpack.c.h.b16 %v4281
    %v4332 = vpack.c.b16 %v4302, %v4300
    %v4333 = vpack.c.b16 %v4303, %v4301
    %v4334 = vpack.c.b16 %v4306, %v4304
    %v4335 = vpack.c.b16 %v4307, %v4305
    %v4336 = vpack.c.b16 %v4310, %v4308
    %v4337 = vpack.c.b16 %v4311, %v4309
    %v4338 = vpack.c.b16 %v4314, %v4312
    %v4339 = vpack.c.b16 %v4315, %v4313
    %v4340 = vpack.c.b16 %v4318, %v4316
    %v4341 = vpack.c.b16 %v4319, %v4317
    %v4342 = vpack.c.b16 %v4322, %v4320
    %v4343 = vpack.c.b16 %v4323, %v4321
    %v4344 = vpack.c.b16 %v4326, %v4324
    %v4345 = vpack.c.b16 %v4327, %v4325
    %v4346 = vpack.c.b16 %v4330, %v4328
    %v4347 = vpack.c.b16 %v4331, %v4329
    %v4365 = vperm.slane %v4283, 0
    %v4366 = vperm.slane %v4283, 1
    %4369 = vmatpush.bf16.msra.mxu0 %v4346
    %4370 = vmatpush.bf16.msra.mxu0 %v4344
    %4371 = vmatpush.bf16.msra.mxu0 %v4342
    %4372 = vmatpush.bf16.msra.mxu0 %v4340
    %4373 = vmatpush.bf16.msra.mxu0 %v4338
    %4374 = vmatpush.bf16.msra.mxu0 %v4336
    %4375 = vmatpush.bf16.msra.mxu0 %v4334
    %4376 = vmatpush.bf16.msra.mxu0 %v4332
    %4377 = vmatmul.bf16.gmra.mxu0 %v4265
    %v4378 = vpop.f32.mrf.mxu0
    %v4379 = vadd.f32 %v4365, %v4378
    %v4380 = vpop.f32.mrf.mxu0
    %4381 = vdwg.mxu0
    %4382 = vmatpush.bf16.msra.mxu0 %v4347
    %4383 = vmatpush.bf16.msra.mxu0 %v4345
    %4384 = vmatpush.bf16.msra.mxu0 %v4343
    %4385 = vmatpush.bf16.msra.mxu0 %v4341
    %4386 = vmatpush.bf16.msra.mxu0 %v4339
    %4387 = vmatpush.bf16.msra.mxu0 %v4337
    %4388 = vmatpush.bf16.msra.mxu0 %v4335
    %4389 = vmatpush.bf16.msra.mxu0 %v4333
    %4390 = vmatmul.bf16.gmra.mxu0 %v4265
    %v4391 = vpop.f32.mrf.mxu0
    %v4392 = vadd.f32 %v4366, %v4391
    %v4393 = vpop.f32.mrf.mxu0
    %4394 = vdwg.mxu0
    %v4395 = vmax.f32 %v4379, 0.0
    %v4396 = vmax.f32 %v4392, 0.0
    %v4397 = vpack.c.bf16 %v4395, %v4395
    %v4398 = vpack.c.bf16 %v4396, %v4396
    %v4399 = vld [vmem:[%s14] sm:$0xf]
    %v4400 = vld [vmem:[%s14 + $0x4] sm:$0xf]
    %v4401 = vld [vmem:[%s14 + $0x8] sm:$0xf]
    %v4402 = vld [vmem:[%s14 + $0xc] sm:$0xf]
    %v4403 = vld [vmem:[%s14 + $0x10] sm:$0xf]
    %v4404 = vld [vmem:[%s14 + $0x14] sm:$0xf]
    %v4405 = vld [vmem:[%s14 + $0x18] sm:$0xf]
    %v4406 = vld [vmem:[%s14 + $0x1c] sm:$0xf]
    %v4407 = vld [vmem:[%s14 + $0x20] sm:$0xf]
    %v4408 = vld [vmem:[%s14 + $0x24] sm:$0xf]
    %v4409 = vld [vmem:[%s14 + $0x28] sm:$0xf]
    %v4410 = vld [vmem:[%s14 + $0x2c] sm:$0xf]
    %v4411 = vld [vmem:[%s14 + $0x30] sm:$0xf]
    %v4412 = vld [vmem:[%s14 + $0x34] sm:$0xf]
    %v4413 = vld [vmem:[%s14 + $0x38] sm:$0xf]
    %v4414 = vld [vmem:[%s14 + $0x3c] sm:$0xf]
    %v4415 = vld [vmem:[%s14 + $0x40] sm:$0xf]
    %v4416 = vld [vmem:[%s14 + $0x44] sm:$0xf]
    %v4417 = vld [vmem:[%s14 + $0x48] sm:$0xf]
    %v4418 = vld [vmem:[%s14 + $0x4c] sm:$0xf]
    %v4419 = vld [vmem:[%s14 + $0x50] sm:$0xf]
    %v4420 = vld [vmem:[%s14 + $0x54] sm:$0xf]
    %v4421 = vld [vmem:[%s14 + $0x58] sm:$0xf]
    %v4422 = vld [vmem:[%s14 + $0x5c] sm:$0xf]
    %v4423 = vld [vmem:[%s14 + $0x60] sm:$0xf]
    %v4424 = vld [vmem:[%s14 + $0x64] sm:$0xf]
    %v4425 = vld [vmem:[%s14 + $0x68] sm:$0xf]
    %v4426 = vld [vmem:[%s14 + $0x6c] sm:$0xf]
    %v4427 = vld [vmem:[%s14 + $0x70] sm:$0xf]
    %v4428 = vld [vmem:[%s14 + $0x74] sm:$0xf]
    %v4429 = vld [vmem:[%s14 + $0x78] sm:$0xf]
    %v4430 = vld [vmem:[%s14 + $0x7c] sm:$0xf]
    %s4431 = scalar_lea.vmem [#allocation16], 6
    %v4432 = vld [vmem:[%s4431] sm:$0x3]
    %v4465 = vunpack.c.l.b16 %v4399
    %v4466 = vunpack.c.l.b16 %v4400
    %v4467 = vunpack.c.l.b16 %v4401
    %v4468 = vunpack.c.l.b16 %v4402
    %v4469 = vunpack.c.l.b16 %v4403
    %v4470 = vunpack.c.l.b16 %v4404
    %v4471 = vunpack.c.l.b16 %v4405
    %v4472 = vunpack.c.l.b16 %v4406
    %v4473 = vunpack.c.l.b16 %v4407
    %v4474 = vunpack.c.l.b16 %v4408
    %v4475 = vunpack.c.l.b16 %v4409
    %v4476 = vunpack.c.l.b16 %v4410
    %v4477 = vunpack.c.l.b16 %v4411
    %v4478 = vunpack.c.l.b16 %v4412
    %v4479 = vunpack.c.l.b16 %v4413
    %v4480 = vunpack.c.l.b16 %v4414
    %v4481 = vunpack.c.l.b16 %v4415
    %v4482 = vunpack.c.l.b16 %v4416
    %v4483 = vunpack.c.l.b16 %v4417
    %v4484 = vunpack.c.l.b16 %v4418
    %v4485 = vunpack.c.l.b16 %v4419
    %v4486 = vunpack.c.l.b16 %v4420
    %v4487 = vunpack.c.l.b16 %v4421
    %v4488 = vunpack.c.l.b16 %v4422
    %v4489 = vunpack.c.l.b16 %v4423
    %v4490 = vunpack.c.l.b16 %v4424
    %v4491 = vunpack.c.l.b16 %v4425
    %v4492 = vunpack.c.l.b16 %v4426
    %v4493 = vunpack.c.l.b16 %v4427
    %v4494 = vunpack.c.l.b16 %v4428
    %v4495 = vunpack.c.l.b16 %v4429
    %v4496 = vunpack.c.l.b16 %v4430
    %v4497 = vpack.c.b16 %v4466, %v4465
    %v4498 = vpack.c.b16 %v4468, %v4467
    %v4499 = vpack.c.b16 %v4470, %v4469
    %v4500 = vpack.c.b16 %v4472, %v4471
    %v4501 = vpack.c.b16 %v4474, %v4473
    %v4502 = vpack.c.b16 %v4476, %v4475
    %v4503 = vpack.c.b16 %v4478, %v4477
    %v4504 = vpack.c.b16 %v4480, %v4479
    %v4505 = vpack.c.b16 %v4482, %v4481
    %v4506 = vpack.c.b16 %v4484, %v4483
    %v4507 = vpack.c.b16 %v4486, %v4485
    %v4508 = vpack.c.b16 %v4488, %v4487
    %v4509 = vpack.c.b16 %v4490, %v4489
    %v4510 = vpack.c.b16 %v4492, %v4491
    %v4511 = vpack.c.b16 %v4494, %v4493
    %v4512 = vpack.c.b16 %v4496, %v4495
    %4529 = vmatpush.bf16.msra.mxu0 %v4504
    %4530 = vmatpush.bf16.msra.mxu0 %v4503
    %4531 = vmatpush.bf16.msra.mxu0 %v4502
    %4532 = vmatpush.bf16.msra.mxu0 %v4501
    %4533 = vmatpush.bf16.msra.mxu0 %v4500
    %4534 = vmatpush.bf16.msra.mxu0 %v4499
    %4535 = vmatpush.bf16.msra.mxu0 %v4498
    %4536 = vmatpush.bf16.msra.mxu0 %v4497
    %4537 = vmatmul.bf16.gmra.mxu0 %v4397
    %v4538 = vpop.f32.mrf.mxu0
    %v4539 = vadd.f32 %v4432, %v4538
    %v4540 = vpop.f32.mrf.mxu0
    %4541 = vdwg.mxu0
    %4542 = vmatpush.bf16.msra.mxu0 %v4512
    %4543 = vmatpush.bf16.msra.mxu0 %v4511
    %4544 = vmatpush.bf16.msra.mxu0 %v4510
    %4545 = vmatpush.bf16.msra.mxu0 %v4509
    %4546 = vmatpush.bf16.msra.mxu0 %v4508
    %4547 = vmatpush.bf16.msra.mxu0 %v4507
    %4548 = vmatpush.bf16.msra.mxu0 %v4506
    %4549 = vmatpush.bf16.msra.mxu0 %v4505
    %4550 = vmatmul.bf16.gmra.mxu0 %v4398
    %v4551 = vpop.f32.mrf.mxu0
    %v4552 = vadd.f32 %v4539, %v4551
    %v4553 = vpop.f32.mrf.mxu0
    %4554 = vdwg.mxu0
    %v4555 = vtanh.pop %v4552
    %vm4556 = vcmask 90112
    %4557 = vst.msk [vmem:[%s16] sm:$0x1] %vm4556, %v4555
    %4559 = vrot.lane.b32.xlu0 %v4186, 64
    %v4560 = vpop.permute.xlu0 %4559
    %vm4562 = vcmask 516096
    %4563 = vst.msk [vmem:[%s17] sm:$0x1] %vm4562, %v4560
    %vm4564 = vcmask 1040896
    %4565 = vst.msk [vmem:[%s17] sm:$0x1] %vm4564, %v4184
    // Predicated region
    $region102: #{actor_forward.1} parent=1 // pred_check
      _
    $region103: #{actor_forward.1} parent=1 // pred_check_branch
      %4567 = sbr.rel (0) target = $region105
    $region104: #{actor_forward.1} parent=1 // pred_region
      _
    $region105: #{actor_forward.1} parent=1 // pred_fallthru
      _
    // Predicated region
    $region106: #{actor_forward.1} parent=1 // pred_check
      _
    $region107: #{actor_forward.1} parent=1 // pred_check_branch
      %4569 = sbr.rel (0) target = $region109
    $region108: #{actor_forward.1} parent=1 // pred_region
      _
    $region109: #{actor_forward.1} parent=1 // pred_fallthru
      _
    // Predicated region
    $region110: #{actor_forward.1} parent=1 // pred_check
      _
    $region111: #{actor_forward.1} parent=1 // pred_check_branch
      %4571 = sbr.rel (0) target = $region113
    $region112: #{actor_forward.1} parent=1 // pred_region
      _
    $region113: #{actor_forward.1} parent=1 // pred_fallthru
      _
    // Predicated region
    $region114: #{actor_forward.1} parent=1 // pred_check
      _
    $region115: #{actor_forward.1} parent=1 // pred_check_branch
      %4573 = sbr.rel (0) target = $region117
    $region116: #{actor_forward.1} parent=1 // pred_region
      _
    $region117: #{actor_forward.1} parent=1 // pred_fallthru
      _
    %4574 = vsyncpa [#allocation4], 1
    %4575 = vsyncpa [#allocation6], 1
    %4576 = vsyncpa [#allocation9], 1
    %4577 = vsyncpa [#allocation12], 1
    %4578 = vsyncpa [#allocation15], 1

</llo_original>
